<compile_context>
chip_gen: v6e
topology: v6e:2x2x1
jax: 0.10.0
libtpu: 0.0.40
codegen_flags: <defaults>
</compile_context>

<pallas_src>
import jax
import jax.numpy as jnp
from jax.experimental import pallas as pl
from jax.experimental.pallas import tpu as pltpu


# --------------------------------------------------------------------------- #
# Pallas kernel: fused bi-LSTM recurrence + attn_fc + masked softmax pooling   #
# --------------------------------------------------------------------------- #
def lstm_attn_kernel(x_ref, mask_ref,
                     w_ih_f_ref, w_ih_b_ref, b_f_ref, b_b_ref,
                     w_hh_f_ref, w_hh_b_ref,
                     w_fc_f_ref, w_fc_b_ref, b_fc_ref, ctx_ref,
                     out_ref, hid_ref,
                     xp_f_ref, xp_b_ref, hf_ref, hb_ref):
    TB, H = x_ref.shape            # TB = T * Bt (time-major, batch-minor flat rows)
    Hh = H // 2
    Bt = hid_ref.shape[0]
    T = TB // Bt
    f32, bf16 = jnp.float32, jnp.bfloat16

    # (1) Input projections for ALL timesteps, one MXU matmul per direction.
    #     Per-direction gate-column layout (each Hh wide): [i, f, o, g]
    #     (sigmoid gates first, tanh gate last; bias = b_ih + b_hh folded in).
    #     Stored in bf16 (halves the largest VMEM resident + per-step loads).
    x = x_ref[...]
    xp_f_ref[...] = (jnp.dot(x, w_ih_f_ref[...], preferred_element_type=f32)
                     + b_f_ref[...]).astype(bf16)
    xp_b_ref[...] = (jnp.dot(x, w_ih_b_ref[...], preferred_element_type=f32)
                     + b_b_ref[...]).astype(bf16)

    w_hh_f = w_hh_f_ref[...]       # (Hh, 4*Hh) bf16 (hoisted out of the loop)
    w_hh_b = w_hh_b_ref[...]

    # (2) Fused forward+backward recurrence: iteration t advances fwd at time t and
    #     bwd at time T-1-t. Each direction: one small matmul, one sigmoid slab,
    #     one tanh slab, lane-dense full-row store into its own scratch.
    def step(t, carry):
        h_f, c_f, h_b, c_b = carry                         # h bf16, c f32, each (Bt, Hh)
        rf = pl.multiple_of(t * Bt, Bt)                    # forward rows  (time t)
        rb = pl.multiple_of((T - 1 - t) * Bt, Bt)          # backward rows (time T-1-t)

        g_f = (xp_f_ref[pl.ds(rf, Bt), :].astype(f32)
               + jnp.dot(h_f, w_hh_f, preferred_element_type=f32))     # (Bt, 4*Hh)
        g_b = (xp_b_ref[pl.ds(rb, Bt), :].astype(f32)
               + jnp.dot(h_b, w_hh_b, preferred_element_type=f32))

        sg_f = jax.nn.sigmoid(g_f[:, :3 * Hh])             # i, f, o
        gg_f = jnp.tanh(g_f[:, 3 * Hh:])                   # g
        sg_b = jax.nn.sigmoid(g_b[:, :3 * Hh])
        gg_b = jnp.tanh(g_b[:, 3 * Hh:])

        c_f_new = sg_f[:, Hh:2 * Hh] * c_f + sg_f[:, :Hh] * gg_f
        c_b_new = sg_b[:, Hh:2 * Hh] * c_b + sg_b[:, :Hh] * gg_b
        h_f_new = (sg_f[:, 2 * Hh:] * jnp.tanh(c_f_new)).astype(bf16)
        h_b_new = (sg_b[:, 2 * Hh:] * jnp.tanh(c_b_new)).astype(bf16)

        hf_ref[pl.ds(rf, Bt), :] = h_f_new                 # lane-dense full-row stores
        hb_ref[pl.ds(rb, Bt), :] = h_b_new
        return h_f_new, c_f_new, h_b_new, c_b_new

    if T <= 16:
        unroll = True
    else:
        live = Bt * 8 * Hh * 4                             # rough f32 gate bytes / iter
        unroll = 4 if 4 * live <= (192 << 10) else 2       # stay clear of the vreg file
    zeros_h = jnp.zeros((Bt, Hh), bf16)
    zeros_c = jnp.zeros((Bt, Hh), f32)
    jax.lax.fori_loop(0, T, step, (zeros_h, zeros_c, zeros_h, zeros_c), unroll=unroll)

    # Assemble the (TB, H) output with two bulk copies (one-off, off the hot loop).
    hf = hf_ref[...]                                       # (TB, Hh) bf16
    hb = hb_ref[...]
    hf32 = hf.astype(f32)
    hb32 = hb.astype(f32)
    out_ref[:, 0:Hh] = hf32
    out_ref[:, Hh:H] = hb32

    # (3) attn_fc + tanh (dropout is identity in eval mode) + masked softmax pooling.
    a = jnp.tanh(jnp.dot(hf, w_fc_f_ref[...], preferred_element_type=f32)
                 + jnp.dot(hb, w_fc_b_ref[...], preferred_element_type=f32)
                 + b_fc_ref[...])                          # (TB, H)
    scores = jnp.sum(a * ctx_ref[...], axis=-1, keepdims=True)          # (TB, 1)
    # NOTE: -1e-32 (~ -0.0) reproduces the original module's masked_fill value verbatim,
    # so padded timesteps are NOT actually suppressed (latent bug kept for parity).
    scores = jnp.where(mask_ref[...] > 0.5, scores, jnp.float32(-1e-32))

    # Layout-free (Bt % 8 == 0) time/batch split; per-batch max, sum over T.
    s3 = scores.reshape(T, Bt, 1)
    m = jnp.max(s3, axis=0, keepdims=True)                 # per-batch shift
    e = jnp.exp(s3 - m)                                    # (T, Bt, 1)
    den = jnp.sum(e, axis=0)                               # (Bt, 1)
    inv = pl.reciprocal(den, approx=True)
    num_f = jnp.sum(hf32.reshape(T, Bt, Hh) * e, axis=0)   # (Bt, Hh)
    num_b = jnp.sum(hb32.reshape(T, Bt, Hh) * e, axis=0)
    hid_ref[:, 0:Hh] = num_f * inv
    hid_ref[:, Hh:H] = num_b * inv


# --------------------------------------------------------------------------- #
# Wrapper: weight packing + batch-tiled pallas_call                           #
# --------------------------------------------------------------------------- #
def _pack_params(params, H):
    Hh = H // 2
    bf16, f32 = jnp.bfloat16, jnp.float32

    def pack_dir(w_ih, w_hh, b):
        # PyTorch gate order is [i, f, g, o]; reorder columns to [i, f, o, g] so one
        # sigmoid slab covers [:3*Hh] and one tanh slab covers [3*Hh:].
        wi, wf, wg, wo = jnp.split(w_ih, 4, axis=0)
        hi, hf, hg, ho = jnp.split(w_hh, 4, axis=0)
        bi, bff, bg, bo = jnp.split(b, 4)
        w_ih_p = jnp.concatenate([wi.T, wf.T, wo.T, wg.T], axis=1).astype(bf16)  # (H, 4Hh)
        w_hh_p = jnp.concatenate([hi.T, hf.T, ho.T, hg.T], axis=1).astype(bf16)  # (Hh, 4Hh)
        b_p = jnp.concatenate([bi, bff, bo, bg]).reshape(1, 4 * Hh).astype(f32)
        return w_ih_p, w_hh_p, b_p

    w_ih_f, w_hh_f, b_f = pack_dir(params["w_ih_f"], params["w_hh_f"], params["b_f"])
    w_ih_b, w_hh_b, b_b = pack_dir(params["w_ih_b"], params["w_hh_b"], params["b_b"])
    w_fc_t = params["w_fc"].T.astype(bf16)                 # (H, H) = W^T
    w_fc_f = w_fc_t[:Hh, :]                                # rows fed by the fwd half
    w_fc_b = w_fc_t[Hh:, :]                                # rows fed by the bwd half
    b_fc = params["b_fc"].reshape(1, H).astype(f32)
    ctx = params["ctx"].reshape(1, H).astype(f32)
    return (w_ih_f, w_ih_b, b_f, b_b, w_hh_f, w_hh_b, w_fc_f, w_fc_b, b_fc, ctx)


def _tile_vmem_bytes(Bt, T, H):
    Hh = H // 2
    TB = T * Bt
    return (2 * TB * H * 2            # x tile (bf16, double-buffered)
            + 2 * TB * H * 4          # outputs tile (f32, double-buffered)
            + 2 * TB * 1 * 4          # mask tile (f32, double-buffered)
            + 2 * Bt * H * 4          # hidden tile (f32, double-buffered)
            + 2 * TB * 4 * Hh * 2     # xp_f + xp_b scratch (bf16)
            + 2 * TB * Hh * 2         # hf + hb scratch (bf16)
            + 32 * H * H)             # weights (bf16, double-buffered; generous)


def _default_batch_tile(B, T, H, vmem_budget):
    B8 = max(8, ((B + 7) // 8) * 8)
    cands = list(range(8, B8 + 1, 8))
    fits = [bt for bt in cands if _tile_vmem_bytes(bt, T, H) <= vmem_budget] or [8]
    if B8 >= 16:
        # Prefer >= 2 grid steps so the "parallel" axis shards across v7x's 2 TCs.
        multi = [bt for bt in fits if -(-B8 // bt) >= 2]
        if multi:
            fits = multi
    return max(fits)


def lstm_attn_forward(inputs, attention_mask=None, params=None, batch_tile=None):
    """inputs: (B, T, H) f32, attention_mask: (B, T) bool. Returns (outputs, hidden)."""
    B, T, H = inputs.shape
    Hh = H // 2
    if attention_mask is None:
        attention_mask = jnp.ones((B, T), dtype=bool)

    # VMEM budget: generation-aware when a TPU is attached, v7x-safe fallback otherwise.
    try:
        vmem_phys = int(pltpu.get_tpu_info().vmem_capacity_bytes)
    except Exception:
        vmem_phys = 64 << 20
    vmem_limit = int(min(int(vmem_phys * 0.80), 100 << 20))

    if batch_tile is None:
        Bt = _default_batch_tile(B, T, H, vmem_limit)
    else:
        Bt = max(8, ((int(batch_tile) + 7) // 8) * 8)      # sublane-aligned tiles
    B_pad = ((B + Bt - 1) // Bt) * Bt
    nbt = B_pad // Bt
    TB = T * Bt

    # Pad the batch so every per-step row slice is a whole (8,·) sublane tile.
    if B_pad != B:
        inputs = jnp.pad(inputs, ((0, B_pad - B), (0, 0), (0, 0)))
        attention_mask = jnp.pad(attention_mask, ((0, B_pad - B), (0, 0)))

    # Time-major, batch-tiled, 2D-flattened (lane/sublane dense) layouts.
    x = jnp.transpose(inputs, (1, 0, 2)).astype(jnp.bfloat16)            # (T, B_pad, H)
    x = x.reshape(T, nbt, Bt, H).transpose(1, 0, 2, 3).reshape(nbt, TB, H)
    mask = jnp.transpose(attention_mask, (1, 0)).astype(jnp.float32)     # (T, B_pad)
    mask = mask.reshape(T, nbt, Bt).transpose(1, 0, 2).reshape(nbt, TB, 1)

    (w_ih_f, w_ih_b, b_f, b_b, w_hh_f, w_hh_b,
     w_fc_f, w_fc_b, b_fc, ctx) = _pack_params(params, H)

    out3, hid3 = pl.pallas_call(
        lstm_attn_kernel,
        grid=(nbt,),
        in_specs=[
            pl.BlockSpec((None, TB, H), lambda g: (g, 0, 0)),        # x (bf16)
            pl.BlockSpec((None, TB, 1), lambda g: (g, 0, 0)),        # mask (f32)
            pl.BlockSpec((H, 4 * Hh), lambda g: (0, 0)),             # W_ih fwd
            pl.BlockSpec((H, 4 * Hh), lambda g: (0, 0)),             # W_ih bwd
            pl.BlockSpec((1, 4 * Hh), lambda g: (0, 0)),             # bias fwd
            pl.BlockSpec((1, 4 * Hh), lambda g: (0, 0)),             # bias bwd
            pl.BlockSpec((Hh, 4 * Hh), lambda g: (0, 0)),            # W_hh fwd
            pl.BlockSpec((Hh, 4 * Hh), lambda g: (0, 0)),            # W_hh bwd
            pl.BlockSpec((Hh, H), lambda g: (0, 0)),                 # attn_fc W^T (fwd rows)
            pl.BlockSpec((Hh, H), lambda g: (0, 0)),                 # attn_fc W^T (bwd rows)
            pl.BlockSpec((1, H), lambda g: (0, 0)),                  # attn_fc bias
            pl.BlockSpec((1, H), lambda g: (0, 0)),                  # context vector
        ],
        out_specs=(
            pl.BlockSpec((None, TB, H), lambda g: (g, 0, 0)),        # outputs (flat)
            pl.BlockSpec((None, Bt, H), lambda g: (g, 0, 0)),        # hidden
        ),
        out_shape=(jax.ShapeDtypeStruct((nbt, TB, H), jnp.float32),
                   jax.ShapeDtypeStruct((nbt, Bt, H), jnp.float32)),
        scratch_shapes=[pltpu.VMEM((TB, 4 * Hh), jnp.bfloat16),      # xp fwd
                        pltpu.VMEM((TB, 4 * Hh), jnp.bfloat16),      # xp bwd
                        pltpu.VMEM((TB, Hh), jnp.bfloat16),          # h history fwd
                        pltpu.VMEM((TB, Hh), jnp.bfloat16)],         # h history bwd
        compiler_params=pltpu.CompilerParams(
            dimension_semantics=("parallel",),
            vmem_limit_bytes=vmem_limit),
    )(x, mask, w_ih_f, w_ih_b, b_f, b_b, w_hh_f, w_hh_b, w_fc_f, w_fc_b, b_fc, ctx)

    outputs = out3.reshape(nbt, T, Bt, H).transpose(0, 2, 1, 3).reshape(B_pad, T, H)
    hidden = hid3.reshape(B_pad, H)
    return outputs[:B], hidden[:B]


# --------------------------------------------------------------------------- #
# Pure-JAX reference (same semantics as the PyTorch module, eval mode)        #
# --------------------------------------------------------------------------- #
def lstm_attn_reference(inputs, attention_mask, p):
    P = jax.lax.Precision.HIGHEST
    B, T, H = inputs.shape
    Hh = H // 2

    def cell(carry, x_t, w_ih, w_hh, b):
        h, c = carry
        g = (jnp.dot(x_t, w_ih.T, precision=P)
             + jnp.dot(h, w_hh.T, precision=P) + b)
        i = jax.nn.sigmoid(g[:, :Hh])
        f = jax.nn.sigmoid(g[:, Hh:2 * Hh])
        gg = jnp.tanh(g[:, 2 * Hh:3 * Hh])
        o = jax.nn.sigmoid(g[:, 3 * Hh:])
        c = f * c + i * gg
        h = o * jnp.tanh(c)
        return (h, c), h

    x_t = jnp.transpose(inputs, (1, 0, 2))
    init = (jnp.zeros((B, Hh), jnp.float32), jnp.zeros((B, Hh), jnp.float32))
    _, hf = jax.lax.scan(lambda cr, x: cell(cr, x, p["w_ih_f"], p["w_hh_f"], p["b_f"]),
                         init, x_t)
    _, hb = jax.lax.scan(lambda cr, x: cell(cr, x, p["w_ih_b"], p["w_hh_b"], p["b_b"]),
                         init, x_t[::-1])
    hb = hb[::-1]
    outputs = jnp.transpose(jnp.concatenate([hf, hb], axis=-1), (1, 0, 2))   # (B, T, H)

    A = jnp.tanh(jnp.einsum("bth,kh->btk", outputs, p["w_fc"], precision=P) + p["b_fc"])
    scores = jnp.einsum("bth,h->bt", A, p["ctx"], precision=P)
    scores = jnp.where(attention_mask, scores, -1e-32)
    w = jax.nn.softmax(scores, axis=1)
    hidden = jnp.sum(outputs * w[:, :, None], axis=1)
    return outputs, hidden


# --------------------------------------------------------------------------- #
# Main                                                                        #
# --------------------------------------------------------------------------- #
if __name__ == "__main__":
    B, T, H = 2, 8, 32
    Hh = H // 2

    key = jax.random.PRNGKey(0)
    ks = jax.random.split(key, 12)

    def u(k, shape, bound):
        return jax.random.uniform(k, shape, jnp.float32, -bound, bound)

    k_lstm = 1.0 / jnp.sqrt(Hh)
    k_fc = 1.0 / jnp.sqrt(H)
    params = {
        "w_ih_f": u(ks[0], (4 * Hh, H), k_lstm),
        "w_hh_f": u(ks[1], (4 * Hh, Hh), k_lstm),
        "b_f":    u(ks[2], (4 * Hh,), k_lstm) + u(ks[3], (4 * Hh,), k_lstm),  # b_ih + b_hh
        "w_ih_b": u(ks[4], (4 * Hh, H), k_lstm),
        "w_hh_b": u(ks[5], (4 * Hh, Hh), k_lstm),
        "b_b":    u(ks[6], (4 * Hh,), k_lstm) + u(ks[7], (4 * Hh,), k_lstm),
        "w_fc":   u(ks[8], (H, H), k_fc),
        "b_fc":   u(ks[9], (H,), k_fc),
        "ctx":    jax.random.uniform(ks[10], (H,), jnp.float32, 0.0, 1.0),    # torch.rand
    }

    inputs = jax.random.normal(ks[11], (B, T, H), jnp.float32)
    lengths = jnp.array([T, 5])
    attention_mask = (jnp.arange(T)[None, :] < lengths[:, None])              # (B, T) bool

    outputs, hidden = lstm_attn_forward(inputs, attention_mask, params)
    jax.block_until_ready((outputs, hidden))

    ref_out, ref_hid = lstm_attn_reference(inputs, attention_mask, params)
    # Tolerance accounts for bf16 MXU matmuls / bf16 h-history vs. strict-f32 reference.
    assert jnp.allclose(outputs, ref_out, atol=2e-2, rtol=2e-2), "outputs mismatch"
    assert jnp.allclose(hidden, ref_hid, atol=2e-2, rtol=2e-2), "hidden mismatch"

    print("KERNEL_OK")
</pallas_src>

<mosaic_0001>
module attributes {stable_mosaic.version = 11 : i64} {
  func.func @lstm_attn_kernel(%arg0: i32, %arg1: memref<1x64x32xbf16, #tpu.memory_space<vmem>>, %arg2: memref<1x64x1xf32, #tpu.memory_space<vmem>>, %arg3: memref<32x64xbf16, #tpu.memory_space<vmem>>, %arg4: memref<32x64xbf16, #tpu.memory_space<vmem>>, %arg5: memref<1x64xf32, #tpu.memory_space<vmem>>, %arg6: memref<1x64xf32, #tpu.memory_space<vmem>>, %arg7: memref<16x64xbf16, #tpu.memory_space<vmem>>, %arg8: memref<16x64xbf16, #tpu.memory_space<vmem>>, %arg9: memref<16x32xbf16, #tpu.memory_space<vmem>>, %arg10: memref<16x32xbf16, #tpu.memory_space<vmem>>, %arg11: memref<1x32xf32, #tpu.memory_space<vmem>>, %arg12: memref<1x32xf32, #tpu.memory_space<vmem>>, %arg13: memref<1x64x32xf32, #tpu.memory_space<vmem>>, %arg14: memref<1x8x32xf32, #tpu.memory_space<vmem>>, %arg15: memref<64x64xbf16, #tpu.memory_space<vmem>>, %arg16: memref<64x64xbf16, #tpu.memory_space<vmem>>, %arg17: memref<64x16xbf16, #tpu.memory_space<vmem>>, %arg18: memref<64x16xbf16, #tpu.memory_space<vmem>>) attributes {dimension_semantics = [#tpu.dimension_semantics<parallel>], iteration_bounds = array<i64: 1>, scalar_prefetch = 0 : i64, scratch_operands = 4 : i64, tpu.core_type = #tpu.core_type<tc>, window_params = [{transform_indices = @transform_0, window_bounds = array<i64: 1, 64, 32>}, {transform_indices = @transform_1, window_bounds = array<i64: 1, 64, 1>}, {pipeline_mode = #tpu.pipeline_mode<synchronous>, transform_indices = @transform_2, window_bounds = array<i64: 32, 64>}, {pipeline_mode = #tpu.pipeline_mode<synchronous>, transform_indices = @transform_3, window_bounds = array<i64: 32, 64>}, {pipeline_mode = #tpu.pipeline_mode<synchronous>, transform_indices = @transform_4, window_bounds = array<i64: 1, 64>}, {pipeline_mode = #tpu.pipeline_mode<synchronous>, transform_indices = @transform_5, window_bounds = array<i64: 1, 64>}, {pipeline_mode = #tpu.pipeline_mode<synchronous>, transform_indices = @transform_6, window_bounds = array<i64: 16, 64>}, {pipeline_mode = #tpu.pipeline_mode<synchronous>, transform_indices = @transform_7, window_bounds = array<i64: 16, 64>}, {pipeline_mode = #tpu.pipeline_mode<synchronous>, transform_indices = @transform_8, window_bounds = array<i64: 16, 32>}, {pipeline_mode = #tpu.pipeline_mode<synchronous>, transform_indices = @transform_9, window_bounds = array<i64: 16, 32>}, {pipeline_mode = #tpu.pipeline_mode<synchronous>, transform_indices = @transform_10, window_bounds = array<i64: 1, 32>}, {pipeline_mode = #tpu.pipeline_mode<synchronous>, transform_indices = @transform_11, window_bounds = array<i64: 1, 32>}, {transform_indices = @transform_12, window_bounds = array<i64: 1, 64, 32>}, {transform_indices = @transform_13, window_bounds = array<i64: 1, 8, 32>}]} {
    %c0 = arith.constant 0 : index
    %c0_0 = arith.constant 0 : index
    %c0_1 = arith.constant 0 : index
    %0 = vector.load %arg1[%c0, %c0_0, %c0_1] : memref<1x64x32xbf16, #tpu.memory_space<vmem>>, vector<1x64x32xbf16>
    %1 = vector.shape_cast %0 : vector<1x64x32xbf16> to vector<64x32xbf16>
    %c0_2 = arith.constant 0 : index
    %c0_3 = arith.constant 0 : index
    %2 = vector.load %arg3[%c0_2, %c0_3] : memref<32x64xbf16, #tpu.memory_space<vmem>>, vector<32x64xbf16>
    %cst = arith.constant dense<0.000000e+00> : vector<64x64xf32>
    %3 = tpu.matmul %1, %2, %cst {dimension_numbers = #tpu.dot_dimension_numbers<[1], [0], [0], [1], [0, 0, 1, 1], [], []>} : vector<64x32xbf16>, vector<32x64xbf16>, vector<64x64xf32> -> vector<64x64xf32>
    %c0_4 = arith.constant 0 : index
    %c0_5 = arith.constant 0 : index
    %4 = vector.load %arg5[%c0_4, %c0_5] : memref<1x64xf32, #tpu.memory_space<vmem>>, vector<1x64xf32>
    %5 = vector.broadcast %4 : vector<1x64xf32> to vector<64x64xf32>
    %6 = arith.addf %3, %5 : vector<64x64xf32>
    %7 = arith.truncf %6 : vector<64x64xf32> to vector<64x64xbf16>
    %c0_6 = arith.constant 0 : index
    %c0_7 = arith.constant 0 : index
    %8 = vector.load %arg15[%c0_6, %c0_7] : memref<64x64xbf16, #tpu.memory_space<vmem>>, vector<64x64xbf16>
    tpu.vector_store %arg15[%c0_6, %c0_7], %7 {strides = array<i32>} : memref<64x64xbf16, #tpu.memory_space<vmem>>, vector<64x64xbf16>,
    %c0_8 = arith.constant 0 : index
    %c0_9 = arith.constant 0 : index
    %9 = vector.load %arg4[%c0_8, %c0_9] : memref<32x64xbf16, #tpu.memory_space<vmem>>, vector<32x64xbf16>
    %cst_10 = arith.constant dense<0.000000e+00> : vector<64x64xf32>
    %10 = tpu.matmul %1, %9, %cst_10 {dimension_numbers = #tpu.dot_dimension_numbers<[1], [0], [0], [1], [0, 0, 1, 1], [], []>} : vector<64x32xbf16>, vector<32x64xbf16>, vector<64x64xf32> -> vector<64x64xf32>
    %c0_11 = arith.constant 0 : index
    %c0_12 = arith.constant 0 : index
    %11 = vector.load %arg6[%c0_11, %c0_12] : memref<1x64xf32, #tpu.memory_space<vmem>>, vector<1x64xf32>
    %12 = vector.broadcast %11 : vector<1x64xf32> to vector<64x64xf32>
    %13 = arith.addf %10, %12 : vector<64x64xf32>
    %14 = arith.truncf %13 : vector<64x64xf32> to vector<64x64xbf16>
    %c0_13 = arith.constant 0 : index
    %c0_14 = arith.constant 0 : index
    %15 = vector.load %arg16[%c0_13, %c0_14] : memref<64x64xbf16, #tpu.memory_space<vmem>>, vector<64x64xbf16>
    tpu.vector_store %arg16[%c0_13, %c0_14], %14 {strides = array<i32>} : memref<64x64xbf16, #tpu.memory_space<vmem>>, vector<64x64xbf16>,
    %c0_15 = arith.constant 0 : index
    %c0_16 = arith.constant 0 : index
    %16 = vector.load %arg7[%c0_15, %c0_16] : memref<16x64xbf16, #tpu.memory_space<vmem>>, vector<16x64xbf16>
    %c0_17 = arith.constant 0 : index
    %c0_18 = arith.constant 0 : index
    %17 = vector.load %arg8[%c0_17, %c0_18] : memref<16x64xbf16, #tpu.memory_space<vmem>>, vector<16x64xbf16>
    %cst_19 = arith.constant 0.000000e+00 : bf16
    %18 = vector.broadcast %cst_19 : bf16 to vector<8x16xbf16>
    %cst_20 = arith.constant 0.000000e+00 : f32
    %19 = vector.broadcast %cst_20 : f32 to vector<8x16xf32>
    %c0_i32 = arith.constant 0 : i32
    %c8_i32 = arith.constant 8 : i32
    %20 = arith.muli %c0_i32, %c8_i32 : i32
    %21 = tpu.assume_multiple %20, 8 : i32
    %c7_i32 = arith.constant 7 : i32
    %22 = arith.subi %c7_i32, %c0_i32 : i32
    %c8_i32_21 = arith.constant 8 : i32
    %23 = arith.muli %22, %c8_i32_21 : i32
    %24 = tpu.assume_multiple %23, 8 : i32
    %25 = arith.index_cast %21 : i32 to index
    %c0_22 = arith.constant 0 : index
    %26 = vector.load %arg15[%25, %c0_22] : memref<64x64xbf16, #tpu.memory_space<vmem>>, vector<8x64xbf16>
    %27 = arith.extf %26 : vector<8x64xbf16> to vector<8x64xf32>
    %cst_23 = arith.constant dense<0.000000e+00> : vector<8x64xf32>
    %28 = tpu.matmul %18, %16, %cst_23 {dimension_numbers = #tpu.dot_dimension_numbers<[1], [0], [0], [1], [0, 0, 1, 1], [], []>} : vector<8x16xbf16>, vector<16x64xbf16>, vector<8x64xf32> -> vector<8x64xf32>
    %29 = arith.addf %27, %28 : vector<8x64xf32>
    %30 = arith.index_cast %24 : i32 to index
    %c0_24 = arith.constant 0 : index
    %31 = vector.load %arg16[%30, %c0_24] : memref<64x64xbf16, #tpu.memory_space<vmem>>, vector<8x64xbf16>
    %32 = arith.extf %31 : vector<8x64xbf16> to vector<8x64xf32>
    %cst_25 = arith.constant dense<0.000000e+00> : vector<8x64xf32>
    %33 = tpu.matmul %18, %17, %cst_25 {dimension_numbers = #tpu.dot_dimension_numbers<[1], [0], [0], [1], [0, 0, 1, 1], [], []>} : vector<8x16xbf16>, vector<16x64xbf16>, vector<8x64xf32> -> vector<8x64xf32>
    %34 = arith.addf %32, %33 : vector<8x64xf32>
    %35 = vector.extract_strided_slice %29 {offsets = [0, 0], sizes = [8, 48], strides = [1, 1]} : vector<8x64xf32> to vector<8x48xf32>
    %36 = arith.negf %35 : vector<8x48xf32>
    %37 = math.exp %36 : vector<8x48xf32>
    %cst_26 = arith.constant 1.000000e+00 : f32
    %38 = vector.broadcast %cst_26 : f32 to vector<8x48xf32>
    %39 = arith.addf %38, %37 : vector<8x48xf32>
    %40 = arith.divf %38, %39 : vector<8x48xf32>
    %41 = vector.extract_strided_slice %29 {offsets = [0, 48], sizes = [8, 16], strides = [1, 1]} : vector<8x64xf32> to vector<8x16xf32>
    %42 = math.tanh %41 : vector<8x16xf32>
    %43 = vector.extract_strided_slice %34 {offsets = [0, 0], sizes = [8, 48], strides = [1, 1]} : vector<8x64xf32> to vector<8x48xf32>
    %44 = arith.negf %43 : vector<8x48xf32>
    %45 = math.exp %44 : vector<8x48xf32>
    %cst_27 = arith.constant 1.000000e+00 : f32
    %46 = vector.broadcast %cst_27 : f32 to vector<8x48xf32>
    %47 = arith.addf %46, %45 : vector<8x48xf32>
    %48 = arith.divf %46, %47 : vector<8x48xf32>
    %49 = vector.extract_strided_slice %34 {offsets = [0, 48], sizes = [8, 16], strides = [1, 1]} : vector<8x64xf32> to vector<8x16xf32>
    %50 = math.tanh %49 : vector<8x16xf32>
    %51 = vector.extract_strided_slice %40 {offsets = [0, 16], sizes = [8, 16], strides = [1, 1]} : vector<8x48xf32> to vector<8x16xf32>
    %52 = arith.mulf %51, %19 : vector<8x16xf32>
    %53 = vector.extract_strided_slice %40 {offsets = [0, 0], sizes = [8, 16], strides = [1, 1]} : vector<8x48xf32> to vector<8x16xf32>
    %54 = arith.mulf %53, %42 : vector<8x16xf32>
    %55 = arith.addf %52, %54 : vector<8x16xf32>
    %56 = vector.extract_strided_slice %48 {offsets = [0, 16], sizes = [8, 16], strides = [1, 1]} : vector<8x48xf32> to vector<8x16xf32>
    %57 = arith.mulf %56, %19 : vector<8x16xf32>
    %58 = vector.extract_strided_slice %48 {offsets = [0, 0], sizes = [8, 16], strides = [1, 1]} : vector<8x48xf32> to vector<8x16xf32>
    %59 = arith.mulf %58, %50 : vector<8x16xf32>
    %60 = arith.addf %57, %59 : vector<8x16xf32>
    %61 = vector.extract_strided_slice %40 {offsets = [0, 32], sizes = [8, 16], strides = [1, 1]} : vector<8x48xf32> to vector<8x16xf32>
    %62 = math.tanh %55 : vector<8x16xf32>
    %63 = arith.mulf %61, %62 : vector<8x16xf32>
    %64 = arith.truncf %63 : vector<8x16xf32> to vector<8x16xbf16>
    %65 = vector.extract_strided_slice %48 {offsets = [0, 32], sizes = [8, 16], strides = [1, 1]} : vector<8x48xf32> to vector<8x16xf32>
    %66 = math.tanh %60 : vector<8x16xf32>
    %67 = arith.mulf %65, %66 : vector<8x16xf32>
    %68 = arith.truncf %67 : vector<8x16xf32> to vector<8x16xbf16>
    %69 = arith.index_cast %21 : i32 to index
    %c0_28 = arith.constant 0 : index
    %70 = vector.load %arg17[%69, %c0_28] : memref<64x16xbf16, #tpu.memory_space<vmem>>, vector<8x16xbf16>
    tpu.vector_store %arg17[%69, %c0_28], %64 {strides = array<i32>} : memref<64x16xbf16, #tpu.memory_space<vmem>>, vector<8x16xbf16>,
    %71 = arith.index_cast %24 : i32 to index
    %c0_29 = arith.constant 0 : index
    %72 = vector.load %arg18[%71, %c0_29] : memref<64x16xbf16, #tpu.memory_space<vmem>>, vector<8x16xbf16>
    tpu.vector_store %arg18[%71, %c0_29], %68 {strides = array<i32>} : memref<64x16xbf16, #tpu.memory_space<vmem>>, vector<8x16xbf16>,
    %c1_i32 = arith.constant 1 : i32
    %c8_i32_30 = arith.constant 8 : i32
    %73 = arith.muli %c1_i32, %c8_i32_30 : i32
    %74 = tpu.assume_multiple %73, 8 : i32
    %c7_i32_31 = arith.constant 7 : i32
    %75 = arith.subi %c7_i32_31, %c1_i32 : i32
    %c8_i32_32 = arith.constant 8 : i32
    %76 = arith.muli %75, %c8_i32_32 : i32
    %77 = tpu.assume_multiple %76, 8 : i32
    %78 = arith.index_cast %74 : i32 to index
    %c0_33 = arith.constant 0 : index
    %79 = vector.load %arg15[%78, %c0_33] : memref<64x64xbf16, #tpu.memory_space<vmem>>, vector<8x64xbf16>
    %80 = arith.extf %79 : vector<8x64xbf16> to vector<8x64xf32>
    %cst_34 = arith.constant dense<0.000000e+00> : vector<8x64xf32>
    %81 = tpu.matmul %64, %16, %cst_34 {dimension_numbers = #tpu.dot_dimension_numbers<[1], [0], [0], [1], [0, 0, 1, 1], [], []>} : vector<8x16xbf16>, vector<16x64xbf16>, vector<8x64xf32> -> vector<8x64xf32>
    %82 = arith.addf %80, %81 : vector<8x64xf32>
    %83 = arith.index_cast %77 : i32 to index
    %c0_35 = arith.constant 0 : index
    %84 = vector.load %arg16[%83, %c0_35] : memref<64x64xbf16, #tpu.memory_space<vmem>>, vector<8x64xbf16>
    %85 = arith.extf %84 : vector<8x64xbf16> to vector<8x64xf32>
    %cst_36 = arith.constant dense<0.000000e+00> : vector<8x64xf32>
    %86 = tpu.matmul %68, %17, %cst_36 {dimension_numbers = #tpu.dot_dimension_numbers<[1], [0], [0], [1], [0, 0, 1, 1], [], []>} : vector<8x16xbf16>, vector<16x64xbf16>, vector<8x64xf32> -> vector<8x64xf32>
    %87 = arith.addf %85, %86 : vector<8x64xf32>
    %88 = vector.extract_strided_slice %82 {offsets = [0, 0], sizes = [8, 48], strides = [1, 1]} : vector<8x64xf32> to vector<8x48xf32>
    %89 = arith.negf %88 : vector<8x48xf32>
    %90 = math.exp %89 : vector<8x48xf32>
    %cst_37 = arith.constant 1.000000e+00 : f32
    %91 = vector.broadcast %cst_37 : f32 to vector<8x48xf32>
    %92 = arith.addf %91, %90 : vector<8x48xf32>
    %93 = arith.divf %91, %92 : vector<8x48xf32>
    %94 = vector.extract_strided_slice %82 {offsets = [0, 48], sizes = [8, 16], strides = [1, 1]} : vector<8x64xf32> to vector<8x16xf32>
    %95 = math.tanh %94 : vector<8x16xf32>
    %96 = vector.extract_strided_slice %87 {offsets = [0, 0], sizes = [8, 48], strides = [1, 1]} : vector<8x64xf32> to vector<8x48xf32>
    %97 = arith.negf %96 : vector<8x48xf32>
    %98 = math.exp %97 : vector<8x48xf32>
    %cst_38 = arith.constant 1.000000e+00 : f32
    %99 = vector.broadcast %cst_38 : f32 to vector<8x48xf32>
    %100 = arith.addf %99, %98 : vector<8x48xf32>
    %101 = arith.divf %99, %100 : vector<8x48xf32>
    %102 = vector.extract_strided_slice %87 {offsets = [0, 48], sizes = [8, 16], strides = [1, 1]} : vector<8x64xf32> to vector<8x16xf32>
    %103 = math.tanh %102 : vector<8x16xf32>
    %104 = vector.extract_strided_slice %93 {offsets = [0, 16], sizes = [8, 16], strides = [1, 1]} : vector<8x48xf32> to vector<8x16xf32>
    %105 = arith.mulf %104, %55 : vector<8x16xf32>
    %106 = vector.extract_strided_slice %93 {offsets = [0, 0], sizes = [8, 16], strides = [1, 1]} : vector<8x48xf32> to vector<8x16xf32>
    %107 = arith.mulf %106, %95 : vector<8x16xf32>
    %108 = arith.addf %105, %107 : vector<8x16xf32>
    %109 = vector.extract_strided_slice %101 {offsets = [0, 16], sizes = [8, 16], strides = [1, 1]} : vector<8x48xf32> to vector<8x16xf32>
    %110 = arith.mulf %109, %60 : vector<8x16xf32>
    %111 = vector.extract_strided_slice %101 {offsets = [0, 0], sizes = [8, 16], strides = [1, 1]} : vector<8x48xf32> to vector<8x16xf32>
    %112 = arith.mulf %111, %103 : vector<8x16xf32>
    %113 = arith.addf %110, %112 : vector<8x16xf32>
    %114 = vector.extract_strided_slice %93 {offsets = [0, 32], sizes = [8, 16], strides = [1, 1]} : vector<8x48xf32> to vector<8x16xf32>
    %115 = math.tanh %108 : vector<8x16xf32>
    %116 = arith.mulf %114, %115 : vector<8x16xf32>
    %117 = arith.truncf %116 : vector<8x16xf32> to vector<8x16xbf16>
    %118 = vector.extract_strided_slice %101 {offsets = [0, 32], sizes = [8, 16], strides = [1, 1]} : vector<8x48xf32> to vector<8x16xf32>
    %119 = math.tanh %113 : vector<8x16xf32>
    %120 = arith.mulf %118, %119 : vector<8x16xf32>
    %121 = arith.truncf %120 : vector<8x16xf32> to vector<8x16xbf16>
    %122 = arith.index_cast %74 : i32 to index
    %c0_39 = arith.constant 0 : index
    %123 = vector.load %arg17[%122, %c0_39] : memref<64x16xbf16, #tpu.memory_space<vmem>>, vector<8x16xbf16>
    tpu.vector_store %arg17[%122, %c0_39], %117 {strides = array<i32>} : memref<64x16xbf16, #tpu.memory_space<vmem>>, vector<8x16xbf16>,
    %124 = arith.index_cast %77 : i32 to index
    %c0_40 = arith.constant 0 : index
    %125 = vector.load %arg18[%124, %c0_40] : memref<64x16xbf16, #tpu.memory_space<vmem>>, vector<8x16xbf16>
    tpu.vector_store %arg18[%124, %c0_40], %121 {strides = array<i32>} : memref<64x16xbf16, #tpu.memory_space<vmem>>, vector<8x16xbf16>,
    %c2_i32 = arith.constant 2 : i32
    %c8_i32_41 = arith.constant 8 : i32
    %126 = arith.muli %c2_i32, %c8_i32_41 : i32
    %127 = tpu.assume_multiple %126, 8 : i32
    %c7_i32_42 = arith.constant 7 : i32
    %128 = arith.subi %c7_i32_42, %c2_i32 : i32
    %c8_i32_43 = arith.constant 8 : i32
    %129 = arith.muli %128, %c8_i32_43 : i32
    %130 = tpu.assume_multiple %129, 8 : i32
    %131 = arith.index_cast %127 : i32 to index
    %c0_44 = arith.constant 0 : index
    %132 = vector.load %arg15[%131, %c0_44] : memref<64x64xbf16, #tpu.memory_space<vmem>>, vector<8x64xbf16>
    %133 = arith.extf %132 : vector<8x64xbf16> to vector<8x64xf32>
    %cst_45 = arith.constant dense<0.000000e+00> : vector<8x64xf32>
    %134 = tpu.matmul %117, %16, %cst_45 {dimension_numbers = #tpu.dot_dimension_numbers<[1], [0], [0], [1], [0, 0, 1, 1], [], []>} : vector<8x16xbf16>, vector<16x64xbf16>, vector<8x64xf32> -> vector<8x64xf32>
    %135 = arith.addf %133, %134 : vector<8x64xf32>
    %136 = arith.index_cast %130 : i32 to index
    %c0_46 = arith.constant 0 : index
    %137 = vector.load %arg16[%136, %c0_46] : memref<64x64xbf16, #tpu.memory_space<vmem>>, vector<8x64xbf16>
    %138 = arith.extf %137 : vector<8x64xbf16> to vector<8x64xf32>
    %cst_47 = arith.constant dense<0.000000e+00> : vector<8x64xf32>
    %139 = tpu.matmul %121, %17, %cst_47 {dimension_numbers = #tpu.dot_dimension_numbers<[1], [0], [0], [1], [0, 0, 1, 1], [], []>} : vector<8x16xbf16>, vector<16x64xbf16>, vector<8x64xf32> -> vector<8x64xf32>
    %140 = arith.addf %138, %139 : vector<8x64xf32>
    %141 = vector.extract_strided_slice %135 {offsets = [0, 0], sizes = [8, 48], strides = [1, 1]} : vector<8x64xf32> to vector<8x48xf32>
    %142 = arith.negf %141 : vector<8x48xf32>
    %143 = math.exp %142 : vector<8x48xf32>
    %cst_48 = arith.constant 1.000000e+00 : f32
    %144 = vector.broadcast %cst_48 : f32 to vector<8x48xf32>
    %145 = arith.addf %144, %143 : vector<8x48xf32>
    %146 = arith.divf %144, %145 : vector<8x48xf32>
    %147 = vector.extract_strided_slice %135 {offsets = [0, 48], sizes = [8, 16], strides = [1, 1]} : vector<8x64xf32> to vector<8x16xf32>
    %148 = math.tanh %147 : vector<8x16xf32>
    %149 = vector.extract_strided_slice %140 {offsets = [0, 0], sizes = [8, 48], strides = [1, 1]} : vector<8x64xf32> to vector<8x48xf32>
    %150 = arith.negf %149 : vector<8x48xf32>
    %151 = math.exp %150 : vector<8x48xf32>
    %cst_49 = arith.constant 1.000000e+00 : f32
    %152 = vector.broadcast %cst_49 : f32 to vector<8x48xf32>
    %153 = arith.addf %152, %151 : vector<8x48xf32>
    %154 = arith.divf %152, %153 : vector<8x48xf32>
    %155 = vector.extract_strided_slice %140 {offsets = [0, 48], sizes = [8, 16], strides = [1, 1]} : vector<8x64xf32> to vector<8x16xf32>
    %156 = math.tanh %155 : vector<8x16xf32>
    %157 = vector.extract_strided_slice %146 {offsets = [0, 16], sizes = [8, 16], strides = [1, 1]} : vector<8x48xf32> to vector<8x16xf32>
    %158 = arith.mulf %157, %108 : vector<8x16xf32>
    %159 = vector.extract_strided_slice %146 {offsets = [0, 0], sizes = [8, 16], strides = [1, 1]} : vector<8x48xf32> to vector<8x16xf32>
    %160 = arith.mulf %159, %148 : vector<8x16xf32>
    %161 = arith.addf %158, %160 : vector<8x16xf32>
    %162 = vector.extract_strided_slice %154 {offsets = [0, 16], sizes = [8, 16], strides = [1, 1]} : vector<8x48xf32> to vector<8x16xf32>
    %163 = arith.mulf %162, %113 : vector<8x16xf32>
    %164 = vector.extract_strided_slice %154 {offsets = [0, 0], sizes = [8, 16], strides = [1, 1]} : vector<8x48xf32> to vector<8x16xf32>
    %165 = arith.mulf %164, %156 : vector<8x16xf32>
    %166 = arith.addf %163, %165 : vector<8x16xf32>
    %167 = vector.extract_strided_slice %146 {offsets = [0, 32], sizes = [8, 16], strides = [1, 1]} : vector<8x48xf32> to vector<8x16xf32>
    %168 = math.tanh %161 : vector<8x16xf32>
    %169 = arith.mulf %167, %168 : vector<8x16xf32>
    %170 = arith.truncf %169 : vector<8x16xf32> to vector<8x16xbf16>
    %171 = vector.extract_strided_slice %154 {offsets = [0, 32], sizes = [8, 16], strides = [1, 1]} : vector<8x48xf32> to vector<8x16xf32>
    %172 = math.tanh %166 : vector<8x16xf32>
    %173 = arith.mulf %171, %172 : vector<8x16xf32>
    %174 = arith.truncf %173 : vector<8x16xf32> to vector<8x16xbf16>
    %175 = arith.index_cast %127 : i32 to index
    %c0_50 = arith.constant 0 : index
    %176 = vector.load %arg17[%175, %c0_50] : memref<64x16xbf16, #tpu.memory_space<vmem>>, vector<8x16xbf16>
    tpu.vector_store %arg17[%175, %c0_50], %170 {strides = array<i32>} : memref<64x16xbf16, #tpu.memory_space<vmem>>, vector<8x16xbf16>,
    %177 = arith.index_cast %130 : i32 to index
    %c0_51 = arith.constant 0 : index
    %178 = vector.load %arg18[%177, %c0_51] : memref<64x16xbf16, #tpu.memory_space<vmem>>, vector<8x16xbf16>
    tpu.vector_store %arg18[%177, %c0_51], %174 {strides = array<i32>} : memref<64x16xbf16, #tpu.memory_space<vmem>>, vector<8x16xbf16>,
    %c3_i32 = arith.constant 3 : i32
    %c8_i32_52 = arith.constant 8 : i32
    %179 = arith.muli %c3_i32, %c8_i32_52 : i32
    %180 = tpu.assume_multiple %179, 8 : i32
    %c7_i32_53 = arith.constant 7 : i32
    %181 = arith.subi %c7_i32_53, %c3_i32 : i32
    %c8_i32_54 = arith.constant 8 : i32
    %182 = arith.muli %181, %c8_i32_54 : i32
    %183 = tpu.assume_multiple %182, 8 : i32
    %184 = arith.index_cast %180 : i32 to index
    %c0_55 = arith.constant 0 : index
    %185 = vector.load %arg15[%184, %c0_55] : memref<64x64xbf16, #tpu.memory_space<vmem>>, vector<8x64xbf16>
    %186 = arith.extf %185 : vector<8x64xbf16> to vector<8x64xf32>
    %cst_56 = arith.constant dense<0.000000e+00> : vector<8x64xf32>
    %187 = tpu.matmul %170, %16, %cst_56 {dimension_numbers = #tpu.dot_dimension_numbers<[1], [0], [0], [1], [0, 0, 1, 1], [], []>} : vector<8x16xbf16>, vector<16x64xbf16>, vector<8x64xf32> -> vector<8x64xf32>
    %188 = arith.addf %186, %187 : vector<8x64xf32>
    %189 = arith.index_cast %183 : i32 to index
    %c0_57 = arith.constant 0 : index
    %190 = vector.load %arg16[%189, %c0_57] : memref<64x64xbf16, #tpu.memory_space<vmem>>, vector<8x64xbf16>
    %191 = arith.extf %190 : vector<8x64xbf16> to vector<8x64xf32>
    %cst_58 = arith.constant dense<0.000000e+00> : vector<8x64xf32>
    %192 = tpu.matmul %174, %17, %cst_58 {dimension_numbers = #tpu.dot_dimension_numbers<[1], [0], [0], [1], [0, 0, 1, 1], [], []>} : vector<8x16xbf16>, vector<16x64xbf16>, vector<8x64xf32> -> vector<8x64xf32>
    %193 = arith.addf %191, %192 : vector<8x64xf32>
    %194 = vector.extract_strided_slice %188 {offsets = [0, 0], sizes = [8, 48], strides = [1, 1]} : vector<8x64xf32> to vector<8x48xf32>
    %195 = arith.negf %194 : vector<8x48xf32>
    %196 = math.exp %195 : vector<8x48xf32>
    %cst_59 = arith.constant 1.000000e+00 : f32
    %197 = vector.broadcast %cst_59 : f32 to vector<8x48xf32>
    %198 = arith.addf %197, %196 : vector<8x48xf32>
    %199 = arith.divf %197, %198 : vector<8x48xf32>
    %200 = vector.extract_strided_slice %188 {offsets = [0, 48], sizes = [8, 16], strides = [1, 1]} : vector<8x64xf32> to vector<8x16xf32>
    %201 = math.tanh %200 : vector<8x16xf32>
    %202 = vector.extract_strided_slice %193 {offsets = [0, 0], sizes = [8, 48], strides = [1, 1]} : vector<8x64xf32> to vector<8x48xf32>
    %203 = arith.negf %202 : vector<8x48xf32>
    %204 = math.exp %203 : vector<8x48xf32>
    %cst_60 = arith.constant 1.000000e+00 : f32
    %205 = vector.broadcast %cst_60 : f32 to vector<8x48xf32>
    %206 = arith.addf %205, %204 : vector<8x48xf32>
    %207 = arith.divf %205, %206 : vector<8x48xf32>
    %208 = vector.extract_strided_slice %193 {offsets = [0, 48], sizes = [8, 16], strides = [1, 1]} : vector<8x64xf32> to vector<8x16xf32>
    %209 = math.tanh %208 : vector<8x16xf32>
    %210 = vector.extract_strided_slice %199 {offsets = [0, 16], sizes = [8, 16], strides = [1, 1]} : vector<8x48xf32> to vector<8x16xf32>
    %211 = arith.mulf %210, %161 : vector<8x16xf32>
    %212 = vector.extract_strided_slice %199 {offsets = [0, 0], sizes = [8, 16], strides = [1, 1]} : vector<8x48xf32> to vector<8x16xf32>
    %213 = arith.mulf %212, %201 : vector<8x16xf32>
    %214 = arith.addf %211, %213 : vector<8x16xf32>
    %215 = vector.extract_strided_slice %207 {offsets = [0, 16], sizes = [8, 16], strides = [1, 1]} : vector<8x48xf32> to vector<8x16xf32>
    %216 = arith.mulf %215, %166 : vector<8x16xf32>
    %217 = vector.extract_strided_slice %207 {offsets = [0, 0], sizes = [8, 16], strides = [1, 1]} : vector<8x48xf32> to vector<8x16xf32>
    %218 = arith.mulf %217, %209 : vector<8x16xf32>
    %219 = arith.addf %216, %218 : vector<8x16xf32>
    %220 = vector.extract_strided_slice %199 {offsets = [0, 32], sizes = [8, 16], strides = [1, 1]} : vector<8x48xf32> to vector<8x16xf32>
    %221 = math.tanh %214 : vector<8x16xf32>
    %222 = arith.mulf %220, %221 : vector<8x16xf32>
    %223 = arith.truncf %222 : vector<8x16xf32> to vector<8x16xbf16>
    %224 = vector.extract_strided_slice %207 {offsets = [0, 32], sizes = [8, 16], strides = [1, 1]} : vector<8x48xf32> to vector<8x16xf32>
    %225 = math.tanh %219 : vector<8x16xf32>
    %226 = arith.mulf %224, %225 : vector<8x16xf32>
    %227 = arith.truncf %226 : vector<8x16xf32> to vector<8x16xbf16>
    %228 = arith.index_cast %180 : i32 to index
    %c0_61 = arith.constant 0 : index
    %229 = vector.load %arg17[%228, %c0_61] : memref<64x16xbf16, #tpu.memory_space<vmem>>, vector<8x16xbf16>
    tpu.vector_store %arg17[%228, %c0_61], %223 {strides = array<i32>} : memref<64x16xbf16, #tpu.memory_space<vmem>>, vector<8x16xbf16>,
    %230 = arith.index_cast %183 : i32 to index
    %c0_62 = arith.constant 0 : index
    %231 = vector.load %arg18[%230, %c0_62] : memref<64x16xbf16, #tpu.memory_space<vmem>>, vector<8x16xbf16>
    tpu.vector_store %arg18[%230, %c0_62], %227 {strides = array<i32>} : memref<64x16xbf16, #tpu.memory_space<vmem>>, vector<8x16xbf16>,
    %c4_i32 = arith.constant 4 : i32
    %c8_i32_63 = arith.constant 8 : i32
    %232 = arith.muli %c4_i32, %c8_i32_63 : i32
    %233 = tpu.assume_multiple %232, 8 : i32
    %c7_i32_64 = arith.constant 7 : i32
    %234 = arith.subi %c7_i32_64, %c4_i32 : i32
    %c8_i32_65 = arith.constant 8 : i32
    %235 = arith.muli %234, %c8_i32_65 : i32
    %236 = tpu.assume_multiple %235, 8 : i32
    %237 = arith.index_cast %233 : i32 to index
    %c0_66 = arith.constant 0 : index
    %238 = vector.load %arg15[%237, %c0_66] : memref<64x64xbf16, #tpu.memory_space<vmem>>, vector<8x64xbf16>
    %239 = arith.extf %238 : vector<8x64xbf16> to vector<8x64xf32>
    %cst_67 = arith.constant dense<0.000000e+00> : vector<8x64xf32>
    %240 = tpu.matmul %223, %16, %cst_67 {dimension_numbers = #tpu.dot_dimension_numbers<[1], [0], [0], [1], [0, 0, 1, 1], [], []>} : vector<8x16xbf16>, vector<16x64xbf16>, vector<8x64xf32> -> vector<8x64xf32>
    %241 = arith.addf %239, %240 : vector<8x64xf32>
    %242 = arith.index_cast %236 : i32 to index
    %c0_68 = arith.constant 0 : index
    %243 = vector.load %arg16[%242, %c0_68] : memref<64x64xbf16, #tpu.memory_space<vmem>>, vector<8x64xbf16>
    %244 = arith.extf %243 : vector<8x64xbf16> to vector<8x64xf32>
    %cst_69 = arith.constant dense<0.000000e+00> : vector<8x64xf32>
    %245 = tpu.matmul %227, %17, %cst_69 {dimension_numbers = #tpu.dot_dimension_numbers<[1], [0], [0], [1], [0, 0, 1, 1], [], []>} : vector<8x16xbf16>, vector<16x64xbf16>, vector<8x64xf32> -> vector<8x64xf32>
    %246 = arith.addf %244, %245 : vector<8x64xf32>
    %247 = vector.extract_strided_slice %241 {offsets = [0, 0], sizes = [8, 48], strides = [1, 1]} : vector<8x64xf32> to vector<8x48xf32>
    %248 = arith.negf %247 : vector<8x48xf32>
    %249 = math.exp %248 : vector<8x48xf32>
    %cst_70 = arith.constant 1.000000e+00 : f32
    %250 = vector.broadcast %cst_70 : f32 to vector<8x48xf32>
    %251 = arith.addf %250, %249 : vector<8x48xf32>
    %252 = arith.divf %250, %251 : vector<8x48xf32>
    %253 = vector.extract_strided_slice %241 {offsets = [0, 48], sizes = [8, 16], strides = [1, 1]} : vector<8x64xf32> to vector<8x16xf32>
    %254 = math.tanh %253 : vector<8x16xf32>
    %255 = vector.extract_strided_slice %246 {offsets = [0, 0], sizes = [8, 48], strides = [1, 1]} : vector<8x64xf32> to vector<8x48xf32>
    %256 = arith.negf %255 : vector<8x48xf32>
    %257 = math.exp %256 : vector<8x48xf32>
    %cst_71 = arith.constant 1.000000e+00 : f32
    %258 = vector.broadcast %cst_71 : f32 to vector<8x48xf32>
    %259 = arith.addf %258, %257 : vector<8x48xf32>
    %260 = arith.divf %258, %259 : vector<8x48xf32>
    %261 = vector.extract_strided_slice %246 {offsets = [0, 48], sizes = [8, 16], strides = [1, 1]} : vector<8x64xf32> to vector<8x16xf32>
    %262 = math.tanh %261 : vector<8x16xf32>
    %263 = vector.extract_strided_slice %252 {offsets = [0, 16], sizes = [8, 16], strides = [1, 1]} : vector<8x48xf32> to vector<8x16xf32>
    %264 = arith.mulf %263, %214 : vector<8x16xf32>
    %265 = vector.extract_strided_slice %252 {offsets = [0, 0], sizes = [8, 16], strides = [1, 1]} : vector<8x48xf32> to vector<8x16xf32>
    %266 = arith.mulf %265, %254 : vector<8x16xf32>
    %267 = arith.addf %264, %266 : vector<8x16xf32>
    %268 = vector.extract_strided_slice %260 {offsets = [0, 16], sizes = [8, 16], strides = [1, 1]} : vector<8x48xf32> to vector<8x16xf32>
    %269 = arith.mulf %268, %219 : vector<8x16xf32>
    %270 = vector.extract_strided_slice %260 {offsets = [0, 0], sizes = [8, 16], strides = [1, 1]} : vector<8x48xf32> to vector<8x16xf32>
    %271 = arith.mulf %270, %262 : vector<8x16xf32>
    %272 = arith.addf %269, %271 : vector<8x16xf32>
    %273 = vector.extract_strided_slice %252 {offsets = [0, 32], sizes = [8, 16], strides = [1, 1]} : vector<8x48xf32> to vector<8x16xf32>
    %274 = math.tanh %267 : vector<8x16xf32>
    %275 = arith.mulf %273, %274 : vector<8x16xf32>
    %276 = arith.truncf %275 : vector<8x16xf32> to vector<8x16xbf16>
    %277 = vector.extract_strided_slice %260 {offsets = [0, 32], sizes = [8, 16], strides = [1, 1]} : vector<8x48xf32> to vector<8x16xf32>
    %278 = math.tanh %272 : vector<8x16xf32>
    %279 = arith.mulf %277, %278 : vector<8x16xf32>
    %280 = arith.truncf %279 : vector<8x16xf32> to vector<8x16xbf16>
    %281 = arith.index_cast %233 : i32 to index
    %c0_72 = arith.constant 0 : index
    %282 = vector.load %arg17[%281, %c0_72] : memref<64x16xbf16, #tpu.memory_space<vmem>>, vector<8x16xbf16>
    tpu.vector_store %arg17[%281, %c0_72], %276 {strides = array<i32>} : memref<64x16xbf16, #tpu.memory_space<vmem>>, vector<8x16xbf16>,
    %283 = arith.index_cast %236 : i32 to index
    %c0_73 = arith.constant 0 : index
    %284 = vector.load %arg18[%283, %c0_73] : memref<64x16xbf16, #tpu.memory_space<vmem>>, vector<8x16xbf16>
    tpu.vector_store %arg18[%283, %c0_73], %280 {strides = array<i32>} : memref<64x16xbf16, #tpu.memory_space<vmem>>, vector<8x16xbf16>,
    %c5_i32 = arith.constant 5 : i32
    %c8_i32_74 = arith.constant 8 : i32
    %285 = arith.muli %c5_i32, %c8_i32_74 : i32
    %286 = tpu.assume_multiple %285, 8 : i32
    %c7_i32_75 = arith.constant 7 : i32
    %287 = arith.subi %c7_i32_75, %c5_i32 : i32
    %c8_i32_76 = arith.constant 8 : i32
    %288 = arith.muli %287, %c8_i32_76 : i32
    %289 = tpu.assume_multiple %288, 8 : i32
    %290 = arith.index_cast %286 : i32 to index
    %c0_77 = arith.constant 0 : index
    %291 = vector.load %arg15[%290, %c0_77] : memref<64x64xbf16, #tpu.memory_space<vmem>>, vector<8x64xbf16>
    %292 = arith.extf %291 : vector<8x64xbf16> to vector<8x64xf32>
    %cst_78 = arith.constant dense<0.000000e+00> : vector<8x64xf32>
    %293 = tpu.matmul %276, %16, %cst_78 {dimension_numbers = #tpu.dot_dimension_numbers<[1], [0], [0], [1], [0, 0, 1, 1], [], []>} : vector<8x16xbf16>, vector<16x64xbf16>, vector<8x64xf32> -> vector<8x64xf32>
    %294 = arith.addf %292, %293 : vector<8x64xf32>
    %295 = arith.index_cast %289 : i32 to index
    %c0_79 = arith.constant 0 : index
    %296 = vector.load %arg16[%295, %c0_79] : memref<64x64xbf16, #tpu.memory_space<vmem>>, vector<8x64xbf16>
    %297 = arith.extf %296 : vector<8x64xbf16> to vector<8x64xf32>
    %cst_80 = arith.constant dense<0.000000e+00> : vector<8x64xf32>
    %298 = tpu.matmul %280, %17, %cst_80 {dimension_numbers = #tpu.dot_dimension_numbers<[1], [0], [0], [1], [0, 0, 1, 1], [], []>} : vector<8x16xbf16>, vector<16x64xbf16>, vector<8x64xf32> -> vector<8x64xf32>
    %299 = arith.addf %297, %298 : vector<8x64xf32>
    %300 = vector.extract_strided_slice %294 {offsets = [0, 0], sizes = [8, 48], strides = [1, 1]} : vector<8x64xf32> to vector<8x48xf32>
    %301 = arith.negf %300 : vector<8x48xf32>
    %302 = math.exp %301 : vector<8x48xf32>
    %cst_81 = arith.constant 1.000000e+00 : f32
    %303 = vector.broadcast %cst_81 : f32 to vector<8x48xf32>
    %304 = arith.addf %303, %302 : vector<8x48xf32>
    %305 = arith.divf %303, %304 : vector<8x48xf32>
    %306 = vector.extract_strided_slice %294 {offsets = [0, 48], sizes = [8, 16], strides = [1, 1]} : vector<8x64xf32> to vector<8x16xf32>
    %307 = math.tanh %306 : vector<8x16xf32>
    %308 = vector.extract_strided_slice %299 {offsets = [0, 0], sizes = [8, 48], strides = [1, 1]} : vector<8x64xf32> to vector<8x48xf32>
    %309 = arith.negf %308 : vector<8x48xf32>
    %310 = math.exp %309 : vector<8x48xf32>
    %cst_82 = arith.constant 1.000000e+00 : f32
    %311 = vector.broadcast %cst_82 : f32 to vector<8x48xf32>
    %312 = arith.addf %311, %310 : vector<8x48xf32>
    %313 = arith.divf %311, %312 : vector<8x48xf32>
    %314 = vector.extract_strided_slice %299 {offsets = [0, 48], sizes = [8, 16], strides = [1, 1]} : vector<8x64xf32> to vector<8x16xf32>
    %315 = math.tanh %314 : vector<8x16xf32>
    %316 = vector.extract_strided_slice %305 {offsets = [0, 16], sizes = [8, 16], strides = [1, 1]} : vector<8x48xf32> to vector<8x16xf32>
    %317 = arith.mulf %316, %267 : vector<8x16xf32>
    %318 = vector.extract_strided_slice %305 {offsets = [0, 0], sizes = [8, 16], strides = [1, 1]} : vector<8x48xf32> to vector<8x16xf32>
    %319 = arith.mulf %318, %307 : vector<8x16xf32>
    %320 = arith.addf %317, %319 : vector<8x16xf32>
    %321 = vector.extract_strided_slice %313 {offsets = [0, 16], sizes = [8, 16], strides = [1, 1]} : vector<8x48xf32> to vector<8x16xf32>
    %322 = arith.mulf %321, %272 : vector<8x16xf32>
    %323 = vector.extract_strided_slice %313 {offsets = [0, 0], sizes = [8, 16], strides = [1, 1]} : vector<8x48xf32> to vector<8x16xf32>
    %324 = arith.mulf %323, %315 : vector<8x16xf32>
    %325 = arith.addf %322, %324 : vector<8x16xf32>
    %326 = vector.extract_strided_slice %305 {offsets = [0, 32], sizes = [8, 16], strides = [1, 1]} : vector<8x48xf32> to vector<8x16xf32>
    %327 = math.tanh %320 : vector<8x16xf32>
    %328 = arith.mulf %326, %327 : vector<8x16xf32>
    %329 = arith.truncf %328 : vector<8x16xf32> to vector<8x16xbf16>
    %330 = vector.extract_strided_slice %313 {offsets = [0, 32], sizes = [8, 16], strides = [1, 1]} : vector<8x48xf32> to vector<8x16xf32>
    %331 = math.tanh %325 : vector<8x16xf32>
    %332 = arith.mulf %330, %331 : vector<8x16xf32>
    %333 = arith.truncf %332 : vector<8x16xf32> to vector<8x16xbf16>
    %334 = arith.index_cast %286 : i32 to index
    %c0_83 = arith.constant 0 : index
    %335 = vector.load %arg17[%334, %c0_83] : memref<64x16xbf16, #tpu.memory_space<vmem>>, vector<8x16xbf16>
    tpu.vector_store %arg17[%334, %c0_83], %329 {strides = array<i32>} : memref<64x16xbf16, #tpu.memory_space<vmem>>, vector<8x16xbf16>,
    %336 = arith.index_cast %289 : i32 to index
    %c0_84 = arith.constant 0 : index
    %337 = vector.load %arg18[%336, %c0_84] : memref<64x16xbf16, #tpu.memory_space<vmem>>, vector<8x16xbf16>
    tpu.vector_store %arg18[%336, %c0_84], %333 {strides = array<i32>} : memref<64x16xbf16, #tpu.memory_space<vmem>>, vector<8x16xbf16>,
    %c6_i32 = arith.constant 6 : i32
    %c8_i32_85 = arith.constant 8 : i32
    %338 = arith.muli %c6_i32, %c8_i32_85 : i32
    %339 = tpu.assume_multiple %338, 8 : i32
    %c7_i32_86 = arith.constant 7 : i32
    %340 = arith.subi %c7_i32_86, %c6_i32 : i32
    %c8_i32_87 = arith.constant 8 : i32
    %341 = arith.muli %340, %c8_i32_87 : i32
    %342 = tpu.assume_multiple %341, 8 : i32
    %343 = arith.index_cast %339 : i32 to index
    %c0_88 = arith.constant 0 : index
    %344 = vector.load %arg15[%343, %c0_88] : memref<64x64xbf16, #tpu.memory_space<vmem>>, vector<8x64xbf16>
    %345 = arith.extf %344 : vector<8x64xbf16> to vector<8x64xf32>
    %cst_89 = arith.constant dense<0.000000e+00> : vector<8x64xf32>
    %346 = tpu.matmul %329, %16, %cst_89 {dimension_numbers = #tpu.dot_dimension_numbers<[1], [0], [0], [1], [0, 0, 1, 1], [], []>} : vector<8x16xbf16>, vector<16x64xbf16>, vector<8x64xf32> -> vector<8x64xf32>
    %347 = arith.addf %345, %346 : vector<8x64xf32>
    %348 = arith.index_cast %342 : i32 to index
    %c0_90 = arith.constant 0 : index
    %349 = vector.load %arg16[%348, %c0_90] : memref<64x64xbf16, #tpu.memory_space<vmem>>, vector<8x64xbf16>
    %350 = arith.extf %349 : vector<8x64xbf16> to vector<8x64xf32>
    %cst_91 = arith.constant dense<0.000000e+00> : vector<8x64xf32>
    %351 = tpu.matmul %333, %17, %cst_91 {dimension_numbers = #tpu.dot_dimension_numbers<[1], [0], [0], [1], [0, 0, 1, 1], [], []>} : vector<8x16xbf16>, vector<16x64xbf16>, vector<8x64xf32> -> vector<8x64xf32>
    %352 = arith.addf %350, %351 : vector<8x64xf32>
    %353 = vector.extract_strided_slice %347 {offsets = [0, 0], sizes = [8, 48], strides = [1, 1]} : vector<8x64xf32> to vector<8x48xf32>
    %354 = arith.negf %353 : vector<8x48xf32>
    %355 = math.exp %354 : vector<8x48xf32>
    %cst_92 = arith.constant 1.000000e+00 : f32
    %356 = vector.broadcast %cst_92 : f32 to vector<8x48xf32>
    %357 = arith.addf %356, %355 : vector<8x48xf32>
    %358 = arith.divf %356, %357 : vector<8x48xf32>
    %359 = vector.extract_strided_slice %347 {offsets = [0, 48], sizes = [8, 16], strides = [1, 1]} : vector<8x64xf32> to vector<8x16xf32>
    %360 = math.tanh %359 : vector<8x16xf32>
    %361 = vector.extract_strided_slice %352 {offsets = [0, 0], sizes = [8, 48], strides = [1, 1]} : vector<8x64xf32> to vector<8x48xf32>
    %362 = arith.negf %361 : vector<8x48xf32>
    %363 = math.exp %362 : vector<8x48xf32>
    %cst_93 = arith.constant 1.000000e+00 : f32
    %364 = vector.broadcast %cst_93 : f32 to vector<8x48xf32>
    %365 = arith.addf %364, %363 : vector<8x48xf32>
    %366 = arith.divf %364, %365 : vector<8x48xf32>
    %367 = vector.extract_strided_slice %352 {offsets = [0, 48], sizes = [8, 16], strides = [1, 1]} : vector<8x64xf32> to vector<8x16xf32>
    %368 = math.tanh %367 : vector<8x16xf32>
    %369 = vector.extract_strided_slice %358 {offsets = [0, 16], sizes = [8, 16], strides = [1, 1]} : vector<8x48xf32> to vector<8x16xf32>
    %370 = arith.mulf %369, %320 : vector<8x16xf32>
    %371 = vector.extract_strided_slice %358 {offsets = [0, 0], sizes = [8, 16], strides = [1, 1]} : vector<8x48xf32> to vector<8x16xf32>
    %372 = arith.mulf %371, %360 : vector<8x16xf32>
    %373 = arith.addf %370, %372 : vector<8x16xf32>
    %374 = vector.extract_strided_slice %366 {offsets = [0, 16], sizes = [8, 16], strides = [1, 1]} : vector<8x48xf32> to vector<8x16xf32>
    %375 = arith.mulf %374, %325 : vector<8x16xf32>
    %376 = vector.extract_strided_slice %366 {offsets = [0, 0], sizes = [8, 16], strides = [1, 1]} : vector<8x48xf32> to vector<8x16xf32>
    %377 = arith.mulf %376, %368 : vector<8x16xf32>
    %378 = arith.addf %375, %377 : vector<8x16xf32>
    %379 = vector.extract_strided_slice %358 {offsets = [0, 32], sizes = [8, 16], strides = [1, 1]} : vector<8x48xf32> to vector<8x16xf32>
    %380 = math.tanh %373 : vector<8x16xf32>
    %381 = arith.mulf %379, %380 : vector<8x16xf32>
    %382 = arith.truncf %381 : vector<8x16xf32> to vector<8x16xbf16>
    %383 = vector.extract_strided_slice %366 {offsets = [0, 32], sizes = [8, 16], strides = [1, 1]} : vector<8x48xf32> to vector<8x16xf32>
    %384 = math.tanh %378 : vector<8x16xf32>
    %385 = arith.mulf %383, %384 : vector<8x16xf32>
    %386 = arith.truncf %385 : vector<8x16xf32> to vector<8x16xbf16>
    %387 = arith.index_cast %339 : i32 to index
    %c0_94 = arith.constant 0 : index
    %388 = vector.load %arg17[%387, %c0_94] : memref<64x16xbf16, #tpu.memory_space<vmem>>, vector<8x16xbf16>
    tpu.vector_store %arg17[%387, %c0_94], %382 {strides = array<i32>} : memref<64x16xbf16, #tpu.memory_space<vmem>>, vector<8x16xbf16>,
    %389 = arith.index_cast %342 : i32 to index
    %c0_95 = arith.constant 0 : index
    %390 = vector.load %arg18[%389, %c0_95] : memref<64x16xbf16, #tpu.memory_space<vmem>>, vector<8x16xbf16>
    tpu.vector_store %arg18[%389, %c0_95], %386 {strides = array<i32>} : memref<64x16xbf16, #tpu.memory_space<vmem>>, vector<8x16xbf16>,
    %c7_i32_96 = arith.constant 7 : i32
    %c8_i32_97 = arith.constant 8 : i32
    %391 = arith.muli %c7_i32_96, %c8_i32_97 : i32
    %392 = tpu.assume_multiple %391, 8 : i32
    %c7_i32_98 = arith.constant 7 : i32
    %393 = arith.subi %c7_i32_98, %c7_i32_96 : i32
    %c8_i32_99 = arith.constant 8 : i32
    %394 = arith.muli %393, %c8_i32_99 : i32
    %395 = tpu.assume_multiple %394, 8 : i32
    %396 = arith.index_cast %392 : i32 to index
    %c0_100 = arith.constant 0 : index
    %397 = vector.load %arg15[%396, %c0_100] : memref<64x64xbf16, #tpu.memory_space<vmem>>, vector<8x64xbf16>
    %398 = arith.extf %397 : vector<8x64xbf16> to vector<8x64xf32>
    %cst_101 = arith.constant dense<0.000000e+00> : vector<8x64xf32>
    %399 = tpu.matmul %382, %16, %cst_101 {dimension_numbers = #tpu.dot_dimension_numbers<[1], [0], [0], [1], [0, 0, 1, 1], [], []>} : vector<8x16xbf16>, vector<16x64xbf16>, vector<8x64xf32> -> vector<8x64xf32>
    %400 = arith.addf %398, %399 : vector<8x64xf32>
    %401 = arith.index_cast %395 : i32 to index
    %c0_102 = arith.constant 0 : index
    %402 = vector.load %arg16[%401, %c0_102] : memref<64x64xbf16, #tpu.memory_space<vmem>>, vector<8x64xbf16>
    %403 = arith.extf %402 : vector<8x64xbf16> to vector<8x64xf32>
    %cst_103 = arith.constant dense<0.000000e+00> : vector<8x64xf32>
    %404 = tpu.matmul %386, %17, %cst_103 {dimension_numbers = #tpu.dot_dimension_numbers<[1], [0], [0], [1], [0, 0, 1, 1], [], []>} : vector<8x16xbf16>, vector<16x64xbf16>, vector<8x64xf32> -> vector<8x64xf32>
    %405 = arith.addf %403, %404 : vector<8x64xf32>
    %406 = vector.extract_strided_slice %400 {offsets = [0, 0], sizes = [8, 48], strides = [1, 1]} : vector<8x64xf32> to vector<8x48xf32>
    %407 = arith.negf %406 : vector<8x48xf32>
    %408 = math.exp %407 : vector<8x48xf32>
    %cst_104 = arith.constant 1.000000e+00 : f32
    %409 = vector.broadcast %cst_104 : f32 to vector<8x48xf32>
    %410 = arith.addf %409, %408 : vector<8x48xf32>
    %411 = arith.divf %409, %410 : vector<8x48xf32>
    %412 = vector.extract_strided_slice %400 {offsets = [0, 48], sizes = [8, 16], strides = [1, 1]} : vector<8x64xf32> to vector<8x16xf32>
    %413 = math.tanh %412 : vector<8x16xf32>
    %414 = vector.extract_strided_slice %405 {offsets = [0, 0], sizes = [8, 48], strides = [1, 1]} : vector<8x64xf32> to vector<8x48xf32>
    %415 = arith.negf %414 : vector<8x48xf32>
    %416 = math.exp %415 : vector<8x48xf32>
    %cst_105 = arith.constant 1.000000e+00 : f32
    %417 = vector.broadcast %cst_105 : f32 to vector<8x48xf32>
    %418 = arith.addf %417, %416 : vector<8x48xf32>
    %419 = arith.divf %417, %418 : vector<8x48xf32>
    %420 = vector.extract_strided_slice %405 {offsets = [0, 48], sizes = [8, 16], strides = [1, 1]} : vector<8x64xf32> to vector<8x16xf32>
    %421 = math.tanh %420 : vector<8x16xf32>
    %422 = vector.extract_strided_slice %411 {offsets = [0, 16], sizes = [8, 16], strides = [1, 1]} : vector<8x48xf32> to vector<8x16xf32>
    %423 = arith.mulf %422, %373 : vector<8x16xf32>
    %424 = vector.extract_strided_slice %411 {offsets = [0, 0], sizes = [8, 16], strides = [1, 1]} : vector<8x48xf32> to vector<8x16xf32>
    %425 = arith.mulf %424, %413 : vector<8x16xf32>
    %426 = arith.addf %423, %425 : vector<8x16xf32>
    %427 = vector.extract_strided_slice %419 {offsets = [0, 16], sizes = [8, 16], strides = [1, 1]} : vector<8x48xf32> to vector<8x16xf32>
    %428 = arith.mulf %427, %378 : vector<8x16xf32>
    %429 = vector.extract_strided_slice %419 {offsets = [0, 0], sizes = [8, 16], strides = [1, 1]} : vector<8x48xf32> to vector<8x16xf32>
    %430 = arith.mulf %429, %421 : vector<8x16xf32>
    %431 = arith.addf %428, %430 : vector<8x16xf32>
    %432 = vector.extract_strided_slice %411 {offsets = [0, 32], sizes = [8, 16], strides = [1, 1]} : vector<8x48xf32> to vector<8x16xf32>
    %433 = math.tanh %426 : vector<8x16xf32>
    %434 = arith.mulf %432, %433 : vector<8x16xf32>
    %435 = arith.truncf %434 : vector<8x16xf32> to vector<8x16xbf16>
    %436 = vector.extract_strided_slice %419 {offsets = [0, 32], sizes = [8, 16], strides = [1, 1]} : vector<8x48xf32> to vector<8x16xf32>
    %437 = math.tanh %431 : vector<8x16xf32>
    %438 = arith.mulf %436, %437 : vector<8x16xf32>
    %439 = arith.truncf %438 : vector<8x16xf32> to vector<8x16xbf16>
    %440 = arith.index_cast %392 : i32 to index
    %c0_106 = arith.constant 0 : index
    %441 = vector.load %arg17[%440, %c0_106] : memref<64x16xbf16, #tpu.memory_space<vmem>>, vector<8x16xbf16>
    tpu.vector_store %arg17[%440, %c0_106], %435 {strides = array<i32>} : memref<64x16xbf16, #tpu.memory_space<vmem>>, vector<8x16xbf16>,
    %442 = arith.index_cast %395 : i32 to index
    %c0_107 = arith.constant 0 : index
    %443 = vector.load %arg18[%442, %c0_107] : memref<64x16xbf16, #tpu.memory_space<vmem>>, vector<8x16xbf16>
    tpu.vector_store %arg18[%442, %c0_107], %439 {strides = array<i32>} : memref<64x16xbf16, #tpu.memory_space<vmem>>, vector<8x16xbf16>,
    %c8_i32_108 = arith.constant 8 : i32
    %c0_109 = arith.constant 0 : index
    %c0_110 = arith.constant 0 : index
    %444 = vector.load %arg17[%c0_109, %c0_110] : memref<64x16xbf16, #tpu.memory_space<vmem>>, vector<64x16xbf16>
    %c0_111 = arith.constant 0 : index
    %c0_112 = arith.constant 0 : index
    %445 = vector.load %arg18[%c0_111, %c0_112] : memref<64x16xbf16, #tpu.memory_space<vmem>>, vector<64x16xbf16>
    %446 = arith.extf %444 : vector<64x16xbf16> to vector<64x16xf32>
    %447 = arith.extf %445 : vector<64x16xbf16> to vector<64x16xf32>
    %c0_113 = arith.constant 0 : index
    %c0_114 = arith.constant 0 : index
    %c0_115 = arith.constant 0 : index
    %448 = vector.load %arg13[%c0_113, %c0_114, %c0_115] : memref<1x64x32xf32, #tpu.memory_space<vmem>>, vector<1x64x16xf32>
    %449 = vector.shape_cast %448 : vector<1x64x16xf32> to vector<64x16xf32>
    %450 = vector.shape_cast %446 : vector<64x16xf32> to vector<1x64x16xf32>
    tpu.vector_store %arg13[%c0_113, %c0_114, %c0_115], %450 {strides = array<i32>} : memref<1x64x32xf32, #tpu.memory_space<vmem>>, vector<1x64x16xf32>,
    %c0_116 = arith.constant 0 : index
    %c0_117 = arith.constant 0 : index
    %c16 = arith.constant 16 : index
    %451 = vector.load %arg13[%c0_116, %c0_117, %c16] : memref<1x64x32xf32, #tpu.memory_space<vmem>>, vector<1x64x16xf32>
    %452 = vector.shape_cast %451 : vector<1x64x16xf32> to vector<64x16xf32>
    %453 = vector.shape_cast %447 : vector<64x16xf32> to vector<1x64x16xf32>
    tpu.vector_store %arg13[%c0_116, %c0_117, %c16], %453 {strides = array<i32>} : memref<1x64x32xf32, #tpu.memory_space<vmem>>, vector<1x64x16xf32>,
    %c0_118 = arith.constant 0 : index
    %c0_119 = arith.constant 0 : index
    %454 = vector.load %arg9[%c0_118, %c0_119] : memref<16x32xbf16, #tpu.memory_space<vmem>>, vector<16x32xbf16>
    %cst_120 = arith.constant dense<0.000000e+00> : vector<64x32xf32>
    %455 = tpu.matmul %444, %454, %cst_120 {dimension_numbers = #tpu.dot_dimension_numbers<[1], [0], [0], [1], [0, 0, 1, 1], [], []>} : vector<64x16xbf16>, vector<16x32xbf16>, vector<64x32xf32> -> vector<64x32xf32>
    %c0_121 = arith.constant 0 : index
    %c0_122 = arith.constant 0 : index
    %456 = vector.load %arg10[%c0_121, %c0_122] : memref<16x32xbf16, #tpu.memory_space<vmem>>, vector<16x32xbf16>
    %cst_123 = arith.constant dense<0.000000e+00> : vector<64x32xf32>
    %457 = tpu.matmul %445, %456, %cst_123 {dimension_numbers = #tpu.dot_dimension_numbers<[1], [0], [0], [1], [0, 0, 1, 1], [], []>} : vector<64x16xbf16>, vector<16x32xbf16>, vector<64x32xf32> -> vector<64x32xf32>
    %458 = arith.addf %455, %457 : vector<64x32xf32>
    %c0_124 = arith.constant 0 : index
    %c0_125 = arith.constant 0 : index
    %459 = vector.load %arg11[%c0_124, %c0_125] : memref<1x32xf32, #tpu.memory_space<vmem>>, vector<1x32xf32>
    %460 = vector.broadcast %459 : vector<1x32xf32> to vector<64x32xf32>
    %461 = arith.addf %458, %460 : vector<64x32xf32>
    %462 = math.tanh %461 : vector<64x32xf32>
    %c0_126 = arith.constant 0 : index
    %c0_127 = arith.constant 0 : index
    %463 = vector.load %arg12[%c0_126, %c0_127] : memref<1x32xf32, #tpu.memory_space<vmem>>, vector<1x32xf32>
    %464 = vector.broadcast %463 : vector<1x32xf32> to vector<64x32xf32>
    %465 = arith.mulf %462, %464 : vector<64x32xf32>
    %cst_128 = arith.constant dense<0.000000e+00> : vector<64xf32>
    %466 = vector.multi_reduction <add>, %465, %cst_128 [1] : vector<64x32xf32> to vector<64xf32>
    %467 = vector.shape_cast %466 : vector<64xf32> to vector<64x1xf32>
    %c0_129 = arith.constant 0 : index
    %c0_130 = arith.constant 0 : index
    %c0_131 = arith.constant 0 : index
    %468 = vector.load %arg2[%c0_129, %c0_130, %c0_131] : memref<1x64x1xf32, #tpu.memory_space<vmem>>, vector<1x64x1xf32>
    %469 = vector.shape_cast %468 : vector<1x64x1xf32> to vector<64x1xf32>
    %cst_132 = arith.constant 5.000000e-01 : f32
    %470 = vector.broadcast %cst_132 : f32 to vector<64x1xf32>
    %471 = arith.cmpf ogt, %469, %470 : vector<64x1xf32>
    %cst_133 = arith.constant -1.000000e-32 : f32
    %472 = vector.broadcast %cst_133 : f32 to vector<64x1xf32>
    %473 = arith.select %471, %467, %472 : vector<64x1xi1>, vector<64x1xf32>
    %474 = vector.shape_cast %473 : vector<64x1xf32> to vector<8x8x1xf32>
    %cst_134 = arith.constant dense<0xFF800000> : vector<8x1xf32>
    %475 = vector.multi_reduction <maximumf>, %474, %cst_134 [0] : vector<8x8x1xf32> to vector<8x1xf32>
    %476 = vector.shape_cast %475 : vector<8x1xf32> to vector<1x8x1xf32>
    %477 = vector.broadcast %476 : vector<1x8x1xf32> to vector<8x8x1xf32>
    %478 = arith.subf %474, %477 : vector<8x8x1xf32>
    %479 = math.exp %478 : vector<8x8x1xf32>
    %cst_135 = arith.constant dense<0.000000e+00> : vector<8x1xf32>
    %480 = vector.multi_reduction <add>, %479, %cst_135 [0] : vector<8x8x1xf32> to vector<8x1xf32>
    %481 = tpu.reciprocal %480 {approx = true} : vector<8x1xf32> -> vector<8x1xf32>
    %482 = vector.shape_cast %446 : vector<64x16xf32> to vector<8x8x16xf32>
    %483 = vector.broadcast %479 : vector<8x8x1xf32> to vector<8x8x16xf32>
    %484 = arith.mulf %482, %483 : vector<8x8x16xf32>
    %cst_136 = arith.constant dense<0.000000e+00> : vector<8x16xf32>
    %485 = vector.multi_reduction <add>, %484, %cst_136 [0] : vector<8x8x16xf32> to vector<8x16xf32>
    %486 = vector.shape_cast %447 : vector<64x16xf32> to vector<8x8x16xf32>
    %487 = vector.broadcast %479 : vector<8x8x1xf32> to vector<8x8x16xf32>
    %488 = arith.mulf %486, %487 : vector<8x8x16xf32>
    %cst_137 = arith.constant dense<0.000000e+00> : vector<8x16xf32>
    %489 = vector.multi_reduction <add>, %488, %cst_137 [0] : vector<8x8x16xf32> to vector<8x16xf32>
    %490 = vector.broadcast %481 : vector<8x1xf32> to vector<8x16xf32>
    %491 = arith.mulf %485, %490 : vector<8x16xf32>
    %c0_138 = arith.constant 0 : index
    %c0_139 = arith.constant 0 : index
    %c0_140 = arith.constant 0 : index
    %492 = vector.load %arg14[%c0_138, %c0_139, %c0_140] : memref<1x8x32xf32, #tpu.memory_space<vmem>>, vector<1x8x16xf32>
    %493 = vector.shape_cast %492 : vector<1x8x16xf32> to vector<8x16xf32>
    %494 = vector.shape_cast %491 : vector<8x16xf32> to vector<1x8x16xf32>
    tpu.vector_store %arg14[%c0_138, %c0_139, %c0_140], %494 {strides = array<i32>} : memref<1x8x32xf32, #tpu.memory_space<vmem>>, vector<1x8x16xf32>,
    %495 = vector.broadcast %481 : vector<8x1xf32> to vector<8x16xf32>
    %496 = arith.mulf %489, %495 : vector<8x16xf32>
    %c0_141 = arith.constant 0 : index
    %c0_142 = arith.constant 0 : index
    %c16_143 = arith.constant 16 : index
    %497 = vector.load %arg14[%c0_141, %c0_142, %c16_143] : memref<1x8x32xf32, #tpu.memory_space<vmem>>, vector<1x8x16xf32>
    %498 = vector.shape_cast %497 : vector<1x8x16xf32> to vector<8x16xf32>
    %499 = vector.shape_cast %496 : vector<8x16xf32> to vector<1x8x16xf32>
    tpu.vector_store %arg14[%c0_141, %c0_142, %c16_143], %499 {strides = array<i32>} : memref<1x8x32xf32, #tpu.memory_space<vmem>>, vector<1x8x16xf32>,
    return
  }
  func.func @transform_0(%arg0: i32) -> (i32, i32, i32) {
    %c0_i32 = arith.constant 0 : i32
    %c0_i32_0 = arith.constant 0 : i32
    %c0_i32_1 = arith.constant 0 : i32
    return %arg0, %c0_i32, %c0_i32_0 : i32, i32, i32
  }
  func.func @transform_1(%arg0: i32) -> (i32, i32, i32) {
    %c0_i32 = arith.constant 0 : i32
    %c0_i32_0 = arith.constant 0 : i32
    %c0_i32_1 = arith.constant 0 : i32
    return %arg0, %c0_i32, %c0_i32_0 : i32, i32, i32
  }
  func.func @transform_2(%arg0: i32) -> (i32, i32) {
    %c0_i32 = arith.constant 0 : i32
    %c0_i32_0 = arith.constant 0 : i32
    %c0_i32_1 = arith.constant 0 : i32
    return %c0_i32, %c0_i32_0 : i32, i32
  }
  func.func @transform_3(%arg0: i32) -> (i32, i32) {
    %c0_i32 = arith.constant 0 : i32
    %c0_i32_0 = arith.constant 0 : i32
    %c0_i32_1 = arith.constant 0 : i32
    return %c0_i32, %c0_i32_0 : i32, i32
  }
  func.func @transform_4(%arg0: i32) -> (i32, i32) {
    %c0_i32 = arith.constant 0 : i32
    %c0_i32_0 = arith.constant 0 : i32
    %c0_i32_1 = arith.constant 0 : i32
    return %c0_i32, %c0_i32_0 : i32, i32
  }
  func.func @transform_5(%arg0: i32) -> (i32, i32) {
    %c0_i32 = arith.constant 0 : i32
    %c0_i32_0 = arith.constant 0 : i32
    %c0_i32_1 = arith.constant 0 : i32
    return %c0_i32, %c0_i32_0 : i32, i32
  }
  func.func @transform_6(%arg0: i32) -> (i32, i32) {
    %c0_i32 = arith.constant 0 : i32
    %c0_i32_0 = arith.constant 0 : i32
    %c0_i32_1 = arith.constant 0 : i32
    return %c0_i32, %c0_i32_0 : i32, i32
  }
  func.func @transform_7(%arg0: i32) -> (i32, i32) {
    %c0_i32 = arith.constant 0 : i32
    %c0_i32_0 = arith.constant 0 : i32
    %c0_i32_1 = arith.constant 0 : i32
    return %c0_i32, %c0_i32_0 : i32, i32
  }
  func.func @transform_8(%arg0: i32) -> (i32, i32) {
    %c0_i32 = arith.constant 0 : i32
    %c0_i32_0 = arith.constant 0 : i32
    %c0_i32_1 = arith.constant 0 : i32
    return %c0_i32, %c0_i32_0 : i32, i32
  }
  func.func @transform_9(%arg0: i32) -> (i32, i32) {
    %c0_i32 = arith.constant 0 : i32
    %c0_i32_0 = arith.constant 0 : i32
    %c0_i32_1 = arith.constant 0 : i32
    return %c0_i32, %c0_i32_0 : i32, i32
  }
  func.func @transform_10(%arg0: i32) -> (i32, i32) {
    %c0_i32 = arith.constant 0 : i32
    %c0_i32_0 = arith.constant 0 : i32
    %c0_i32_1 = arith.constant 0 : i32
    return %c0_i32, %c0_i32_0 : i32, i32
  }
  func.func @transform_11(%arg0: i32) -> (i32, i32) {
    %c0_i32 = arith.constant 0 : i32
    %c0_i32_0 = arith.constant 0 : i32
    %c0_i32_1 = arith.constant 0 : i32
    return %c0_i32, %c0_i32_0 : i32, i32
  }
  func.func @transform_12(%arg0: i32) -> (i32, i32, i32) {
    %c0_i32 = arith.constant 0 : i32
    %c0_i32_0 = arith.constant 0 : i32
    %c0_i32_1 = arith.constant 0 : i32
    return %arg0, %c0_i32, %c0_i32_0 : i32, i32, i32
  }
  func.func @transform_13(%arg0: i32) -> (i32, i32, i32) {
    %c0_i32 = arith.constant 0 : i32
    %c0_i32_0 = arith.constant 0 : i32
    %c0_i32_1 = arith.constant 0 : i32
    return %arg0, %c0_i32, %c0_i32_0 : i32, i32, i32
  }
}

</mosaic_0001>

<llo_original>
// kernel: tpu_custom_call.1
$region0: #{tpu_custom_call.1}
  #allocation0 [shape = 'u32[]', space=smem, size = 0x4, offset = 0x4, fixed_abs, tag = 'smem constant byte address 0x4 - core index']
  #allocation1 [shape = 'u32[144,128]{1,0:T(1,128)}', space=vmem, size = 0x12000, scoped, tag = 'internal scratch']
  #allocation2 [shape = 'bf16[64,64]{1,0:T(8,128)(2,1)}', space=vmem, size = 0x4000, scoped, tag = 'scratch operand']
  #allocation3 [shape = 'bf16[64,64]{1,0:T(8,128)(2,1)}', space=vmem, size = 0x4000, scoped, tag = 'scratch operand']
  #allocation4 [shape = 'bf16[64,16]{1,0:T(8,128)(2,1)}', space=vmem, size = 0x4000, scoped, tag = 'scratch operand']
  #allocation5 [shape = 'bf16[64,16]{1,0:T(8,128)(2,1)}', space=vmem, size = 0x4000, scoped, tag = 'scratch operand']
  %s0 = inlined_call_operand.vmem [shape: bf16[1,64,32], index: 0, kind: input, shape index: {}]
  %s1 = inlined_call_operand.vmem [shape: f32[1,64,1], index: 1, kind: input, shape index: {}]
  %s2 = inlined_call_operand.vmem [shape: bf16[32,64], index: 2, kind: input, shape index: {}]
  %s3 = inlined_call_operand.vmem [shape: bf16[32,64], index: 3, kind: input, shape index: {}]
  %s4 = inlined_call_operand.vmem [shape: f32[1,64], index: 4, kind: input, shape index: {}]
  %s5 = inlined_call_operand.vmem [shape: f32[1,64], index: 5, kind: input, shape index: {}]
  %s6 = inlined_call_operand.vmem [shape: bf16[16,64], index: 6, kind: input, shape index: {}]
  %s7 = inlined_call_operand.vmem [shape: bf16[16,64], index: 7, kind: input, shape index: {}]
  %s8 = inlined_call_operand.vmem [shape: bf16[16,32], index: 8, kind: input, shape index: {}]
  %s9 = inlined_call_operand.vmem [shape: bf16[16,32], index: 9, kind: input, shape index: {}]
  %s10 = inlined_call_operand.vmem [shape: f32[1,32], index: 10, kind: input, shape index: {}]
  %s11 = inlined_call_operand.vmem [shape: f32[1,32], index: 11, kind: input, shape index: {}]
  %s12 = inlined_call_operand.vmem [shape: f32[1,64,32], index: 12, kind: output, shape index: {0}]
  %s13 = inlined_call_operand.hbm [shape: f32[1,8,32], index: 13, kind: output, shape index: {1}]
  %14 = xla_tuple %s12, %s13
  %s15 = sld [smem:[#allocation0]]
  $region66: #{tpu_custom_call.1} parent=0
    _
  %s17 = ssub.s32 1, %s15
  %s18 = scalar_select 0, %s17, %s15
  $region1: #{tpu_custom_call.1} parent=0
    #allocation6 [shape = 'u8[4096]{0}', space=vmem, size = 0x1000, scoped, tag = 'output window, operand 1, single buffered']
    #allocation7 [shape = 's32[1]{0}', space=sflag, size = 0x4, scoped, tag = 'scoped memory for tpu_custom_call.1']
    %19 = vsyncpa [#allocation7], 0
    // Predicated region
    $region2: #{tpu_custom_call.1} parent=1 // pred_check
      _
    $region3: #{tpu_custom_call.1} parent=1 // pred_check_branch
      %21 = sbr.rel (0) target = $region5
    $region4: #{tpu_custom_call.1} parent=1 // pred_region
      _
    $region5: #{tpu_custom_call.1} parent=1 // pred_fallthru
      _
    // Predicated region
    $region6: #{tpu_custom_call.1} parent=1 // pred_check
      _
    $region7: #{tpu_custom_call.1} parent=1 // pred_check_branch
      %23 = sbr.rel (0) target = $region9
    $region8: #{tpu_custom_call.1} parent=1 // pred_region
      _
    $region9: #{tpu_custom_call.1} parent=1 // pred_fallthru
      _
    // Predicated region
    $region10: #{tpu_custom_call.1} parent=1 // pred_check
      _
    $region11: #{tpu_custom_call.1} parent=1 // pred_check_branch
      %25 = sbr.rel (0) target = $region13
    $region12: #{tpu_custom_call.1} parent=1 // pred_region
      _
    $region13: #{tpu_custom_call.1} parent=1 // pred_fallthru
      _
    // Predicated region
    $region14: #{tpu_custom_call.1} parent=1 // pred_check
      _
    $region15: #{tpu_custom_call.1} parent=1 // pred_check_branch
      %27 = sbr.rel (0) target = $region17
    $region16: #{tpu_custom_call.1} parent=1 // pred_region
      _
    $region17: #{tpu_custom_call.1} parent=1 // pred_fallthru
      _
    // Predicated region
    $region18: #{tpu_custom_call.1} parent=1 // pred_check
      _
    $region19: #{tpu_custom_call.1} parent=1 // pred_check_branch
      %29 = sbr.rel (0) target = $region21
    $region20: #{tpu_custom_call.1} parent=1 // pred_region
      _
    $region21: #{tpu_custom_call.1} parent=1 // pred_fallthru
      _
    // Predicated region
    $region22: #{tpu_custom_call.1} parent=1 // pred_check
      _
    $region23: #{tpu_custom_call.1} parent=1 // pred_check_branch
      %31 = sbr.rel (0) target = $region25
    $region24: #{tpu_custom_call.1} parent=1 // pred_region
      _
    $region25: #{tpu_custom_call.1} parent=1 // pred_fallthru
      _
    // Predicated region
    $region26: #{tpu_custom_call.1} parent=1 // pred_check
      _
    $region27: #{tpu_custom_call.1} parent=1 // pred_check_branch
      %33 = sbr.rel (0) target = $region29
    $region28: #{tpu_custom_call.1} parent=1 // pred_region
      _
    $region29: #{tpu_custom_call.1} parent=1 // pred_fallthru
      _
    // Predicated region
    $region30: #{tpu_custom_call.1} parent=1 // pred_check
      _
    $region31: #{tpu_custom_call.1} parent=1 // pred_check_branch
      %35 = sbr.rel (0) target = $region33
    $region32: #{tpu_custom_call.1} parent=1 // pred_region
      _
    $region33: #{tpu_custom_call.1} parent=1 // pred_fallthru
      _
    // Predicated region
    $region34: #{tpu_custom_call.1} parent=1 // pred_check
      _
    $region35: #{tpu_custom_call.1} parent=1 // pred_check_branch
      %37 = sbr.rel (0) target = $region37
    $region36: #{tpu_custom_call.1} parent=1 // pred_region
      _
    $region37: #{tpu_custom_call.1} parent=1 // pred_fallthru
      _
    // Predicated region
    $region38: #{tpu_custom_call.1} parent=1 // pred_check
      _
    $region39: #{tpu_custom_call.1} parent=1 // pred_check_branch
      %39 = sbr.rel (0) target = $region41
    $region40: #{tpu_custom_call.1} parent=1 // pred_region
      _
    $region41: #{tpu_custom_call.1} parent=1 // pred_fallthru
      _
    // Predicated region
    $region42: #{tpu_custom_call.1} parent=1 // pred_check
      _
    $region43: #{tpu_custom_call.1} parent=1 // pred_check_branch
      %41 = sbr.rel (0) target = $region45
    $region44: #{tpu_custom_call.1} parent=1 // pred_region
      _
    $region45: #{tpu_custom_call.1} parent=1 // pred_fallthru
      _
    // Predicated region
    $region46: #{tpu_custom_call.1} parent=1 // pred_check
      _
    $region47: #{tpu_custom_call.1} parent=1 // pred_check_branch
      %43 = sbr.rel (0) target = $region49
    $region48: #{tpu_custom_call.1} parent=1 // pred_region
      _
    $region49: #{tpu_custom_call.1} parent=1 // pred_fallthru
      _
    %v45 = vld [vmem:[%s0] sm:$0xf]
    %v46 = vld [vmem:[%s0 + $0x4] sm:$0xf]
    %v47 = vld [vmem:[%s0 + $0x8] sm:$0xf]
    %v48 = vld [vmem:[%s0 + $0xc] sm:$0xf]
    %v49 = vld [vmem:[%s0 + $0x10] sm:$0xf]
    %v50 = vld [vmem:[%s0 + $0x14] sm:$0xf]
    %v51 = vld [vmem:[%s0 + $0x18] sm:$0xf]
    %v52 = vld [vmem:[%s0 + $0x1c] sm:$0xf]
    %v53 = vld [vmem:[%s2] sm:$0xf]
    %v54 = vld [vmem:[%s2 + $0x4] sm:$0xf]
    %v55 = vld [vmem:[%s2 + $0x8] sm:$0xf]
    %v56 = vld [vmem:[%s2 + $0xc] sm:$0xf]
    %v57 = vld [vmem:[%s4] sm:$0x1]
    %v59 = vlaneseq
    %v60 = vshrl.u32 %v59, 7
    %v61 = vsub.s32 0, %v60
    %v62 = vrot.slane %v57, %v61
    %v72 = vunpack.c.l.b16 %v45
    %v73 = vunpack.c.l.b16 %v46
    %v74 = vunpack.c.l.b16 %v47
    %v75 = vunpack.c.l.b16 %v48
    %v76 = vunpack.c.l.b16 %v49
    %v77 = vunpack.c.l.b16 %v50
    %v78 = vunpack.c.l.b16 %v51
    %v79 = vunpack.c.l.b16 %v52
    %v80 = vpack.c.b16 %v73, %v72
    %v81 = vpack.c.b16 %v75, %v74
    %v82 = vpack.c.b16 %v77, %v76
    %v83 = vpack.c.b16 %v79, %v78
    %v88 = vunpack.c.l.b16 %v53
    %v89 = vunpack.c.l.b16 %v54
    %v90 = vunpack.c.l.b16 %v55
    %v91 = vunpack.c.l.b16 %v56
    %v92 = vpack.c.b16 %v89, %v88
    %v93 = vpack.c.b16 %v91, %v90
    %vm96 = vcmask 261120
    %v98 = vsel %vm96, %v80, 0
    %v101 = vsel %vm96, %v81, 0
    %v104 = vsel %vm96, %v82, 0
    %v107 = vsel %vm96, %v83, 0
    %109 = vmatprep.subr.bf16.mxu0 0
    %110 = vmatpush1.bf16.msra.mxu0 0
    %111 = vmatprep.subr.bf16.mxu0 0
    %112 = vmatpush1.bf16.msra.mxu0 0
    %113 = vmatprep.subr.bf16.mxu0 0
    %114 = vmatpush1.bf16.msra.mxu0 0
    %115 = vmatprep.subr.bf16.mxu0 0
    %116 = vmatpush1.bf16.msra.mxu0 0
    %117 = vmatprep.subr.bf16.mxu0 0
    %118 = vmatpush1.bf16.msra.mxu0 0
    %119 = vmatprep.subr.bf16.mxu0 0
    %120 = vmatpush1.bf16.msra.mxu0 0
    %121 = vmatprep.subr.bf16.mxu0 0
    %122 = vmatpush1.bf16.msra.mxu0 %v93
    %123 = vmatprep.subr.bf16.mxu0 0
    %124 = vmatpush1.bf16.msra.mxu0 %v92
    %125 = vmatprep.subr.bf16.mxu0 0
    %126 = vmatpush2.bf16.msra.mxu0 0
    %127 = vmatprep.subr.bf16.mxu0 0
    %128 = vmatpush2.bf16.msra.mxu0 0
    %129 = vmatprep.subr.bf16.mxu0 0
    %130 = vmatpush2.bf16.msra.mxu0 0
    %131 = vmatprep.subr.bf16.mxu0 0
    %132 = vmatpush2.bf16.msra.mxu0 0
    %133 = vmatprep.subr.bf16.mxu0 0
    %134 = vmatpush2.bf16.msra.mxu0 0
    %135 = vmatprep.subr.bf16.mxu0 0
    %136 = vmatpush2.bf16.msra.mxu0 0
    %137 = vmatprep.subr.bf16.mxu0 0
    %138 = vmatpush2.bf16.msra.mxu0 0
    %139 = vmatprep.subr.bf16.mxu0 0
    %140 = vmatpush2.bf16.msra.mxu0 0
    %141 = vmatprep.mubr.bf16.mxu0 0
    %142 = vmatmul.mubr.bf16.gmra.mxu0 %v98
    %v143 = vpop.f32.mrf.mxu0
    %v144 = vadd.f32 %v62, %v143
    %v145 = vpop.f32.mrf.mxu0
    %v146 = vpop.f32.mrf.mxu0
    %v147 = vadd.f32 %v62, %v146
    %v148 = vpop.f32.mrf.mxu0
    %149 = vmatprep.mubr.bf16.mxu0 0
    %150 = vmatmul.mubr.bf16.gmra.mxu0 %v101
    %v151 = vpop.f32.mrf.mxu0
    %v152 = vadd.f32 %v62, %v151
    %v153 = vpop.f32.mrf.mxu0
    %v154 = vpop.f32.mrf.mxu0
    %v155 = vadd.f32 %v62, %v154
    %v156 = vpop.f32.mrf.mxu0
    %157 = vmatprep.mubr.bf16.mxu0 0
    %158 = vmatmul.mubr.bf16.gmra.mxu0 %v104
    %v159 = vpop.f32.mrf.mxu0
    %v160 = vadd.f32 %v62, %v159
    %v161 = vpop.f32.mrf.mxu0
    %v162 = vpop.f32.mrf.mxu0
    %v163 = vadd.f32 %v62, %v162
    %v164 = vpop.f32.mrf.mxu0
    %165 = vmatprep.mubr.bf16.mxu0 0
    %166 = vmatmul.mubr.bf16.gmra.mxu0 %v107
    %v167 = vpop.f32.mrf.mxu0
    %v168 = vadd.f32 %v62, %v167
    %v169 = vpop.f32.mrf.mxu0
    %v170 = vpop.f32.mrf.mxu0
    %v171 = vadd.f32 %v62, %v170
    %v172 = vpop.f32.mrf.mxu0
    %173 = vdwg.mxu0
    %v174 = vpack.c.bf16 %v147, %v144
    %v175 = vpack.c.bf16 %v155, %v152
    %v176 = vpack.c.bf16 %v163, %v160
    %v177 = vpack.c.bf16 %v171, %v168
    %v182 = vunpack.c.l.b16 %v174
    %v183 = vunpack.c.h.b16 %v174
    %v184 = vunpack.c.l.b16 %v175
    %v185 = vunpack.c.h.b16 %v175
    %v186 = vunpack.c.l.b16 %v176
    %v187 = vunpack.c.h.b16 %v176
    %v188 = vunpack.c.l.b16 %v177
    %v189 = vunpack.c.h.b16 %v177
    %v190 = vpack.c.b16 %v182, %v182
    %v191 = vpack.c.b16 %v183, %v183
    %v192 = vpack.c.b16 %v184, %v184
    %v193 = vpack.c.b16 %v185, %v185
    %v194 = vpack.c.b16 %v186, %v186
    %v195 = vpack.c.b16 %v187, %v187
    %v196 = vpack.c.b16 %v188, %v188
    %v197 = vpack.c.b16 %v189, %v189
    %vm206 = vcmask 519168
    %207 = vst.msk [vmem:[#allocation2] sm:$0xf] %vm206, %v190
    %208 = vst.msk [vmem:[#allocation2 + $0x4] sm:$0xf] %vm206, %v191
    %209 = vst.msk [vmem:[#allocation2 + $0x8] sm:$0xf] %vm206, %v192
    %210 = vst.msk [vmem:[#allocation2 + $0xc] sm:$0xf] %vm206, %v193
    %211 = vst.msk [vmem:[#allocation2 + $0x10] sm:$0xf] %vm206, %v194
    %212 = vst.msk [vmem:[#allocation2 + $0x14] sm:$0xf] %vm206, %v195
    %213 = vst.msk [vmem:[#allocation2 + $0x18] sm:$0xf] %vm206, %v196
    %214 = vst.msk [vmem:[#allocation2 + $0x1c] sm:$0xf] %vm206, %v197
    %v215 = vld [vmem:[%s3] sm:$0xf]
    %v216 = vld [vmem:[%s3 + $0x4] sm:$0xf]
    %v217 = vld [vmem:[%s3 + $0x8] sm:$0xf]
    %v218 = vld [vmem:[%s3 + $0xc] sm:$0xf]
    %v219 = vld [vmem:[%s5] sm:$0x1]
    %v221 = vlaneseq
    %v222 = vshrl.u32 %v221, 7
    %v223 = vsub.s32 0, %v222
    %v224 = vrot.slane %v219, %v223
    %v230 = vunpack.c.l.b16 %v215
    %v231 = vunpack.c.l.b16 %v216
    %v232 = vunpack.c.l.b16 %v217
    %v233 = vunpack.c.l.b16 %v218
    %v234 = vpack.c.b16 %v231, %v230
    %v235 = vpack.c.b16 %v233, %v232
    %238 = vmatprep.subr.bf16.mxu0 0
    %239 = vmatpush1.bf16.msra.mxu0 0
    %240 = vmatprep.subr.bf16.mxu0 0
    %241 = vmatpush1.bf16.msra.mxu0 0
    %242 = vmatprep.subr.bf16.mxu0 0
    %243 = vmatpush1.bf16.msra.mxu0 0
    %244 = vmatprep.subr.bf16.mxu0 0
    %245 = vmatpush1.bf16.msra.mxu0 0
    %246 = vmatprep.subr.bf16.mxu0 0
    %247 = vmatpush1.bf16.msra.mxu0 0
    %248 = vmatprep.subr.bf16.mxu0 0
    %249 = vmatpush1.bf16.msra.mxu0 0
    %250 = vmatprep.subr.bf16.mxu0 0
    %251 = vmatpush1.bf16.msra.mxu0 %v235
    %252 = vmatprep.subr.bf16.mxu0 0
    %253 = vmatpush1.bf16.msra.mxu0 %v234
    %254 = vmatprep.subr.bf16.mxu0 0
    %255 = vmatpush2.bf16.msra.mxu0 0
    %256 = vmatprep.subr.bf16.mxu0 0
    %257 = vmatpush2.bf16.msra.mxu0 0
    %258 = vmatprep.subr.bf16.mxu0 0
    %259 = vmatpush2.bf16.msra.mxu0 0
    %260 = vmatprep.subr.bf16.mxu0 0
    %261 = vmatpush2.bf16.msra.mxu0 0
    %262 = vmatprep.subr.bf16.mxu0 0
    %263 = vmatpush2.bf16.msra.mxu0 0
    %264 = vmatprep.subr.bf16.mxu0 0
    %265 = vmatpush2.bf16.msra.mxu0 0
    %266 = vmatprep.subr.bf16.mxu0 0
    %267 = vmatpush2.bf16.msra.mxu0 0
    %268 = vmatprep.subr.bf16.mxu0 0
    %269 = vmatpush2.bf16.msra.mxu0 0
    %270 = vmatprep.mubr.bf16.mxu0 0
    %271 = vmatmul.mubr.bf16.gmra.mxu0 %v98
    %v272 = vpop.f32.mrf.mxu0
    %v273 = vadd.f32 %v224, %v272
    %v274 = vpop.f32.mrf.mxu0
    %v275 = vpop.f32.mrf.mxu0
    %v276 = vadd.f32 %v224, %v275
    %v277 = vpop.f32.mrf.mxu0
    %278 = vmatprep.mubr.bf16.mxu0 0
    %279 = vmatmul.mubr.bf16.gmra.mxu0 %v101
    %v280 = vpop.f32.mrf.mxu0
    %v281 = vadd.f32 %v224, %v280
    %v282 = vpop.f32.mrf.mxu0
    %v283 = vpop.f32.mrf.mxu0
    %v284 = vadd.f32 %v224, %v283
    %v285 = vpop.f32.mrf.mxu0
    %286 = vmatprep.mubr.bf16.mxu0 0
    %287 = vmatmul.mubr.bf16.gmra.mxu0 %v104
    %v288 = vpop.f32.mrf.mxu0
    %v289 = vadd.f32 %v224, %v288
    %v290 = vpop.f32.mrf.mxu0
    %v291 = vpop.f32.mrf.mxu0
    %v292 = vadd.f32 %v224, %v291
    %v293 = vpop.f32.mrf.mxu0
    %294 = vmatprep.mubr.bf16.mxu0 0
    %295 = vmatmul.mubr.bf16.gmra.mxu0 %v107
    %v296 = vpop.f32.mrf.mxu0
    %v297 = vadd.f32 %v224, %v296
    %v298 = vpop.f32.mrf.mxu0
    %v299 = vpop.f32.mrf.mxu0
    %v300 = vadd.f32 %v224, %v299
    %v301 = vpop.f32.mrf.mxu0
    %302 = vdwg.mxu0
    %v303 = vpack.c.bf16 %v276, %v273
    %v304 = vpack.c.bf16 %v284, %v281
    %v305 = vpack.c.bf16 %v292, %v289
    %v306 = vpack.c.bf16 %v300, %v297
    %v311 = vunpack.c.l.b16 %v303
    %v312 = vunpack.c.h.b16 %v303
    %v313 = vunpack.c.l.b16 %v304
    %v314 = vunpack.c.h.b16 %v304
    %v315 = vunpack.c.l.b16 %v305
    %v316 = vunpack.c.h.b16 %v305
    %v317 = vunpack.c.l.b16 %v306
    %v318 = vunpack.c.h.b16 %v306
    %v319 = vpack.c.b16 %v311, %v311
    %v320 = vpack.c.b16 %v312, %v312
    %v321 = vpack.c.b16 %v313, %v313
    %v322 = vpack.c.b16 %v314, %v314
    %v323 = vpack.c.b16 %v315, %v315
    %v324 = vpack.c.b16 %v316, %v316
    %v325 = vpack.c.b16 %v317, %v317
    %v326 = vpack.c.b16 %v318, %v318
    %335 = vst.msk [vmem:[#allocation3] sm:$0xf] %vm206, %v319
    %336 = vst.msk [vmem:[#allocation3 + $0x4] sm:$0xf] %vm206, %v320
    %337 = vst.msk [vmem:[#allocation3 + $0x8] sm:$0xf] %vm206, %v321
    %338 = vst.msk [vmem:[#allocation3 + $0xc] sm:$0xf] %vm206, %v322
    %339 = vst.msk [vmem:[#allocation3 + $0x10] sm:$0xf] %vm206, %v323
    %340 = vst.msk [vmem:[#allocation3 + $0x14] sm:$0xf] %vm206, %v324
    %341 = vst.msk [vmem:[#allocation3 + $0x18] sm:$0xf] %vm206, %v325
    %342 = vst.msk [vmem:[#allocation3 + $0x1c] sm:$0xf] %vm206, %v326
    %v343 = vld [vmem:[%s6] sm:$0xf]
    %v344 = vld [vmem:[%s6 + $0x4] sm:$0xf]
    %v345 = vld [vmem:[%s7] sm:$0xf]
    %v346 = vld [vmem:[%s7 + $0x4] sm:$0xf]
    %v347 = vld [vmem:[#allocation2] sm:$0xf]
    %v348 = vunpack.c.l.bf16 %v347
    %v351 = vunpack.c.l.b16 %v343
    %v352 = vunpack.c.l.b16 %v344
    %v353 = vpack.c.b16 %v352, %v351
    %vm355 = vcmask 130048
    %v357 = vsel %vm355, 0, 0
    %359 = vmatprep.subr.bf16.mxu0 0
    %360 = vmatpush1.bf16.msra.mxu0 0
    %361 = vmatprep.subr.bf16.mxu0 0
    %362 = vmatpush1.bf16.msra.mxu0 0
    %363 = vmatprep.subr.bf16.mxu0 0
    %364 = vmatpush1.bf16.msra.mxu0 0
    %365 = vmatprep.subr.bf16.mxu0 0
    %366 = vmatpush1.bf16.msra.mxu0 0
    %367 = vmatprep.subr.bf16.mxu0 0
    %368 = vmatpush1.bf16.msra.mxu0 0
    %369 = vmatprep.subr.bf16.mxu0 0
    %370 = vmatpush1.bf16.msra.mxu0 0
    %371 = vmatprep.subr.bf16.mxu0 0
    %372 = vmatpush1.bf16.msra.mxu0 0
    %373 = vmatprep.subr.bf16.mxu0 0
    %374 = vmatpush1.bf16.msra.mxu0 %v353
    %375 = vmatprep.subr.bf16.mxu0 0
    %376 = vmatpush2.bf16.msra.mxu0 0
    %377 = vmatprep.subr.bf16.mxu0 0
    %378 = vmatpush2.bf16.msra.mxu0 0
    %379 = vmatprep.subr.bf16.mxu0 0
    %380 = vmatpush2.bf16.msra.mxu0 0
    %381 = vmatprep.subr.bf16.mxu0 0
    %382 = vmatpush2.bf16.msra.mxu0 0
    %383 = vmatprep.subr.bf16.mxu0 0
    %384 = vmatpush2.bf16.msra.mxu0 0
    %385 = vmatprep.subr.bf16.mxu0 0
    %386 = vmatpush2.bf16.msra.mxu0 0
    %387 = vmatprep.subr.bf16.mxu0 0
    %388 = vmatpush2.bf16.msra.mxu0 0
    %389 = vmatprep.subr.bf16.mxu0 0
    %390 = vmatpush2.bf16.msra.mxu0 0
    %391 = vmatprep.mubr.bf16.mxu0 0
    %392 = vmatmul.mubr.bf16.gmra.mxu0 %v357
    %v393 = vpop.f32.mrf.mxu0
    %v394 = vadd.f32 0.0, %v393
    %v395 = vpop.f32.mrf.mxu0
    %v396 = vpop.f32.mrf.mxu0
    %v397 = vpop.f32.mrf.mxu0
    %398 = vdwg.mxu0
    %v399 = vadd.f32 %v348, %v394
    %s400 = scalar_lea.vmem [#allocation3], 28
    %v401 = vld [vmem:[%s400] sm:$0xf]
    %v402 = vunpack.c.l.bf16 %v401
    %v405 = vunpack.c.l.b16 %v345
    %v406 = vunpack.c.l.b16 %v346
    %v407 = vpack.c.b16 %v406, %v405
    %409 = vmatprep.subr.bf16.mxu0 0
    %410 = vmatpush1.bf16.msra.mxu0 0
    %411 = vmatprep.subr.bf16.mxu0 0
    %412 = vmatpush1.bf16.msra.mxu0 0
    %413 = vmatprep.subr.bf16.mxu0 0
    %414 = vmatpush1.bf16.msra.mxu0 0
    %415 = vmatprep.subr.bf16.mxu0 0
    %416 = vmatpush1.bf16.msra.mxu0 0
    %417 = vmatprep.subr.bf16.mxu0 0
    %418 = vmatpush1.bf16.msra.mxu0 0
    %419 = vmatprep.subr.bf16.mxu0 0
    %420 = vmatpush1.bf16.msra.mxu0 0
    %421 = vmatprep.subr.bf16.mxu0 0
    %422 = vmatpush1.bf16.msra.mxu0 0
    %423 = vmatprep.subr.bf16.mxu0 0
    %424 = vmatpush1.bf16.msra.mxu0 %v407
    %425 = vmatprep.subr.bf16.mxu0 0
    %426 = vmatpush2.bf16.msra.mxu0 0
    %427 = vmatprep.subr.bf16.mxu0 0
    %428 = vmatpush2.bf16.msra.mxu0 0
    %429 = vmatprep.subr.bf16.mxu0 0
    %430 = vmatpush2.bf16.msra.mxu0 0
    %431 = vmatprep.subr.bf16.mxu0 0
    %432 = vmatpush2.bf16.msra.mxu0 0
    %433 = vmatprep.subr.bf16.mxu0 0
    %434 = vmatpush2.bf16.msra.mxu0 0
    %435 = vmatprep.subr.bf16.mxu0 0
    %436 = vmatpush2.bf16.msra.mxu0 0
    %437 = vmatprep.subr.bf16.mxu0 0
    %438 = vmatpush2.bf16.msra.mxu0 0
    %439 = vmatprep.subr.bf16.mxu0 0
    %440 = vmatpush2.bf16.msra.mxu0 0
    %441 = vmatprep.mubr.bf16.mxu0 0
    %442 = vmatmul.mubr.bf16.gmra.mxu0 %v357
    %v443 = vpop.f32.mrf.mxu0
    %v444 = vadd.f32 0.0, %v443
    %v445 = vpop.f32.mrf.mxu0
    %v446 = vpop.f32.mrf.mxu0
    %v447 = vpop.f32.mrf.mxu0
    %448 = vdwg.mxu0
    %v449 = vadd.f32 %v402, %v444
    %v450 = vxor.u32 %v399, 2147483648
    %v451 = vmul.f32 %v450, 1.442695
    %v452 = vpow.pop %v451
    %v453 = vadd.f32 %v452, 1.0
    %v454 = vrcp.pop %v453
    %v455 = vmul.f32 1.0, %v454
    %v456 = vtanh.pop %v399
    %v457 = vxor.u32 %v449, 2147483648
    %v458 = vmul.f32 %v457, 1.442695
    %v459 = vpow.pop %v458
    %v460 = vadd.f32 %v459, 1.0
    %v461 = vrcp.pop %v460
    %v462 = vmul.f32 1.0, %v461
    %v463 = vtanh.pop %v449
    %v464 = vmul.f32 %v455, 0.0
    %466 = vrot.lane.b32.xlu0 %v456, 80
    %v467 = vpop.permute.xlu0 %466
    %v469 = vmul.f32 %v455, %v467
    %471 = vrot.lane.b32.xlu0 %v469, 16
    %v472 = vpop.permute.xlu0 %471
    %v474 = vadd.f32 %v464, %v472
    %v475 = vmul.f32 %v462, 0.0
    %477 = vrot.lane.b32.xlu0 %v463, 80
    %v478 = vpop.permute.xlu0 %477
    %v480 = vmul.f32 %v462, %v478
    %482 = vrot.lane.b32.xlu0 %v480, 16
    %v483 = vpop.permute.xlu0 %482
    %v485 = vadd.f32 %v475, %v483
    %v486 = vtanh.pop %v474
    %488 = vrot.lane.b32.xlu0 %v486, 16
    %v489 = vpop.permute.xlu0 %488
    %v491 = vmul.f32 %v455, %v489
    %v492 = vpack.c.bf16 %v491, %v491
    %v493 = vtanh.pop %v485
    %495 = vrot.lane.b32.xlu0 %v493, 16
    %v496 = vpop.permute.xlu0 %495
    %v498 = vmul.f32 %v462, %v496
    %v499 = vpack.c.bf16 %v498, %v498
    %v501 = vunpack.c.l.b16 %v492
    %v502 = vpack.c.b16 %v501, %v501
    %503 = vrot.lane.b32.xlu0 %v502, 96
    %v504 = vpop.permute.xlu0 %503
    %vm506 = vcmask 125952
    %507 = vst.msk [vmem:[#allocation4] sm:$0xf] %vm506, %v504
    %v509 = vunpack.c.l.b16 %v499
    %v510 = vpack.c.b16 %v509, %v509
    %511 = vrot.lane.b32.xlu0 %v510, 96
    %v512 = vpop.permute.xlu0 %511
    %s514 = scalar_lea.vmem [#allocation5], 28
    %515 = vst.msk [vmem:[%s514] sm:$0xf] %vm506, %v512
    %s516 = scalar_lea.vmem [#allocation2], 4
    %v517 = vld [vmem:[%s516] sm:$0xf]
    %v518 = vunpack.c.l.bf16 %v517
    %519 = vrot.lane.b32.xlu0 %v492, 96
    %v520 = vpop.permute.xlu0 %519
    %v522 = vsel %vm355, %v520, 0
    %524 = vmatprep.subr.bf16.mxu0 0
    %525 = vmatpush1.bf16.msra.mxu0 0
    %526 = vmatprep.subr.bf16.mxu0 0
    %527 = vmatpush1.bf16.msra.mxu0 0
    %528 = vmatprep.subr.bf16.mxu0 0
    %529 = vmatpush1.bf16.msra.mxu0 0
    %530 = vmatprep.subr.bf16.mxu0 0
    %531 = vmatpush1.bf16.msra.mxu0 0
    %532 = vmatprep.subr.bf16.mxu0 0
    %533 = vmatpush1.bf16.msra.mxu0 0
    %534 = vmatprep.subr.bf16.mxu0 0
    %535 = vmatpush1.bf16.msra.mxu0 0
    %536 = vmatprep.subr.bf16.mxu0 0
    %537 = vmatpush1.bf16.msra.mxu0 0
    %538 = vmatprep.subr.bf16.mxu0 0
    %539 = vmatpush1.bf16.msra.mxu0 %v353
    %540 = vmatprep.subr.bf16.mxu0 0
    %541 = vmatpush2.bf16.msra.mxu0 0
    %542 = vmatprep.subr.bf16.mxu0 0
    %543 = vmatpush2.bf16.msra.mxu0 0
    %544 = vmatprep.subr.bf16.mxu0 0
    %545 = vmatpush2.bf16.msra.mxu0 0
    %546 = vmatprep.subr.bf16.mxu0 0
    %547 = vmatpush2.bf16.msra.mxu0 0
    %548 = vmatprep.subr.bf16.mxu0 0
    %549 = vmatpush2.bf16.msra.mxu0 0
    %550 = vmatprep.subr.bf16.mxu0 0
    %551 = vmatpush2.bf16.msra.mxu0 0
    %552 = vmatprep.subr.bf16.mxu0 0
    %553 = vmatpush2.bf16.msra.mxu0 0
    %554 = vmatprep.subr.bf16.mxu0 0
    %555 = vmatpush2.bf16.msra.mxu0 0
    %556 = vmatprep.mubr.bf16.mxu0 0
    %557 = vmatmul.mubr.bf16.gmra.mxu0 %v522
    %v558 = vpop.f32.mrf.mxu0
    %v559 = vadd.f32 0.0, %v558
    %v560 = vpop.f32.mrf.mxu0
    %v561 = vpop.f32.mrf.mxu0
    %v562 = vpop.f32.mrf.mxu0
    %563 = vdwg.mxu0
    %v564 = vadd.f32 %v518, %v559
    %s565 = scalar_lea.vmem [#allocation3], 24
    %v566 = vld [vmem:[%s565] sm:$0xf]
    %v567 = vunpack.c.l.bf16 %v566
    %568 = vrot.lane.b32.xlu0 %v499, 96
    %v569 = vpop.permute.xlu0 %568
    %v571 = vsel %vm355, %v569, 0
    %573 = vmatprep.subr.bf16.mxu0 0
    %574 = vmatpush1.bf16.msra.mxu0 0
    %575 = vmatprep.subr.bf16.mxu0 0
    %576 = vmatpush1.bf16.msra.mxu0 0
    %577 = vmatprep.subr.bf16.mxu0 0
    %578 = vmatpush1.bf16.msra.mxu0 0
    %579 = vmatprep.subr.bf16.mxu0 0
    %580 = vmatpush1.bf16.msra.mxu0 0
    %581 = vmatprep.subr.bf16.mxu0 0
    %582 = vmatpush1.bf16.msra.mxu0 0
    %583 = vmatprep.subr.bf16.mxu0 0
    %584 = vmatpush1.bf16.msra.mxu0 0
    %585 = vmatprep.subr.bf16.mxu0 0
    %586 = vmatpush1.bf16.msra.mxu0 0
    %587 = vmatprep.subr.bf16.mxu0 0
    %588 = vmatpush1.bf16.msra.mxu0 %v407
    %589 = vmatprep.subr.bf16.mxu0 0
    %590 = vmatpush2.bf16.msra.mxu0 0
    %591 = vmatprep.subr.bf16.mxu0 0
    %592 = vmatpush2.bf16.msra.mxu0 0
    %593 = vmatprep.subr.bf16.mxu0 0
    %594 = vmatpush2.bf16.msra.mxu0 0
    %595 = vmatprep.subr.bf16.mxu0 0
    %596 = vmatpush2.bf16.msra.mxu0 0
    %597 = vmatprep.subr.bf16.mxu0 0
    %598 = vmatpush2.bf16.msra.mxu0 0
    %599 = vmatprep.subr.bf16.mxu0 0
    %600 = vmatpush2.bf16.msra.mxu0 0
    %601 = vmatprep.subr.bf16.mxu0 0
    %602 = vmatpush2.bf16.msra.mxu0 0
    %603 = vmatprep.subr.bf16.mxu0 0
    %604 = vmatpush2.bf16.msra.mxu0 0
    %605 = vmatprep.mubr.bf16.mxu0 0
    %606 = vmatmul.mubr.bf16.gmra.mxu0 %v571
    %v607 = vpop.f32.mrf.mxu0
    %v608 = vadd.f32 0.0, %v607
    %v609 = vpop.f32.mrf.mxu0
    %v610 = vpop.f32.mrf.mxu0
    %v611 = vpop.f32.mrf.mxu0
    %612 = vdwg.mxu0
    %v613 = vadd.f32 %v567, %v608
    %v614 = vxor.u32 %v564, 2147483648
    %v615 = vmul.f32 %v614, 1.442695
    %v616 = vpow.pop %v615
    %v617 = vadd.f32 %v616, 1.0
    %v618 = vrcp.pop %v617
    %v619 = vmul.f32 1.0, %v618
    %v620 = vtanh.pop %v564
    %v621 = vxor.u32 %v613, 2147483648
    %v622 = vmul.f32 %v621, 1.442695
    %v623 = vpow.pop %v622
    %v624 = vadd.f32 %v623, 1.0
    %v625 = vrcp.pop %v624
    %v626 = vmul.f32 1.0, %v625
    %v627 = vtanh.pop %v613
    %v628 = vmul.f32 %v619, %v474
    %630 = vrot.lane.b32.xlu0 %v620, 80
    %v631 = vpop.permute.xlu0 %630
    %v633 = vmul.f32 %v619, %v631
    %635 = vrot.lane.b32.xlu0 %v633, 16
    %v636 = vpop.permute.xlu0 %635
    %v638 = vadd.f32 %v628, %v636
    %v639 = vmul.f32 %v626, %v485
    %641 = vrot.lane.b32.xlu0 %v627, 80
    %v642 = vpop.permute.xlu0 %641
    %v644 = vmul.f32 %v626, %v642
    %646 = vrot.lane.b32.xlu0 %v644, 16
    %v647 = vpop.permute.xlu0 %646
    %v649 = vadd.f32 %v639, %v647
    %v650 = vtanh.pop %v638
    %652 = vrot.lane.b32.xlu0 %v650, 16
    %v653 = vpop.permute.xlu0 %652
    %v655 = vmul.f32 %v619, %v653
    %v656 = vpack.c.bf16 %v655, %v655
    %v657 = vtanh.pop %v649
    %659 = vrot.lane.b32.xlu0 %v657, 16
    %v660 = vpop.permute.xlu0 %659
    %v662 = vmul.f32 %v626, %v660
    %v663 = vpack.c.bf16 %v662, %v662
    %v665 = vunpack.c.l.b16 %v656
    %v666 = vpack.c.b16 %v665, %v665
    %667 = vrot.lane.b32.xlu0 %v666, 96
    %v668 = vpop.permute.xlu0 %667
    %s670 = scalar_lea.vmem [#allocation4], 4
    %671 = vst.msk [vmem:[%s670] sm:$0xf] %vm506, %v668
    %v673 = vunpack.c.l.b16 %v663
    %v674 = vpack.c.b16 %v673, %v673
    %675 = vrot.lane.b32.xlu0 %v674, 96
    %v676 = vpop.permute.xlu0 %675
    %s678 = scalar_lea.vmem [#allocation5], 24
    %679 = vst.msk [vmem:[%s678] sm:$0xf] %vm506, %v676
    %s680 = scalar_lea.vmem [#allocation2], 8
    %v681 = vld [vmem:[%s680] sm:$0xf]
    %v682 = vunpack.c.l.bf16 %v681
    %683 = vrot.lane.b32.xlu0 %v656, 96
    %v684 = vpop.permute.xlu0 %683
    %v686 = vsel %vm355, %v684, 0
    %688 = vmatprep.subr.bf16.mxu0 0
    %689 = vmatpush1.bf16.msra.mxu0 0
    %690 = vmatprep.subr.bf16.mxu0 0
    %691 = vmatpush1.bf16.msra.mxu0 0
    %692 = vmatprep.subr.bf16.mxu0 0
    %693 = vmatpush1.bf16.msra.mxu0 0
    %694 = vmatprep.subr.bf16.mxu0 0
    %695 = vmatpush1.bf16.msra.mxu0 0
    %696 = vmatprep.subr.bf16.mxu0 0
    %697 = vmatpush1.bf16.msra.mxu0 0
    %698 = vmatprep.subr.bf16.mxu0 0
    %699 = vmatpush1.bf16.msra.mxu0 0
    %700 = vmatprep.subr.bf16.mxu0 0
    %701 = vmatpush1.bf16.msra.mxu0 0
    %702 = vmatprep.subr.bf16.mxu0 0
    %703 = vmatpush1.bf16.msra.mxu0 %v353
    %704 = vmatprep.subr.bf16.mxu0 0
    %705 = vmatpush2.bf16.msra.mxu0 0
    %706 = vmatprep.subr.bf16.mxu0 0
    %707 = vmatpush2.bf16.msra.mxu0 0
    %708 = vmatprep.subr.bf16.mxu0 0
    %709 = vmatpush2.bf16.msra.mxu0 0
    %710 = vmatprep.subr.bf16.mxu0 0
    %711 = vmatpush2.bf16.msra.mxu0 0
    %712 = vmatprep.subr.bf16.mxu0 0
    %713 = vmatpush2.bf16.msra.mxu0 0
    %714 = vmatprep.subr.bf16.mxu0 0
    %715 = vmatpush2.bf16.msra.mxu0 0
    %716 = vmatprep.subr.bf16.mxu0 0
    %717 = vmatpush2.bf16.msra.mxu0 0
    %718 = vmatprep.subr.bf16.mxu0 0
    %719 = vmatpush2.bf16.msra.mxu0 0
    %720 = vmatprep.mubr.bf16.mxu0 0
    %721 = vmatmul.mubr.bf16.gmra.mxu0 %v686
    %v722 = vpop.f32.mrf.mxu0
    %v723 = vadd.f32 0.0, %v722
    %v724 = vpop.f32.mrf.mxu0
    %v725 = vpop.f32.mrf.mxu0
    %v726 = vpop.f32.mrf.mxu0
    %727 = vdwg.mxu0
    %v728 = vadd.f32 %v682, %v723
    %s729 = scalar_lea.vmem [#allocation3], 20
    %v730 = vld [vmem:[%s729] sm:$0xf]
    %v731 = vunpack.c.l.bf16 %v730
    %732 = vrot.lane.b32.xlu0 %v663, 96
    %v733 = vpop.permute.xlu0 %732
    %v735 = vsel %vm355, %v733, 0
    %737 = vmatprep.subr.bf16.mxu0 0
    %738 = vmatpush1.bf16.msra.mxu0 0
    %739 = vmatprep.subr.bf16.mxu0 0
    %740 = vmatpush1.bf16.msra.mxu0 0
    %741 = vmatprep.subr.bf16.mxu0 0
    %742 = vmatpush1.bf16.msra.mxu0 0
    %743 = vmatprep.subr.bf16.mxu0 0
    %744 = vmatpush1.bf16.msra.mxu0 0
    %745 = vmatprep.subr.bf16.mxu0 0
    %746 = vmatpush1.bf16.msra.mxu0 0
    %747 = vmatprep.subr.bf16.mxu0 0
    %748 = vmatpush1.bf16.msra.mxu0 0
    %749 = vmatprep.subr.bf16.mxu0 0
    %750 = vmatpush1.bf16.msra.mxu0 0
    %751 = vmatprep.subr.bf16.mxu0 0
    %752 = vmatpush1.bf16.msra.mxu0 %v407
    %753 = vmatprep.subr.bf16.mxu0 0
    %754 = vmatpush2.bf16.msra.mxu0 0
    %755 = vmatprep.subr.bf16.mxu0 0
    %756 = vmatpush2.bf16.msra.mxu0 0
    %757 = vmatprep.subr.bf16.mxu0 0
    %758 = vmatpush2.bf16.msra.mxu0 0
    %759 = vmatprep.subr.bf16.mxu0 0
    %760 = vmatpush2.bf16.msra.mxu0 0
    %761 = vmatprep.subr.bf16.mxu0 0
    %762 = vmatpush2.bf16.msra.mxu0 0
    %763 = vmatprep.subr.bf16.mxu0 0
    %764 = vmatpush2.bf16.msra.mxu0 0
    %765 = vmatprep.subr.bf16.mxu0 0
    %766 = vmatpush2.bf16.msra.mxu0 0
    %767 = vmatprep.subr.bf16.mxu0 0
    %768 = vmatpush2.bf16.msra.mxu0 0
    %769 = vmatprep.mubr.bf16.mxu0 0
    %770 = vmatmul.mubr.bf16.gmra.mxu0 %v735
    %v771 = vpop.f32.mrf.mxu0
    %v772 = vadd.f32 0.0, %v771
    %v773 = vpop.f32.mrf.mxu0
    %v774 = vpop.f32.mrf.mxu0
    %v775 = vpop.f32.mrf.mxu0
    %776 = vdwg.mxu0
    %v777 = vadd.f32 %v731, %v772
    %v778 = vxor.u32 %v728, 2147483648
    %v779 = vmul.f32 %v778, 1.442695
    %v780 = vpow.pop %v779
    %v781 = vadd.f32 %v780, 1.0
    %v782 = vrcp.pop %v781
    %v783 = vmul.f32 1.0, %v782
    %v784 = vtanh.pop %v728
    %v785 = vxor.u32 %v777, 2147483648
    %v786 = vmul.f32 %v785, 1.442695
    %v787 = vpow.pop %v786
    %v788 = vadd.f32 %v787, 1.0
    %v789 = vrcp.pop %v788
    %v790 = vmul.f32 1.0, %v789
    %v791 = vtanh.pop %v777
    %v792 = vmul.f32 %v783, %v638
    %794 = vrot.lane.b32.xlu0 %v784, 80
    %v795 = vpop.permute.xlu0 %794
    %v797 = vmul.f32 %v783, %v795
    %799 = vrot.lane.b32.xlu0 %v797, 16
    %v800 = vpop.permute.xlu0 %799
    %v802 = vadd.f32 %v792, %v800
    %v803 = vmul.f32 %v790, %v649
    %805 = vrot.lane.b32.xlu0 %v791, 80
    %v806 = vpop.permute.xlu0 %805
    %v808 = vmul.f32 %v790, %v806
    %810 = vrot.lane.b32.xlu0 %v808, 16
    %v811 = vpop.permute.xlu0 %810
    %v813 = vadd.f32 %v803, %v811
    %v814 = vtanh.pop %v802
    %816 = vrot.lane.b32.xlu0 %v814, 16
    %v817 = vpop.permute.xlu0 %816
    %v819 = vmul.f32 %v783, %v817
    %v820 = vpack.c.bf16 %v819, %v819
    %v821 = vtanh.pop %v813
    %823 = vrot.lane.b32.xlu0 %v821, 16
    %v824 = vpop.permute.xlu0 %823
    %v826 = vmul.f32 %v790, %v824
    %v827 = vpack.c.bf16 %v826, %v826
    %v829 = vunpack.c.l.b16 %v820
    %v830 = vpack.c.b16 %v829, %v829
    %831 = vrot.lane.b32.xlu0 %v830, 96
    %v832 = vpop.permute.xlu0 %831
    %s834 = scalar_lea.vmem [#allocation4], 8
    %835 = vst.msk [vmem:[%s834] sm:$0xf] %vm506, %v832
    %v837 = vunpack.c.l.b16 %v827
    %v838 = vpack.c.b16 %v837, %v837
    %839 = vrot.lane.b32.xlu0 %v838, 96
    %v840 = vpop.permute.xlu0 %839
    %s842 = scalar_lea.vmem [#allocation5], 20
    %843 = vst.msk [vmem:[%s842] sm:$0xf] %vm506, %v840
    %s844 = scalar_lea.vmem [#allocation2], 12
    %v845 = vld [vmem:[%s844] sm:$0xf]
    %v846 = vunpack.c.l.bf16 %v845
    %847 = vrot.lane.b32.xlu0 %v820, 96
    %v848 = vpop.permute.xlu0 %847
    %v850 = vsel %vm355, %v848, 0
    %852 = vmatprep.subr.bf16.mxu0 0
    %853 = vmatpush1.bf16.msra.mxu0 0
    %854 = vmatprep.subr.bf16.mxu0 0
    %855 = vmatpush1.bf16.msra.mxu0 0
    %856 = vmatprep.subr.bf16.mxu0 0
    %857 = vmatpush1.bf16.msra.mxu0 0
    %858 = vmatprep.subr.bf16.mxu0 0
    %859 = vmatpush1.bf16.msra.mxu0 0
    %860 = vmatprep.subr.bf16.mxu0 0
    %861 = vmatpush1.bf16.msra.mxu0 0
    %862 = vmatprep.subr.bf16.mxu0 0
    %863 = vmatpush1.bf16.msra.mxu0 0
    %864 = vmatprep.subr.bf16.mxu0 0
    %865 = vmatpush1.bf16.msra.mxu0 0
    %866 = vmatprep.subr.bf16.mxu0 0
    %867 = vmatpush1.bf16.msra.mxu0 %v353
    %868 = vmatprep.subr.bf16.mxu0 0
    %869 = vmatpush2.bf16.msra.mxu0 0
    %870 = vmatprep.subr.bf16.mxu0 0
    %871 = vmatpush2.bf16.msra.mxu0 0
    %872 = vmatprep.subr.bf16.mxu0 0
    %873 = vmatpush2.bf16.msra.mxu0 0
    %874 = vmatprep.subr.bf16.mxu0 0
    %875 = vmatpush2.bf16.msra.mxu0 0
    %876 = vmatprep.subr.bf16.mxu0 0
    %877 = vmatpush2.bf16.msra.mxu0 0
    %878 = vmatprep.subr.bf16.mxu0 0
    %879 = vmatpush2.bf16.msra.mxu0 0
    %880 = vmatprep.subr.bf16.mxu0 0
    %881 = vmatpush2.bf16.msra.mxu0 0
    %882 = vmatprep.subr.bf16.mxu0 0
    %883 = vmatpush2.bf16.msra.mxu0 0
    %884 = vmatprep.mubr.bf16.mxu0 0
    %885 = vmatmul.mubr.bf16.gmra.mxu0 %v850
    %v886 = vpop.f32.mrf.mxu0
    %v887 = vadd.f32 0.0, %v886
    %v888 = vpop.f32.mrf.mxu0
    %v889 = vpop.f32.mrf.mxu0
    %v890 = vpop.f32.mrf.mxu0
    %891 = vdwg.mxu0
    %v892 = vadd.f32 %v846, %v887
    %s893 = scalar_lea.vmem [#allocation3], 16
    %v894 = vld [vmem:[%s893] sm:$0xf]
    %v895 = vunpack.c.l.bf16 %v894
    %896 = vrot.lane.b32.xlu0 %v827, 96
    %v897 = vpop.permute.xlu0 %896
    %v899 = vsel %vm355, %v897, 0
    %901 = vmatprep.subr.bf16.mxu0 0
    %902 = vmatpush1.bf16.msra.mxu0 0
    %903 = vmatprep.subr.bf16.mxu0 0
    %904 = vmatpush1.bf16.msra.mxu0 0
    %905 = vmatprep.subr.bf16.mxu0 0
    %906 = vmatpush1.bf16.msra.mxu0 0
    %907 = vmatprep.subr.bf16.mxu0 0
    %908 = vmatpush1.bf16.msra.mxu0 0
    %909 = vmatprep.subr.bf16.mxu0 0
    %910 = vmatpush1.bf16.msra.mxu0 0
    %911 = vmatprep.subr.bf16.mxu0 0
    %912 = vmatpush1.bf16.msra.mxu0 0
    %913 = vmatprep.subr.bf16.mxu0 0
    %914 = vmatpush1.bf16.msra.mxu0 0
    %915 = vmatprep.subr.bf16.mxu0 0
    %916 = vmatpush1.bf16.msra.mxu0 %v407
    %917 = vmatprep.subr.bf16.mxu0 0
    %918 = vmatpush2.bf16.msra.mxu0 0
    %919 = vmatprep.subr.bf16.mxu0 0
    %920 = vmatpush2.bf16.msra.mxu0 0
    %921 = vmatprep.subr.bf16.mxu0 0
    %922 = vmatpush2.bf16.msra.mxu0 0
    %923 = vmatprep.subr.bf16.mxu0 0
    %924 = vmatpush2.bf16.msra.mxu0 0
    %925 = vmatprep.subr.bf16.mxu0 0
    %926 = vmatpush2.bf16.msra.mxu0 0
    %927 = vmatprep.subr.bf16.mxu0 0
    %928 = vmatpush2.bf16.msra.mxu0 0
    %929 = vmatprep.subr.bf16.mxu0 0
    %930 = vmatpush2.bf16.msra.mxu0 0
    %931 = vmatprep.subr.bf16.mxu0 0
    %932 = vmatpush2.bf16.msra.mxu0 0
    %933 = vmatprep.mubr.bf16.mxu0 0
    %934 = vmatmul.mubr.bf16.gmra.mxu0 %v899
    %v935 = vpop.f32.mrf.mxu0
    %v936 = vadd.f32 0.0, %v935
    %v937 = vpop.f32.mrf.mxu0
    %v938 = vpop.f32.mrf.mxu0
    %v939 = vpop.f32.mrf.mxu0
    %940 = vdwg.mxu0
    %v941 = vadd.f32 %v895, %v936
    %v942 = vxor.u32 %v892, 2147483648
    %v943 = vmul.f32 %v942, 1.442695
    %v944 = vpow.pop %v943
    %v945 = vadd.f32 %v944, 1.0
    %v946 = vrcp.pop %v945
    %v947 = vmul.f32 1.0, %v946
    %v948 = vtanh.pop %v892
    %v949 = vxor.u32 %v941, 2147483648
    %v950 = vmul.f32 %v949, 1.442695
    %v951 = vpow.pop %v950
    %v952 = vadd.f32 %v951, 1.0
    %v953 = vrcp.pop %v952
    %v954 = vmul.f32 1.0, %v953
    %v955 = vtanh.pop %v941
    %v956 = vmul.f32 %v947, %v802
    %958 = vrot.lane.b32.xlu0 %v948, 80
    %v959 = vpop.permute.xlu0 %958
    %v961 = vmul.f32 %v947, %v959
    %963 = vrot.lane.b32.xlu0 %v961, 16
    %v964 = vpop.permute.xlu0 %963
    %v966 = vadd.f32 %v956, %v964
    %v967 = vmul.f32 %v954, %v813
    %969 = vrot.lane.b32.xlu0 %v955, 80
    %v970 = vpop.permute.xlu0 %969
    %v972 = vmul.f32 %v954, %v970
    %974 = vrot.lane.b32.xlu0 %v972, 16
    %v975 = vpop.permute.xlu0 %974
    %v977 = vadd.f32 %v967, %v975
    %v978 = vtanh.pop %v966
    %980 = vrot.lane.b32.xlu0 %v978, 16
    %v981 = vpop.permute.xlu0 %980
    %v983 = vmul.f32 %v947, %v981
    %v984 = vpack.c.bf16 %v983, %v983
    %v985 = vtanh.pop %v977
    %987 = vrot.lane.b32.xlu0 %v985, 16
    %v988 = vpop.permute.xlu0 %987
    %v990 = vmul.f32 %v954, %v988
    %v991 = vpack.c.bf16 %v990, %v990
    %v993 = vunpack.c.l.b16 %v984
    %v994 = vpack.c.b16 %v993, %v993
    %995 = vrot.lane.b32.xlu0 %v994, 96
    %v996 = vpop.permute.xlu0 %995
    %s998 = scalar_lea.vmem [#allocation4], 12
    %999 = vst.msk [vmem:[%s998] sm:$0xf] %vm506, %v996
    %v1001 = vunpack.c.l.b16 %v991
    %v1002 = vpack.c.b16 %v1001, %v1001
    %1003 = vrot.lane.b32.xlu0 %v1002, 96
    %v1004 = vpop.permute.xlu0 %1003
    %s1006 = scalar_lea.vmem [#allocation5], 16
    %1007 = vst.msk [vmem:[%s1006] sm:$0xf] %vm506, %v1004
    %s1008 = scalar_lea.vmem [#allocation2], 16
    %v1009 = vld [vmem:[%s1008] sm:$0xf]
    %v1010 = vunpack.c.l.bf16 %v1009
    %1011 = vrot.lane.b32.xlu0 %v984, 96
    %v1012 = vpop.permute.xlu0 %1011
    %v1014 = vsel %vm355, %v1012, 0
    %1016 = vmatprep.subr.bf16.mxu0 0
    %1017 = vmatpush1.bf16.msra.mxu0 0
    %1018 = vmatprep.subr.bf16.mxu0 0
    %1019 = vmatpush1.bf16.msra.mxu0 0
    %1020 = vmatprep.subr.bf16.mxu0 0
    %1021 = vmatpush1.bf16.msra.mxu0 0
    %1022 = vmatprep.subr.bf16.mxu0 0
    %1023 = vmatpush1.bf16.msra.mxu0 0
    %1024 = vmatprep.subr.bf16.mxu0 0
    %1025 = vmatpush1.bf16.msra.mxu0 0
    %1026 = vmatprep.subr.bf16.mxu0 0
    %1027 = vmatpush1.bf16.msra.mxu0 0
    %1028 = vmatprep.subr.bf16.mxu0 0
    %1029 = vmatpush1.bf16.msra.mxu0 0
    %1030 = vmatprep.subr.bf16.mxu0 0
    %1031 = vmatpush1.bf16.msra.mxu0 %v353
    %1032 = vmatprep.subr.bf16.mxu0 0
    %1033 = vmatpush2.bf16.msra.mxu0 0
    %1034 = vmatprep.subr.bf16.mxu0 0
    %1035 = vmatpush2.bf16.msra.mxu0 0
    %1036 = vmatprep.subr.bf16.mxu0 0
    %1037 = vmatpush2.bf16.msra.mxu0 0
    %1038 = vmatprep.subr.bf16.mxu0 0
    %1039 = vmatpush2.bf16.msra.mxu0 0
    %1040 = vmatprep.subr.bf16.mxu0 0
    %1041 = vmatpush2.bf16.msra.mxu0 0
    %1042 = vmatprep.subr.bf16.mxu0 0
    %1043 = vmatpush2.bf16.msra.mxu0 0
    %1044 = vmatprep.subr.bf16.mxu0 0
    %1045 = vmatpush2.bf16.msra.mxu0 0
    %1046 = vmatprep.subr.bf16.mxu0 0
    %1047 = vmatpush2.bf16.msra.mxu0 0
    %1048 = vmatprep.mubr.bf16.mxu0 0
    %1049 = vmatmul.mubr.bf16.gmra.mxu0 %v1014
    %v1050 = vpop.f32.mrf.mxu0
    %v1051 = vadd.f32 0.0, %v1050
    %v1052 = vpop.f32.mrf.mxu0
    %v1053 = vpop.f32.mrf.mxu0
    %v1054 = vpop.f32.mrf.mxu0
    %1055 = vdwg.mxu0
    %v1056 = vadd.f32 %v1010, %v1051
    %s1057 = scalar_lea.vmem [#allocation3], 12
    %v1058 = vld [vmem:[%s1057] sm:$0xf]
    %v1059 = vunpack.c.l.bf16 %v1058
    %1060 = vrot.lane.b32.xlu0 %v991, 96
    %v1061 = vpop.permute.xlu0 %1060
    %v1063 = vsel %vm355, %v1061, 0
    %1065 = vmatprep.subr.bf16.mxu0 0
    %1066 = vmatpush1.bf16.msra.mxu0 0
    %1067 = vmatprep.subr.bf16.mxu0 0
    %1068 = vmatpush1.bf16.msra.mxu0 0
    %1069 = vmatprep.subr.bf16.mxu0 0
    %1070 = vmatpush1.bf16.msra.mxu0 0
    %1071 = vmatprep.subr.bf16.mxu0 0
    %1072 = vmatpush1.bf16.msra.mxu0 0
    %1073 = vmatprep.subr.bf16.mxu0 0
    %1074 = vmatpush1.bf16.msra.mxu0 0
    %1075 = vmatprep.subr.bf16.mxu0 0
    %1076 = vmatpush1.bf16.msra.mxu0 0
    %1077 = vmatprep.subr.bf16.mxu0 0
    %1078 = vmatpush1.bf16.msra.mxu0 0
    %1079 = vmatprep.subr.bf16.mxu0 0
    %1080 = vmatpush1.bf16.msra.mxu0 %v407
    %1081 = vmatprep.subr.bf16.mxu0 0
    %1082 = vmatpush2.bf16.msra.mxu0 0
    %1083 = vmatprep.subr.bf16.mxu0 0
    %1084 = vmatpush2.bf16.msra.mxu0 0
    %1085 = vmatprep.subr.bf16.mxu0 0
    %1086 = vmatpush2.bf16.msra.mxu0 0
    %1087 = vmatprep.subr.bf16.mxu0 0
    %1088 = vmatpush2.bf16.msra.mxu0 0
    %1089 = vmatprep.subr.bf16.mxu0 0
    %1090 = vmatpush2.bf16.msra.mxu0 0
    %1091 = vmatprep.subr.bf16.mxu0 0
    %1092 = vmatpush2.bf16.msra.mxu0 0
    %1093 = vmatprep.subr.bf16.mxu0 0
    %1094 = vmatpush2.bf16.msra.mxu0 0
    %1095 = vmatprep.subr.bf16.mxu0 0
    %1096 = vmatpush2.bf16.msra.mxu0 0
    %1097 = vmatprep.mubr.bf16.mxu0 0
    %1098 = vmatmul.mubr.bf16.gmra.mxu0 %v1063
    %v1099 = vpop.f32.mrf.mxu0
    %v1100 = vadd.f32 0.0, %v1099
    %v1101 = vpop.f32.mrf.mxu0
    %v1102 = vpop.f32.mrf.mxu0
    %v1103 = vpop.f32.mrf.mxu0
    %1104 = vdwg.mxu0
    %v1105 = vadd.f32 %v1059, %v1100
    %v1106 = vxor.u32 %v1056, 2147483648
    %v1107 = vmul.f32 %v1106, 1.442695
    %v1108 = vpow.pop %v1107
    %v1109 = vadd.f32 %v1108, 1.0
    %v1110 = vrcp.pop %v1109
    %v1111 = vmul.f32 1.0, %v1110
    %v1112 = vtanh.pop %v1056
    %v1113 = vxor.u32 %v1105, 2147483648
    %v1114 = vmul.f32 %v1113, 1.442695
    %v1115 = vpow.pop %v1114
    %v1116 = vadd.f32 %v1115, 1.0
    %v1117 = vrcp.pop %v1116
    %v1118 = vmul.f32 1.0, %v1117
    %v1119 = vtanh.pop %v1105
    %v1120 = vmul.f32 %v1111, %v966
    %1122 = vrot.lane.b32.xlu0 %v1112, 80
    %v1123 = vpop.permute.xlu0 %1122
    %v1125 = vmul.f32 %v1111, %v1123
    %1127 = vrot.lane.b32.xlu0 %v1125, 16
    %v1128 = vpop.permute.xlu0 %1127
    %v1130 = vadd.f32 %v1120, %v1128
    %v1131 = vmul.f32 %v1118, %v977
    %1133 = vrot.lane.b32.xlu0 %v1119, 80
    %v1134 = vpop.permute.xlu0 %1133
    %v1136 = vmul.f32 %v1118, %v1134
    %1138 = vrot.lane.b32.xlu0 %v1136, 16
    %v1139 = vpop.permute.xlu0 %1138
    %v1141 = vadd.f32 %v1131, %v1139
    %v1142 = vtanh.pop %v1130
    %1144 = vrot.lane.b32.xlu0 %v1142, 16
    %v1145 = vpop.permute.xlu0 %1144
    %v1147 = vmul.f32 %v1111, %v1145
    %v1148 = vpack.c.bf16 %v1147, %v1147
    %v1149 = vtanh.pop %v1141
    %1151 = vrot.lane.b32.xlu0 %v1149, 16
    %v1152 = vpop.permute.xlu0 %1151
    %v1154 = vmul.f32 %v1118, %v1152
    %v1155 = vpack.c.bf16 %v1154, %v1154
    %v1157 = vunpack.c.l.b16 %v1148
    %v1158 = vpack.c.b16 %v1157, %v1157
    %1159 = vrot.lane.b32.xlu0 %v1158, 96
    %v1160 = vpop.permute.xlu0 %1159
    %s1162 = scalar_lea.vmem [#allocation4], 16
    %1163 = vst.msk [vmem:[%s1162] sm:$0xf] %vm506, %v1160
    %v1165 = vunpack.c.l.b16 %v1155
    %v1166 = vpack.c.b16 %v1165, %v1165
    %1167 = vrot.lane.b32.xlu0 %v1166, 96
    %v1168 = vpop.permute.xlu0 %1167
    %s1170 = scalar_lea.vmem [#allocation5], 12
    %1171 = vst.msk [vmem:[%s1170] sm:$0xf] %vm506, %v1168
    %s1172 = scalar_lea.vmem [#allocation2], 20
    %v1173 = vld [vmem:[%s1172] sm:$0xf]
    %v1174 = vunpack.c.l.bf16 %v1173
    %1175 = vrot.lane.b32.xlu0 %v1148, 96
    %v1176 = vpop.permute.xlu0 %1175
    %v1178 = vsel %vm355, %v1176, 0
    %1180 = vmatprep.subr.bf16.mxu0 0
    %1181 = vmatpush1.bf16.msra.mxu0 0
    %1182 = vmatprep.subr.bf16.mxu0 0
    %1183 = vmatpush1.bf16.msra.mxu0 0
    %1184 = vmatprep.subr.bf16.mxu0 0
    %1185 = vmatpush1.bf16.msra.mxu0 0
    %1186 = vmatprep.subr.bf16.mxu0 0
    %1187 = vmatpush1.bf16.msra.mxu0 0
    %1188 = vmatprep.subr.bf16.mxu0 0
    %1189 = vmatpush1.bf16.msra.mxu0 0
    %1190 = vmatprep.subr.bf16.mxu0 0
    %1191 = vmatpush1.bf16.msra.mxu0 0
    %1192 = vmatprep.subr.bf16.mxu0 0
    %1193 = vmatpush1.bf16.msra.mxu0 0
    %1194 = vmatprep.subr.bf16.mxu0 0
    %1195 = vmatpush1.bf16.msra.mxu0 %v353
    %1196 = vmatprep.subr.bf16.mxu0 0
    %1197 = vmatpush2.bf16.msra.mxu0 0
    %1198 = vmatprep.subr.bf16.mxu0 0
    %1199 = vmatpush2.bf16.msra.mxu0 0
    %1200 = vmatprep.subr.bf16.mxu0 0
    %1201 = vmatpush2.bf16.msra.mxu0 0
    %1202 = vmatprep.subr.bf16.mxu0 0
    %1203 = vmatpush2.bf16.msra.mxu0 0
    %1204 = vmatprep.subr.bf16.mxu0 0
    %1205 = vmatpush2.bf16.msra.mxu0 0
    %1206 = vmatprep.subr.bf16.mxu0 0
    %1207 = vmatpush2.bf16.msra.mxu0 0
    %1208 = vmatprep.subr.bf16.mxu0 0
    %1209 = vmatpush2.bf16.msra.mxu0 0
    %1210 = vmatprep.subr.bf16.mxu0 0
    %1211 = vmatpush2.bf16.msra.mxu0 0
    %1212 = vmatprep.mubr.bf16.mxu0 0
    %1213 = vmatmul.mubr.bf16.gmra.mxu0 %v1178
    %v1214 = vpop.f32.mrf.mxu0
    %v1215 = vadd.f32 0.0, %v1214
    %v1216 = vpop.f32.mrf.mxu0
    %v1217 = vpop.f32.mrf.mxu0
    %v1218 = vpop.f32.mrf.mxu0
    %1219 = vdwg.mxu0
    %v1220 = vadd.f32 %v1174, %v1215
    %s1221 = scalar_lea.vmem [#allocation3], 8
    %v1222 = vld [vmem:[%s1221] sm:$0xf]
    %v1223 = vunpack.c.l.bf16 %v1222
    %1224 = vrot.lane.b32.xlu0 %v1155, 96
    %v1225 = vpop.permute.xlu0 %1224
    %v1227 = vsel %vm355, %v1225, 0
    %1229 = vmatprep.subr.bf16.mxu0 0
    %1230 = vmatpush1.bf16.msra.mxu0 0
    %1231 = vmatprep.subr.bf16.mxu0 0
    %1232 = vmatpush1.bf16.msra.mxu0 0
    %1233 = vmatprep.subr.bf16.mxu0 0
    %1234 = vmatpush1.bf16.msra.mxu0 0
    %1235 = vmatprep.subr.bf16.mxu0 0
    %1236 = vmatpush1.bf16.msra.mxu0 0
    %1237 = vmatprep.subr.bf16.mxu0 0
    %1238 = vmatpush1.bf16.msra.mxu0 0
    %1239 = vmatprep.subr.bf16.mxu0 0
    %1240 = vmatpush1.bf16.msra.mxu0 0
    %1241 = vmatprep.subr.bf16.mxu0 0
    %1242 = vmatpush1.bf16.msra.mxu0 0
    %1243 = vmatprep.subr.bf16.mxu0 0
    %1244 = vmatpush1.bf16.msra.mxu0 %v407
    %1245 = vmatprep.subr.bf16.mxu0 0
    %1246 = vmatpush2.bf16.msra.mxu0 0
    %1247 = vmatprep.subr.bf16.mxu0 0
    %1248 = vmatpush2.bf16.msra.mxu0 0
    %1249 = vmatprep.subr.bf16.mxu0 0
    %1250 = vmatpush2.bf16.msra.mxu0 0
    %1251 = vmatprep.subr.bf16.mxu0 0
    %1252 = vmatpush2.bf16.msra.mxu0 0
    %1253 = vmatprep.subr.bf16.mxu0 0
    %1254 = vmatpush2.bf16.msra.mxu0 0
    %1255 = vmatprep.subr.bf16.mxu0 0
    %1256 = vmatpush2.bf16.msra.mxu0 0
    %1257 = vmatprep.subr.bf16.mxu0 0
    %1258 = vmatpush2.bf16.msra.mxu0 0
    %1259 = vmatprep.subr.bf16.mxu0 0
    %1260 = vmatpush2.bf16.msra.mxu0 0
    %1261 = vmatprep.mubr.bf16.mxu0 0
    %1262 = vmatmul.mubr.bf16.gmra.mxu0 %v1227
    %v1263 = vpop.f32.mrf.mxu0
    %v1264 = vadd.f32 0.0, %v1263
    %v1265 = vpop.f32.mrf.mxu0
    %v1266 = vpop.f32.mrf.mxu0
    %v1267 = vpop.f32.mrf.mxu0
    %1268 = vdwg.mxu0
    %v1269 = vadd.f32 %v1223, %v1264
    %v1270 = vxor.u32 %v1220, 2147483648
    %v1271 = vmul.f32 %v1270, 1.442695
    %v1272 = vpow.pop %v1271
    %v1273 = vadd.f32 %v1272, 1.0
    %v1274 = vrcp.pop %v1273
    %v1275 = vmul.f32 1.0, %v1274
    %v1276 = vtanh.pop %v1220
    %v1277 = vxor.u32 %v1269, 2147483648
    %v1278 = vmul.f32 %v1277, 1.442695
    %v1279 = vpow.pop %v1278
    %v1280 = vadd.f32 %v1279, 1.0
    %v1281 = vrcp.pop %v1280
    %v1282 = vmul.f32 1.0, %v1281
    %v1283 = vtanh.pop %v1269
    %v1284 = vmul.f32 %v1275, %v1130
    %1286 = vrot.lane.b32.xlu0 %v1276, 80
    %v1287 = vpop.permute.xlu0 %1286
    %v1289 = vmul.f32 %v1275, %v1287
    %1291 = vrot.lane.b32.xlu0 %v1289, 16
    %v1292 = vpop.permute.xlu0 %1291
    %v1294 = vadd.f32 %v1284, %v1292
    %v1295 = vmul.f32 %v1282, %v1141
    %1297 = vrot.lane.b32.xlu0 %v1283, 80
    %v1298 = vpop.permute.xlu0 %1297
    %v1300 = vmul.f32 %v1282, %v1298
    %1302 = vrot.lane.b32.xlu0 %v1300, 16
    %v1303 = vpop.permute.xlu0 %1302
    %v1305 = vadd.f32 %v1295, %v1303
    %v1306 = vtanh.pop %v1294
    %1308 = vrot.lane.b32.xlu0 %v1306, 16
    %v1309 = vpop.permute.xlu0 %1308
    %v1311 = vmul.f32 %v1275, %v1309
    %v1312 = vpack.c.bf16 %v1311, %v1311
    %v1313 = vtanh.pop %v1305
    %1315 = vrot.lane.b32.xlu0 %v1313, 16
    %v1316 = vpop.permute.xlu0 %1315
    %v1318 = vmul.f32 %v1282, %v1316
    %v1319 = vpack.c.bf16 %v1318, %v1318
    %v1321 = vunpack.c.l.b16 %v1312
    %v1322 = vpack.c.b16 %v1321, %v1321
    %1323 = vrot.lane.b32.xlu0 %v1322, 96
    %v1324 = vpop.permute.xlu0 %1323
    %s1326 = scalar_lea.vmem [#allocation4], 20
    %1327 = vst.msk [vmem:[%s1326] sm:$0xf] %vm506, %v1324
    %v1329 = vunpack.c.l.b16 %v1319
    %v1330 = vpack.c.b16 %v1329, %v1329
    %1331 = vrot.lane.b32.xlu0 %v1330, 96
    %v1332 = vpop.permute.xlu0 %1331
    %s1334 = scalar_lea.vmem [#allocation5], 8
    %1335 = vst.msk [vmem:[%s1334] sm:$0xf] %vm506, %v1332
    %s1336 = scalar_lea.vmem [#allocation2], 24
    %v1337 = vld [vmem:[%s1336] sm:$0xf]
    %v1338 = vunpack.c.l.bf16 %v1337
    %1339 = vrot.lane.b32.xlu0 %v1312, 96
    %v1340 = vpop.permute.xlu0 %1339
    %v1342 = vsel %vm355, %v1340, 0
    %1344 = vmatprep.subr.bf16.mxu0 0
    %1345 = vmatpush1.bf16.msra.mxu0 0
    %1346 = vmatprep.subr.bf16.mxu0 0
    %1347 = vmatpush1.bf16.msra.mxu0 0
    %1348 = vmatprep.subr.bf16.mxu0 0
    %1349 = vmatpush1.bf16.msra.mxu0 0
    %1350 = vmatprep.subr.bf16.mxu0 0
    %1351 = vmatpush1.bf16.msra.mxu0 0
    %1352 = vmatprep.subr.bf16.mxu0 0
    %1353 = vmatpush1.bf16.msra.mxu0 0
    %1354 = vmatprep.subr.bf16.mxu0 0
    %1355 = vmatpush1.bf16.msra.mxu0 0
    %1356 = vmatprep.subr.bf16.mxu0 0
    %1357 = vmatpush1.bf16.msra.mxu0 0
    %1358 = vmatprep.subr.bf16.mxu0 0
    %1359 = vmatpush1.bf16.msra.mxu0 %v353
    %1360 = vmatprep.subr.bf16.mxu0 0
    %1361 = vmatpush2.bf16.msra.mxu0 0
    %1362 = vmatprep.subr.bf16.mxu0 0
    %1363 = vmatpush2.bf16.msra.mxu0 0
    %1364 = vmatprep.subr.bf16.mxu0 0
    %1365 = vmatpush2.bf16.msra.mxu0 0
    %1366 = vmatprep.subr.bf16.mxu0 0
    %1367 = vmatpush2.bf16.msra.mxu0 0
    %1368 = vmatprep.subr.bf16.mxu0 0
    %1369 = vmatpush2.bf16.msra.mxu0 0
    %1370 = vmatprep.subr.bf16.mxu0 0
    %1371 = vmatpush2.bf16.msra.mxu0 0
    %1372 = vmatprep.subr.bf16.mxu0 0
    %1373 = vmatpush2.bf16.msra.mxu0 0
    %1374 = vmatprep.subr.bf16.mxu0 0
    %1375 = vmatpush2.bf16.msra.mxu0 0
    %1376 = vmatprep.mubr.bf16.mxu0 0
    %1377 = vmatmul.mubr.bf16.gmra.mxu0 %v1342
    %v1378 = vpop.f32.mrf.mxu0
    %v1379 = vadd.f32 0.0, %v1378
    %v1380 = vpop.f32.mrf.mxu0
    %v1381 = vpop.f32.mrf.mxu0
    %v1382 = vpop.f32.mrf.mxu0
    %1383 = vdwg.mxu0
    %v1384 = vadd.f32 %v1338, %v1379
    %s1385 = scalar_lea.vmem [#allocation3], 4
    %v1386 = vld [vmem:[%s1385] sm:$0xf]
    %v1387 = vunpack.c.l.bf16 %v1386
    %1388 = vrot.lane.b32.xlu0 %v1319, 96
    %v1389 = vpop.permute.xlu0 %1388
    %v1391 = vsel %vm355, %v1389, 0
    %1393 = vmatprep.subr.bf16.mxu0 0
    %1394 = vmatpush1.bf16.msra.mxu0 0
    %1395 = vmatprep.subr.bf16.mxu0 0
    %1396 = vmatpush1.bf16.msra.mxu0 0
    %1397 = vmatprep.subr.bf16.mxu0 0
    %1398 = vmatpush1.bf16.msra.mxu0 0
    %1399 = vmatprep.subr.bf16.mxu0 0
    %1400 = vmatpush1.bf16.msra.mxu0 0
    %1401 = vmatprep.subr.bf16.mxu0 0
    %1402 = vmatpush1.bf16.msra.mxu0 0
    %1403 = vmatprep.subr.bf16.mxu0 0
    %1404 = vmatpush1.bf16.msra.mxu0 0
    %1405 = vmatprep.subr.bf16.mxu0 0
    %1406 = vmatpush1.bf16.msra.mxu0 0
    %1407 = vmatprep.subr.bf16.mxu0 0
    %1408 = vmatpush1.bf16.msra.mxu0 %v407
    %1409 = vmatprep.subr.bf16.mxu0 0
    %1410 = vmatpush2.bf16.msra.mxu0 0
    %1411 = vmatprep.subr.bf16.mxu0 0
    %1412 = vmatpush2.bf16.msra.mxu0 0
    %1413 = vmatprep.subr.bf16.mxu0 0
    %1414 = vmatpush2.bf16.msra.mxu0 0
    %1415 = vmatprep.subr.bf16.mxu0 0
    %1416 = vmatpush2.bf16.msra.mxu0 0
    %1417 = vmatprep.subr.bf16.mxu0 0
    %1418 = vmatpush2.bf16.msra.mxu0 0
    %1419 = vmatprep.subr.bf16.mxu0 0
    %1420 = vmatpush2.bf16.msra.mxu0 0
    %1421 = vmatprep.subr.bf16.mxu0 0
    %1422 = vmatpush2.bf16.msra.mxu0 0
    %1423 = vmatprep.subr.bf16.mxu0 0
    %1424 = vmatpush2.bf16.msra.mxu0 0
    %1425 = vmatprep.mubr.bf16.mxu0 0
    %1426 = vmatmul.mubr.bf16.gmra.mxu0 %v1391
    %v1427 = vpop.f32.mrf.mxu0
    %v1428 = vadd.f32 0.0, %v1427
    %v1429 = vpop.f32.mrf.mxu0
    %v1430 = vpop.f32.mrf.mxu0
    %v1431 = vpop.f32.mrf.mxu0
    %1432 = vdwg.mxu0
    %v1433 = vadd.f32 %v1387, %v1428
    %v1434 = vxor.u32 %v1384, 2147483648
    %v1435 = vmul.f32 %v1434, 1.442695
    %v1436 = vpow.pop %v1435
    %v1437 = vadd.f32 %v1436, 1.0
    %v1438 = vrcp.pop %v1437
    %v1439 = vmul.f32 1.0, %v1438
    %v1440 = vtanh.pop %v1384
    %v1441 = vxor.u32 %v1433, 2147483648
    %v1442 = vmul.f32 %v1441, 1.442695
    %v1443 = vpow.pop %v1442
    %v1444 = vadd.f32 %v1443, 1.0
    %v1445 = vrcp.pop %v1444
    %v1446 = vmul.f32 1.0, %v1445
    %v1447 = vtanh.pop %v1433
    %v1448 = vmul.f32 %v1439, %v1294
    %1450 = vrot.lane.b32.xlu0 %v1440, 80
    %v1451 = vpop.permute.xlu0 %1450
    %v1453 = vmul.f32 %v1439, %v1451
    %1455 = vrot.lane.b32.xlu0 %v1453, 16
    %v1456 = vpop.permute.xlu0 %1455
    %v1458 = vadd.f32 %v1448, %v1456
    %v1459 = vmul.f32 %v1446, %v1305
    %1461 = vrot.lane.b32.xlu0 %v1447, 80
    %v1462 = vpop.permute.xlu0 %1461
    %v1464 = vmul.f32 %v1446, %v1462
    %1466 = vrot.lane.b32.xlu0 %v1464, 16
    %v1467 = vpop.permute.xlu0 %1466
    %v1469 = vadd.f32 %v1459, %v1467
    %v1470 = vtanh.pop %v1458
    %1472 = vrot.lane.b32.xlu0 %v1470, 16
    %v1473 = vpop.permute.xlu0 %1472
    %v1475 = vmul.f32 %v1439, %v1473
    %v1476 = vpack.c.bf16 %v1475, %v1475
    %v1477 = vtanh.pop %v1469
    %1479 = vrot.lane.b32.xlu0 %v1477, 16
    %v1480 = vpop.permute.xlu0 %1479
    %v1482 = vmul.f32 %v1446, %v1480
    %v1483 = vpack.c.bf16 %v1482, %v1482
    %v1485 = vunpack.c.l.b16 %v1476
    %v1486 = vpack.c.b16 %v1485, %v1485
    %1487 = vrot.lane.b32.xlu0 %v1486, 96
    %v1488 = vpop.permute.xlu0 %1487
    %s1490 = scalar_lea.vmem [#allocation4], 24
    %1491 = vst.msk [vmem:[%s1490] sm:$0xf] %vm506, %v1488
    %v1493 = vunpack.c.l.b16 %v1483
    %v1494 = vpack.c.b16 %v1493, %v1493
    %1495 = vrot.lane.b32.xlu0 %v1494, 96
    %v1496 = vpop.permute.xlu0 %1495
    %s1498 = scalar_lea.vmem [#allocation5], 4
    %1499 = vst.msk [vmem:[%s1498] sm:$0xf] %vm506, %v1496
    %s1500 = scalar_lea.vmem [#allocation2], 28
    %v1501 = vld [vmem:[%s1500] sm:$0xf]
    %v1502 = vunpack.c.l.bf16 %v1501
    %1503 = vrot.lane.b32.xlu0 %v1476, 96
    %v1504 = vpop.permute.xlu0 %1503
    %v1506 = vsel %vm355, %v1504, 0
    %1508 = vmatprep.subr.bf16.mxu0 0
    %1509 = vmatpush1.bf16.msra.mxu0 0
    %1510 = vmatprep.subr.bf16.mxu0 0
    %1511 = vmatpush1.bf16.msra.mxu0 0
    %1512 = vmatprep.subr.bf16.mxu0 0
    %1513 = vmatpush1.bf16.msra.mxu0 0
    %1514 = vmatprep.subr.bf16.mxu0 0
    %1515 = vmatpush1.bf16.msra.mxu0 0
    %1516 = vmatprep.subr.bf16.mxu0 0
    %1517 = vmatpush1.bf16.msra.mxu0 0
    %1518 = vmatprep.subr.bf16.mxu0 0
    %1519 = vmatpush1.bf16.msra.mxu0 0
    %1520 = vmatprep.subr.bf16.mxu0 0
    %1521 = vmatpush1.bf16.msra.mxu0 0
    %1522 = vmatprep.subr.bf16.mxu0 0
    %1523 = vmatpush1.bf16.msra.mxu0 %v353
    %1524 = vmatprep.subr.bf16.mxu0 0
    %1525 = vmatpush2.bf16.msra.mxu0 0
    %1526 = vmatprep.subr.bf16.mxu0 0
    %1527 = vmatpush2.bf16.msra.mxu0 0
    %1528 = vmatprep.subr.bf16.mxu0 0
    %1529 = vmatpush2.bf16.msra.mxu0 0
    %1530 = vmatprep.subr.bf16.mxu0 0
    %1531 = vmatpush2.bf16.msra.mxu0 0
    %1532 = vmatprep.subr.bf16.mxu0 0
    %1533 = vmatpush2.bf16.msra.mxu0 0
    %1534 = vmatprep.subr.bf16.mxu0 0
    %1535 = vmatpush2.bf16.msra.mxu0 0
    %1536 = vmatprep.subr.bf16.mxu0 0
    %1537 = vmatpush2.bf16.msra.mxu0 0
    %1538 = vmatprep.subr.bf16.mxu0 0
    %1539 = vmatpush2.bf16.msra.mxu0 0
    %1540 = vmatprep.mubr.bf16.mxu0 0
    %1541 = vmatmul.mubr.bf16.gmra.mxu0 %v1506
    %v1542 = vpop.f32.mrf.mxu0
    %v1543 = vadd.f32 0.0, %v1542
    %v1544 = vpop.f32.mrf.mxu0
    %v1545 = vpop.f32.mrf.mxu0
    %v1546 = vpop.f32.mrf.mxu0
    %1547 = vdwg.mxu0
    %v1548 = vadd.f32 %v1502, %v1543
    %v1549 = vld [vmem:[#allocation3] sm:$0xf]
    %v1550 = vunpack.c.l.bf16 %v1549
    %1551 = vrot.lane.b32.xlu0 %v1483, 96
    %v1552 = vpop.permute.xlu0 %1551
    %v1554 = vsel %vm355, %v1552, 0
    %1556 = vmatprep.subr.bf16.mxu0 0
    %1557 = vmatpush1.bf16.msra.mxu0 0
    %1558 = vmatprep.subr.bf16.mxu0 0
    %1559 = vmatpush1.bf16.msra.mxu0 0
    %1560 = vmatprep.subr.bf16.mxu0 0
    %1561 = vmatpush1.bf16.msra.mxu0 0
    %1562 = vmatprep.subr.bf16.mxu0 0
    %1563 = vmatpush1.bf16.msra.mxu0 0
    %1564 = vmatprep.subr.bf16.mxu0 0
    %1565 = vmatpush1.bf16.msra.mxu0 0
    %1566 = vmatprep.subr.bf16.mxu0 0
    %1567 = vmatpush1.bf16.msra.mxu0 0
    %1568 = vmatprep.subr.bf16.mxu0 0
    %1569 = vmatpush1.bf16.msra.mxu0 0
    %1570 = vmatprep.subr.bf16.mxu0 0
    %1571 = vmatpush1.bf16.msra.mxu0 %v407
    %1572 = vmatprep.subr.bf16.mxu0 0
    %1573 = vmatpush2.bf16.msra.mxu0 0
    %1574 = vmatprep.subr.bf16.mxu0 0
    %1575 = vmatpush2.bf16.msra.mxu0 0
    %1576 = vmatprep.subr.bf16.mxu0 0
    %1577 = vmatpush2.bf16.msra.mxu0 0
    %1578 = vmatprep.subr.bf16.mxu0 0
    %1579 = vmatpush2.bf16.msra.mxu0 0
    %1580 = vmatprep.subr.bf16.mxu0 0
    %1581 = vmatpush2.bf16.msra.mxu0 0
    %1582 = vmatprep.subr.bf16.mxu0 0
    %1583 = vmatpush2.bf16.msra.mxu0 0
    %1584 = vmatprep.subr.bf16.mxu0 0
    %1585 = vmatpush2.bf16.msra.mxu0 0
    %1586 = vmatprep.subr.bf16.mxu0 0
    %1587 = vmatpush2.bf16.msra.mxu0 0
    %1588 = vmatprep.mubr.bf16.mxu0 0
    %1589 = vmatmul.mubr.bf16.gmra.mxu0 %v1554
    %v1590 = vpop.f32.mrf.mxu0
    %v1591 = vadd.f32 0.0, %v1590
    %v1592 = vpop.f32.mrf.mxu0
    %v1593 = vpop.f32.mrf.mxu0
    %v1594 = vpop.f32.mrf.mxu0
    %1595 = vdwg.mxu0
    %v1596 = vadd.f32 %v1550, %v1591
    %v1597 = vxor.u32 %v1548, 2147483648
    %v1598 = vmul.f32 %v1597, 1.442695
    %v1599 = vpow.pop %v1598
    %v1600 = vadd.f32 %v1599, 1.0
    %v1601 = vrcp.pop %v1600
    %v1602 = vmul.f32 1.0, %v1601
    %v1603 = vtanh.pop %v1548
    %v1604 = vxor.u32 %v1596, 2147483648
    %v1605 = vmul.f32 %v1604, 1.442695
    %v1606 = vpow.pop %v1605
    %v1607 = vadd.f32 %v1606, 1.0
    %v1608 = vrcp.pop %v1607
    %v1609 = vmul.f32 1.0, %v1608
    %v1610 = vtanh.pop %v1596
    %v1611 = vmul.f32 %v1602, %v1458
    %1613 = vrot.lane.b32.xlu0 %v1603, 80
    %v1614 = vpop.permute.xlu0 %1613
    %v1616 = vmul.f32 %v1602, %v1614
    %1618 = vrot.lane.b32.xlu0 %v1616, 16
    %v1619 = vpop.permute.xlu0 %1618
    %v1621 = vadd.f32 %v1611, %v1619
    %v1622 = vmul.f32 %v1609, %v1469
    %1624 = vrot.lane.b32.xlu0 %v1610, 80
    %v1625 = vpop.permute.xlu0 %1624
    %v1627 = vmul.f32 %v1609, %v1625
    %1629 = vrot.lane.b32.xlu0 %v1627, 16
    %v1630 = vpop.permute.xlu0 %1629
    %v1632 = vadd.f32 %v1622, %v1630
    %v1633 = vtanh.pop %v1621
    %1635 = vrot.lane.b32.xlu0 %v1633, 16
    %v1636 = vpop.permute.xlu0 %1635
    %v1638 = vmul.f32 %v1602, %v1636
    %v1639 = vpack.c.bf16 %v1638, %v1638
    %v1640 = vtanh.pop %v1632
    %1642 = vrot.lane.b32.xlu0 %v1640, 16
    %v1643 = vpop.permute.xlu0 %1642
    %v1645 = vmul.f32 %v1609, %v1643
    %v1646 = vpack.c.bf16 %v1645, %v1645
    %v1648 = vunpack.c.l.b16 %v1639
    %v1649 = vpack.c.b16 %v1648, %v1648
    %1650 = vrot.lane.b32.xlu0 %v1649, 96
    %v1651 = vpop.permute.xlu0 %1650
    %s1653 = scalar_lea.vmem [#allocation4], 28
    %1654 = vst.msk [vmem:[%s1653] sm:$0xf] %vm506, %v1651
    %v1656 = vunpack.c.l.b16 %v1646
    %v1657 = vpack.c.b16 %v1656, %v1656
    %1658 = vrot.lane.b32.xlu0 %v1657, 96
    %v1659 = vpop.permute.xlu0 %1658
    %1661 = vst.msk [vmem:[#allocation5] sm:$0xf] %vm506, %v1659
    %v1662 = vld [vmem:[#allocation4] sm:$0xf]
    %v1663 = vld [vmem:[#allocation4 + $0x4] sm:$0xf]
    %v1664 = vld [vmem:[#allocation4 + $0x8] sm:$0xf]
    %v1665 = vld [vmem:[#allocation4 + $0xc] sm:$0xf]
    %v1666 = vld [vmem:[#allocation4 + $0x10] sm:$0xf]
    %v1667 = vld [vmem:[#allocation4 + $0x14] sm:$0xf]
    %v1668 = vld [vmem:[#allocation4 + $0x18] sm:$0xf]
    %v1669 = vld [vmem:[#allocation4 + $0x1c] sm:$0xf]
    %v1670 = vld [vmem:[#allocation5] sm:$0xf]
    %v1671 = vld [vmem:[#allocation5 + $0x4] sm:$0xf]
    %v1672 = vld [vmem:[#allocation5 + $0x8] sm:$0xf]
    %v1673 = vld [vmem:[#allocation5 + $0xc] sm:$0xf]
    %v1674 = vld [vmem:[#allocation5 + $0x10] sm:$0xf]
    %v1675 = vld [vmem:[#allocation5 + $0x14] sm:$0xf]
    %v1676 = vld [vmem:[#allocation5 + $0x18] sm:$0xf]
    %v1677 = vld [vmem:[#allocation5 + $0x1c] sm:$0xf]
    %v1678 = vunpack.c.l.bf16 %v1662
    %v1679 = vunpack.c.l.bf16 %v1663
    %v1680 = vunpack.c.l.bf16 %v1664
    %v1681 = vunpack.c.l.bf16 %v1665
    %v1682 = vunpack.c.l.bf16 %v1666
    %v1683 = vunpack.c.l.bf16 %v1667
    %v1684 = vunpack.c.l.bf16 %v1668
    %v1685 = vunpack.c.l.bf16 %v1669
    %v1686 = vunpack.c.l.bf16 %v1670
    %v1687 = vunpack.c.l.bf16 %v1671
    %v1688 = vunpack.c.l.bf16 %v1672
    %v1689 = vunpack.c.l.bf16 %v1673
    %v1690 = vunpack.c.l.bf16 %v1674
    %v1691 = vunpack.c.l.bf16 %v1675
    %v1692 = vunpack.c.l.bf16 %v1676
    %v1693 = vunpack.c.l.bf16 %v1677
    %1694 = vst.msk [vmem:[%s12] sm:$0xff] %vm355, %v1678
    %1695 = vst.msk [vmem:[%s12 + $0x8] sm:$0xff] %vm355, %v1679
    %1696 = vst.msk [vmem:[%s12 + $0x10] sm:$0xff] %vm355, %v1680
    %1697 = vst.msk [vmem:[%s12 + $0x18] sm:$0xff] %vm355, %v1681
    %1698 = vst.msk [vmem:[%s12 + $0x20] sm:$0xff] %vm355, %v1682
    %1699 = vst.msk [vmem:[%s12 + $0x28] sm:$0xff] %vm355, %v1683
    %1700 = vst.msk [vmem:[%s12 + $0x30] sm:$0xff] %vm355, %v1684
    %1701 = vst.msk [vmem:[%s12 + $0x38] sm:$0xff] %vm355, %v1685
    %1710 = vrot.lane.b32.xlu0 %v1686, 16
    %v1711 = vpop.permute.xlu0 %1710
    %1712 = vrot.lane.b32.xlu0 %v1687, 16
    %v1713 = vpop.permute.xlu0 %1712
    %1714 = vrot.lane.b32.xlu0 %v1688, 16
    %v1715 = vpop.permute.xlu0 %1714
    %1716 = vrot.lane.b32.xlu0 %v1689, 16
    %v1717 = vpop.permute.xlu0 %1716
    %1718 = vrot.lane.b32.xlu0 %v1690, 16
    %v1719 = vpop.permute.xlu0 %1718
    %1720 = vrot.lane.b32.xlu0 %v1691, 16
    %v1721 = vpop.permute.xlu0 %1720
    %1722 = vrot.lane.b32.xlu0 %v1692, 16
    %v1723 = vpop.permute.xlu0 %1722
    %1724 = vrot.lane.b32.xlu0 %v1693, 16
    %v1725 = vpop.permute.xlu0 %1724
    %vm1734 = vcmask 261248
    %1735 = vst.msk [vmem:[%s12] sm:$0xff] %vm1734, %v1711
    %1736 = vst.msk [vmem:[%s12 + $0x8] sm:$0xff] %vm1734, %v1713
    %1737 = vst.msk [vmem:[%s12 + $0x10] sm:$0xff] %vm1734, %v1715
    %1738 = vst.msk [vmem:[%s12 + $0x18] sm:$0xff] %vm1734, %v1717
    %1739 = vst.msk [vmem:[%s12 + $0x20] sm:$0xff] %vm1734, %v1719
    %1740 = vst.msk [vmem:[%s12 + $0x28] sm:$0xff] %vm1734, %v1721
    %1741 = vst.msk [vmem:[%s12 + $0x30] sm:$0xff] %vm1734, %v1723
    %1742 = vst.msk [vmem:[%s12 + $0x38] sm:$0xff] %vm1734, %v1725
    %v1743 = vld [vmem:[%s8] sm:$0xf]
    %v1744 = vld [vmem:[%s8 + $0x4] sm:$0xf]
    %v1745 = vld [vmem:[%s9] sm:$0xf]
    %v1746 = vld [vmem:[%s9 + $0x4] sm:$0xf]
    %v1755 = vunpack.c.l.b16 %v1670
    %v1756 = vunpack.c.l.b16 %v1671
    %v1757 = vunpack.c.l.b16 %v1672
    %v1758 = vunpack.c.l.b16 %v1673
    %v1759 = vunpack.c.l.b16 %v1674
    %v1760 = vunpack.c.l.b16 %v1675
    %v1761 = vunpack.c.l.b16 %v1676
    %v1762 = vunpack.c.l.b16 %v1677
    %v1763 = vpack.c.b16 %v1756, %v1755
    %v1764 = vpack.c.b16 %v1758, %v1757
    %v1765 = vpack.c.b16 %v1760, %v1759
    %v1766 = vpack.c.b16 %v1762, %v1761
    %v1769 = vunpack.c.l.b16 %v1745
    %v1770 = vunpack.c.l.b16 %v1746
    %v1771 = vpack.c.b16 %v1770, %v1769
    %v1774 = vsel %vm355, %v1763, 0
    %v1777 = vsel %vm355, %v1764, 0
    %v1780 = vsel %vm355, %v1765, 0
    %v1783 = vsel %vm355, %v1766, 0
    %1785 = vmatprep.subr.bf16.mxu0 0
    %1786 = vmatpush1.bf16.msra.mxu0 0
    %1787 = vmatprep.subr.bf16.mxu0 0
    %1788 = vmatpush1.bf16.msra.mxu0 0
    %1789 = vmatprep.subr.bf16.mxu0 0
    %1790 = vmatpush1.bf16.msra.mxu0 0
    %1791 = vmatprep.subr.bf16.mxu0 0
    %1792 = vmatpush1.bf16.msra.mxu0 0
    %1793 = vmatprep.subr.bf16.mxu0 0
    %1794 = vmatpush1.bf16.msra.mxu0 0
    %1795 = vmatprep.subr.bf16.mxu0 0
    %1796 = vmatpush1.bf16.msra.mxu0 0
    %1797 = vmatprep.subr.bf16.mxu0 0
    %1798 = vmatpush1.bf16.msra.mxu0 0
    %1799 = vmatprep.subr.bf16.mxu0 0
    %1800 = vmatpush1.bf16.msra.mxu0 %v1771
    %1801 = vmatprep.subr.bf16.mxu0 0
    %1802 = vmatpush2.bf16.msra.mxu0 0
    %1803 = vmatprep.subr.bf16.mxu0 0
    %1804 = vmatpush2.bf16.msra.mxu0 0
    %1805 = vmatprep.subr.bf16.mxu0 0
    %1806 = vmatpush2.bf16.msra.mxu0 0
    %1807 = vmatprep.subr.bf16.mxu0 0
    %1808 = vmatpush2.bf16.msra.mxu0 0
    %1809 = vmatprep.subr.bf16.mxu0 0
    %1810 = vmatpush2.bf16.msra.mxu0 0
    %1811 = vmatprep.subr.bf16.mxu0 0
    %1812 = vmatpush2.bf16.msra.mxu0 0
    %1813 = vmatprep.subr.bf16.mxu0 0
    %1814 = vmatpush2.bf16.msra.mxu0 0
    %1815 = vmatprep.subr.bf16.mxu0 0
    %1816 = vmatpush2.bf16.msra.mxu0 0
    %1817 = vmatprep.mubr.bf16.mxu0 0
    %1818 = vmatmul.mubr.bf16.gmra.mxu0 %v1774
    %v1819 = vpop.f32.mrf.mxu0
    %v1820 = vadd.f32 0.0, %v1819
    %v1821 = vpop.f32.mrf.mxu0
    %v1822 = vpop.f32.mrf.mxu0
    %v1823 = vadd.f32 0.0, %v1822
    %v1824 = vpop.f32.mrf.mxu0
    %1825 = vmatprep.mubr.bf16.mxu0 0
    %1826 = vmatmul.mubr.bf16.gmra.mxu0 %v1777
    %v1827 = vpop.f32.mrf.mxu0
    %v1828 = vadd.f32 0.0, %v1827
    %v1829 = vpop.f32.mrf.mxu0
    %v1830 = vpop.f32.mrf.mxu0
    %v1831 = vadd.f32 0.0, %v1830
    %v1832 = vpop.f32.mrf.mxu0
    %1833 = vmatprep.mubr.bf16.mxu0 0
    %1834 = vmatmul.mubr.bf16.gmra.mxu0 %v1780
    %v1835 = vpop.f32.mrf.mxu0
    %v1836 = vadd.f32 0.0, %v1835
    %v1837 = vpop.f32.mrf.mxu0
    %v1838 = vpop.f32.mrf.mxu0
    %v1839 = vadd.f32 0.0, %v1838
    %v1840 = vpop.f32.mrf.mxu0
    %1841 = vmatprep.mubr.bf16.mxu0 0
    %1842 = vmatmul.mubr.bf16.gmra.mxu0 %v1783
    %v1843 = vpop.f32.mrf.mxu0
    %v1844 = vadd.f32 0.0, %v1843
    %v1845 = vpop.f32.mrf.mxu0
    %v1846 = vpop.f32.mrf.mxu0
    %v1847 = vadd.f32 0.0, %v1846
    %v1848 = vpop.f32.mrf.mxu0
    %1849 = vdwg.mxu0
    %v1858 = vunpack.c.l.b16 %v1662
    %v1859 = vunpack.c.l.b16 %v1663
    %v1860 = vunpack.c.l.b16 %v1664
    %v1861 = vunpack.c.l.b16 %v1665
    %v1862 = vunpack.c.l.b16 %v1666
    %v1863 = vunpack.c.l.b16 %v1667
    %v1864 = vunpack.c.l.b16 %v1668
    %v1865 = vunpack.c.l.b16 %v1669
    %v1866 = vpack.c.b16 %v1859, %v1858
    %v1867 = vpack.c.b16 %v1861, %v1860
    %v1868 = vpack.c.b16 %v1863, %v1862
    %v1869 = vpack.c.b16 %v1865, %v1864
    %v1872 = vunpack.c.l.b16 %v1743
    %v1873 = vunpack.c.l.b16 %v1744
    %v1874 = vpack.c.b16 %v1873, %v1872
    %v1877 = vsel %vm355, %v1866, 0
    %v1880 = vsel %vm355, %v1867, 0
    %v1883 = vsel %vm355, %v1868, 0
    %v1886 = vsel %vm355, %v1869, 0
    %1888 = vmatprep.subr.bf16.mxu0 0
    %1889 = vmatpush1.bf16.msra.mxu0 0
    %1890 = vmatprep.subr.bf16.mxu0 0
    %1891 = vmatpush1.bf16.msra.mxu0 0
    %1892 = vmatprep.subr.bf16.mxu0 0
    %1893 = vmatpush1.bf16.msra.mxu0 0
    %1894 = vmatprep.subr.bf16.mxu0 0
    %1895 = vmatpush1.bf16.msra.mxu0 0
    %1896 = vmatprep.subr.bf16.mxu0 0
    %1897 = vmatpush1.bf16.msra.mxu0 0
    %1898 = vmatprep.subr.bf16.mxu0 0
    %1899 = vmatpush1.bf16.msra.mxu0 0
    %1900 = vmatprep.subr.bf16.mxu0 0
    %1901 = vmatpush1.bf16.msra.mxu0 0
    %1902 = vmatprep.subr.bf16.mxu0 0
    %1903 = vmatpush1.bf16.msra.mxu0 %v1874
    %1904 = vmatprep.subr.bf16.mxu0 0
    %1905 = vmatpush2.bf16.msra.mxu0 0
    %1906 = vmatprep.subr.bf16.mxu0 0
    %1907 = vmatpush2.bf16.msra.mxu0 0
    %1908 = vmatprep.subr.bf16.mxu0 0
    %1909 = vmatpush2.bf16.msra.mxu0 0
    %1910 = vmatprep.subr.bf16.mxu0 0
    %1911 = vmatpush2.bf16.msra.mxu0 0
    %1912 = vmatprep.subr.bf16.mxu0 0
    %1913 = vmatpush2.bf16.msra.mxu0 0
    %1914 = vmatprep.subr.bf16.mxu0 0
    %1915 = vmatpush2.bf16.msra.mxu0 0
    %1916 = vmatprep.subr.bf16.mxu0 0
    %1917 = vmatpush2.bf16.msra.mxu0 0
    %1918 = vmatprep.subr.bf16.mxu0 0
    %1919 = vmatpush2.bf16.msra.mxu0 0
    %1920 = vmatprep.mubr.bf16.mxu0 0
    %1921 = vmatmul.mubr.bf16.gmra.mxu0 %v1877
    %v1922 = vpop.f32.mrf.mxu0
    %v1923 = vadd.f32 %v1820, %v1922
    %v1924 = vpop.f32.mrf.mxu0
    %v1925 = vpop.f32.mrf.mxu0
    %v1926 = vadd.f32 %v1823, %v1925
    %v1927 = vpop.f32.mrf.mxu0
    %1928 = vmatprep.mubr.bf16.mxu0 0
    %1929 = vmatmul.mubr.bf16.gmra.mxu0 %v1880
    %v1930 = vpop.f32.mrf.mxu0
    %v1931 = vadd.f32 %v1828, %v1930
    %v1932 = vpop.f32.mrf.mxu0
    %v1933 = vpop.f32.mrf.mxu0
    %v1934 = vadd.f32 %v1831, %v1933
    %v1935 = vpop.f32.mrf.mxu0
    %1936 = vmatprep.mubr.bf16.mxu0 0
    %1937 = vmatmul.mubr.bf16.gmra.mxu0 %v1883
    %v1938 = vpop.f32.mrf.mxu0
    %v1939 = vadd.f32 %v1836, %v1938
    %v1940 = vpop.f32.mrf.mxu0
    %v1941 = vpop.f32.mrf.mxu0
    %v1942 = vadd.f32 %v1839, %v1941
    %v1943 = vpop.f32.mrf.mxu0
    %1944 = vmatprep.mubr.bf16.mxu0 0
    %1945 = vmatmul.mubr.bf16.gmra.mxu0 %v1886
    %v1946 = vpop.f32.mrf.mxu0
    %v1947 = vadd.f32 %v1844, %v1946
    %v1948 = vpop.f32.mrf.mxu0
    %v1949 = vpop.f32.mrf.mxu0
    %v1950 = vadd.f32 %v1847, %v1949
    %v1951 = vpop.f32.mrf.mxu0
    %1952 = vdwg.mxu0
    %v1953 = vld [vmem:[%s10] sm:$0x1]
    %v1955 = vlaneseq
    %v1956 = vshrl.u32 %v1955, 7
    %v1957 = vsub.s32 0, %v1956
    %v1958 = vrot.slane %v1953, %v1957
    %v1960 = vadd.f32 %v1923, %v1958
    %v1961 = vadd.f32 %v1926, %v1958
    %v1962 = vadd.f32 %v1931, %v1958
    %v1963 = vadd.f32 %v1934, %v1958
    %v1964 = vadd.f32 %v1939, %v1958
    %v1965 = vadd.f32 %v1942, %v1958
    %v1966 = vadd.f32 %v1947, %v1958
    %v1967 = vadd.f32 %v1950, %v1958
    %v1968 = vtanh.pop %v1960
    %v1969 = vtanh.pop %v1961
    %v1970 = vtanh.pop %v1962
    %v1971 = vtanh.pop %v1963
    %v1972 = vtanh.pop %v1964
    %v1973 = vtanh.pop %v1965
    %v1974 = vtanh.pop %v1966
    %v1975 = vtanh.pop %v1967
    %v1976 = vld [vmem:[%s11] sm:$0x1]
    %v1978 = vlaneseq
    %v1979 = vshrl.u32 %v1978, 7
    %v1980 = vsub.s32 0, %v1979
    %v1981 = vrot.slane %v1976, %v1980
    %v1983 = vmul.f32 %v1968, %v1981
    %v1984 = vmul.f32 %v1969, %v1981
    %v1985 = vmul.f32 %v1970, %v1981
    %v1986 = vmul.f32 %v1971, %v1981
    %v1987 = vmul.f32 %v1972, %v1981
    %v1988 = vmul.f32 %v1973, %v1981
    %v1989 = vmul.f32 %v1974, %v1981
    %v1990 = vmul.f32 %v1975, %v1981
    %v1991 = vsel %vm96, %v1983, 0.0
    %1992 = vadd.xlane.f32.xlu0 %v1991
    %v1993 = vpop.xlane.xlu0 %1992
    %v1994 = vsel %vm96, %v1984, 0.0
    %1995 = vadd.xlane.f32.xlu0 %v1994
    %v1996 = vpop.xlane.xlu0 %1995
    %v1997 = vsel %vm96, %v1985, 0.0
    %1998 = vadd.xlane.f32.xlu0 %v1997
    %v1999 = vpop.xlane.xlu0 %1998
    %v2000 = vsel %vm96, %v1986, 0.0
    %2001 = vadd.xlane.f32.xlu0 %v2000
    %v2002 = vpop.xlane.xlu0 %2001
    %v2003 = vsel %vm96, %v1987, 0.0
    %2004 = vadd.xlane.f32.xlu0 %v2003
    %v2005 = vpop.xlane.xlu0 %2004
    %v2006 = vsel %vm96, %v1988, 0.0
    %2007 = vadd.xlane.f32.xlu0 %v2006
    %v2008 = vpop.xlane.xlu0 %2007
    %v2009 = vsel %vm96, %v1989, 0.0
    %2010 = vadd.xlane.f32.xlu0 %v2009
    %v2011 = vpop.xlane.xlu0 %2010
    %v2012 = vsel %vm96, %v1990, 0.0
    %2013 = vadd.xlane.f32.xlu0 %v2012
    %v2014 = vpop.xlane.xlu0 %2013
    %v2015 = vld [vmem:[%s1] sm:$0xff]
    %v2016 = vld [vmem:[%s1 + $0x8] sm:$0xff]
    %v2017 = vld [vmem:[%s1 + $0x10] sm:$0xff]
    %v2018 = vld [vmem:[%s1 + $0x18] sm:$0xff]
    %v2019 = vld [vmem:[%s1 + $0x20] sm:$0xff]
    %v2020 = vld [vmem:[%s1 + $0x28] sm:$0xff]
    %v2021 = vld [vmem:[%s1 + $0x30] sm:$0xff]
    %v2022 = vld [vmem:[%s1 + $0x38] sm:$0xff]
    %vm2023 = vcmp.gt.f32.partialorder %v2015, 0.5
    %vm2024 = vcmp.gt.f32.partialorder %v2016, 0.5
    %vm2025 = vcmp.gt.f32.partialorder %v2017, 0.5
    %vm2026 = vcmp.gt.f32.partialorder %v2018, 0.5
    %vm2027 = vcmp.gt.f32.partialorder %v2019, 0.5
    %vm2028 = vcmp.gt.f32.partialorder %v2020, 0.5
    %vm2029 = vcmp.gt.f32.partialorder %v2021, 0.5
    %vm2030 = vcmp.gt.f32.partialorder %v2022, 0.5
    %v2031 = vsel %vm2023, %v1993, -1e-32
    %v2032 = vsel %vm2024, %v1996, -1e-32
    %v2033 = vsel %vm2025, %v1999, -1e-32
    %v2034 = vsel %vm2026, %v2002, -1e-32
    %v2035 = vsel %vm2027, %v2005, -1e-32
    %v2036 = vsel %vm2028, %v2008, -1e-32
    %v2037 = vsel %vm2029, %v2011, -1e-32
    %v2038 = vsel %vm2030, %v2014, -1e-32
    %vm2039 = vcmask 7168
    %v2040 = vsel %vm2039, %v2031, -inf
    %v2041 = vsel %vm2039, %v2032, -inf
    %v2042 = vsel %vm2039, %v2033, -inf
    %v2043 = vsel %vm2039, %v2034, -inf
    %v2044 = vsel %vm2039, %v2035, -inf
    %v2045 = vmax.f32 %v2040, %v2044
    %v2046 = vsel %vm2039, %v2036, -inf
    %v2047 = vmax.f32 %v2041, %v2046
    %v2048 = vsel %vm2039, %v2037, -inf
    %v2049 = vmax.f32 %v2042, %v2048
    %v2050 = vsel %vm2039, %v2038, -inf
    %v2051 = vmax.f32 %v2043, %v2050
    %v2052 = vmax.f32 %v2045, %v2047
    %v2053 = vmax.f32 %v2049, %v2051
    %v2054 = vmax.f32 %v2052, %v2053
    %v2055 = vsub.f32 %v2031, %v2054
    %v2056 = vsub.f32 %v2032, %v2054
    %v2057 = vsub.f32 %v2033, %v2054
    %v2058 = vsub.f32 %v2034, %v2054
    %v2059 = vsub.f32 %v2035, %v2054
    %v2060 = vsub.f32 %v2036, %v2054
    %v2061 = vsub.f32 %v2037, %v2054
    %v2062 = vsub.f32 %v2038, %v2054
    %v2063 = vmul.f32 %v2055, 1.442695
    %v2064 = vpow.pop %v2063
    %v2065 = vmul.f32 %v2056, 1.442695
    %v2066 = vpow.pop %v2065
    %v2067 = vmul.f32 %v2057, 1.442695
    %v2068 = vpow.pop %v2067
    %v2069 = vmul.f32 %v2058, 1.442695
    %v2070 = vpow.pop %v2069
    %v2071 = vmul.f32 %v2059, 1.442695
    %v2072 = vpow.pop %v2071
    %v2073 = vmul.f32 %v2060, 1.442695
    %v2074 = vpow.pop %v2073
    %v2075 = vmul.f32 %v2061, 1.442695
    %v2076 = vpow.pop %v2075
    %v2077 = vmul.f32 %v2062, 1.442695
    %v2078 = vpow.pop %v2077
    %v2079 = vsel %vm2039, %v2064, 0.0
    %v2080 = vsel %vm2039, %v2066, 0.0
    %v2081 = vadd.f32 %v2079, %v2080
    %v2082 = vsel %vm2039, %v2068, 0.0
    %v2083 = vadd.f32 %v2081, %v2082
    %v2084 = vsel %vm2039, %v2070, 0.0
    %v2085 = vadd.f32 %v2083, %v2084
    %v2086 = vsel %vm2039, %v2072, 0.0
    %v2087 = vadd.f32 %v2085, %v2086
    %v2088 = vsel %vm2039, %v2074, 0.0
    %v2089 = vadd.f32 %v2087, %v2088
    %v2090 = vsel %vm2039, %v2076, 0.0
    %v2091 = vadd.f32 %v2089, %v2090
    %v2092 = vsel %vm2039, %v2078, 0.0
    %v2093 = vadd.f32 %v2091, %v2092
    %v2094 = vrcp.pop %v2093
    %2096 = vset.pattern.permute.xlu0 0
    %2097 = vperm.xlu0 %2096, %v2064
    %v2098 = vpop.permute.xlu0 %2097
    %2101 = vset.pattern.permute.xlu0 0
    %2102 = vperm.xlu0 %2101, %v2066
    %v2103 = vpop.permute.xlu0 %2102
    %2106 = vset.pattern.permute.xlu0 0
    %2107 = vperm.xlu0 %2106, %v2068
    %v2108 = vpop.permute.xlu0 %2107
    %2111 = vset.pattern.permute.xlu0 0
    %2112 = vperm.xlu0 %2111, %v2070
    %v2113 = vpop.permute.xlu0 %2112
    %2116 = vset.pattern.permute.xlu0 0
    %2117 = vperm.xlu0 %2116, %v2072
    %v2118 = vpop.permute.xlu0 %2117
    %2121 = vset.pattern.permute.xlu0 0
    %2122 = vperm.xlu0 %2121, %v2074
    %v2123 = vpop.permute.xlu0 %2122
    %2126 = vset.pattern.permute.xlu0 0
    %2127 = vperm.xlu0 %2126, %v2076
    %v2128 = vpop.permute.xlu0 %2127
    %2131 = vset.pattern.permute.xlu0 0
    %2132 = vperm.xlu0 %2131, %v2078
    %v2133 = vpop.permute.xlu0 %2132
    %v2135 = vmul.f32 %v1678, %v2098
    %v2136 = vmul.f32 %v1679, %v2103
    %v2137 = vmul.f32 %v1680, %v2108
    %v2138 = vmul.f32 %v1681, %v2113
    %v2139 = vmul.f32 %v1682, %v2118
    %v2140 = vmul.f32 %v1683, %v2123
    %v2141 = vmul.f32 %v1684, %v2128
    %v2142 = vmul.f32 %v1685, %v2133
    %v2143 = vsel %vm355, %v2135, 0.0
    %v2144 = vsel %vm355, %v2136, 0.0
    %v2145 = vadd.f32 %v2143, %v2144
    %v2146 = vsel %vm355, %v2137, 0.0
    %v2147 = vadd.f32 %v2145, %v2146
    %v2148 = vsel %vm355, %v2138, 0.0
    %v2149 = vadd.f32 %v2147, %v2148
    %v2150 = vsel %vm355, %v2139, 0.0
    %v2151 = vadd.f32 %v2149, %v2150
    %v2152 = vsel %vm355, %v2140, 0.0
    %v2153 = vadd.f32 %v2151, %v2152
    %v2154 = vsel %vm355, %v2141, 0.0
    %v2155 = vadd.f32 %v2153, %v2154
    %v2156 = vsel %vm355, %v2142, 0.0
    %v2157 = vadd.f32 %v2155, %v2156
    %v2158 = vmul.f32 %v1686, %v2098
    %v2159 = vmul.f32 %v1687, %v2103
    %v2160 = vmul.f32 %v1688, %v2108
    %v2161 = vmul.f32 %v1689, %v2113
    %v2162 = vmul.f32 %v1690, %v2118
    %v2163 = vmul.f32 %v1691, %v2123
    %v2164 = vmul.f32 %v1692, %v2128
    %v2165 = vmul.f32 %v1693, %v2133
    %v2166 = vsel %vm355, %v2158, 0.0
    %v2167 = vsel %vm355, %v2159, 0.0
    %v2168 = vadd.f32 %v2166, %v2167
    %v2169 = vsel %vm355, %v2160, 0.0
    %v2170 = vadd.f32 %v2168, %v2169
    %v2171 = vsel %vm355, %v2161, 0.0
    %v2172 = vadd.f32 %v2170, %v2171
    %v2173 = vsel %vm355, %v2162, 0.0
    %v2174 = vadd.f32 %v2172, %v2173
    %v2175 = vsel %vm355, %v2163, 0.0
    %v2176 = vadd.f32 %v2174, %v2175
    %v2177 = vsel %vm355, %v2164, 0.0
    %v2178 = vadd.f32 %v2176, %v2177
    %v2179 = vsel %vm355, %v2165, 0.0
    %v2180 = vadd.f32 %v2178, %v2179
    %2182 = vset.pattern.permute.xlu0 0
    %2183 = vperm.xlu0 %2182, %v2094
    %v2184 = vpop.permute.xlu0 %2183
    %v2186 = vmul.f32 %v2157, %v2184
    %2187 = vst.msk [vmem:[#allocation6] sm:$0xff] %vm355, %v2186
    %v2188 = vmul.f32 %v2180, %v2184
    %2190 = vrot.lane.b32.xlu0 %v2188, 16
    %v2191 = vpop.permute.xlu0 %2190
    %2193 = vst.msk [vmem:[#allocation6] sm:$0xff] %vm1734, %v2191
    // Predicated region
    $region50: #{tpu_custom_call.1} parent=1 // pred_check
      _
    $region51: #{tpu_custom_call.1} parent=1 // pred_check_branch
      %2195 = sbr.rel (0) target = $region53
    $region52: #{tpu_custom_call.1} parent=1 // pred_region
      _
    $region53: #{tpu_custom_call.1} parent=1 // pred_fallthru
      _
    // Predicated region
    $region54: #{tpu_custom_call.1} parent=1 // pred_check
      _
    $region55: #{tpu_custom_call.1} parent=1 // pred_check_branch
      %2197 = sbr.rel (0) target = $region57
    $region56: #{tpu_custom_call.1} parent=1 // pred_region
      %s2199 = ssub.s32 128, 128
      %2200 = vsyncadd [#allocation7], %s2199
      %s2202 = sshll.u32 [#allocation6], 4
      %s2203 = int_to_ptr.vmem [resolvable:$true] %s2202
      %2205 = dma.vmem_to_hbm [thread:$0]  %s2203, 128, %s13, [#allocation7]
    $region57: #{tpu_custom_call.1} parent=1 // pred_fallthru
      _
    // Predicated region
    $region58: #{tpu_custom_call.1} parent=1 // pred_check
      _
    $region59: #{tpu_custom_call.1} parent=1 // pred_check_branch
      %2207 = sbr.rel (0) target = $region61
    $region60: #{tpu_custom_call.1} parent=1 // pred_region
      _
    $region61: #{tpu_custom_call.1} parent=1 // pred_fallthru
      _
    // Predicated region
    $region62: #{tpu_custom_call.1} parent=1 // pred_check
      _
    $region63: #{tpu_custom_call.1} parent=1 // pred_check_branch
      %2209 = sbr.rel (0) target = $region65
    $region64: #{tpu_custom_call.1} parent=1 // pred_region
      %2210 = dma.done [#allocation7], 128
    $region65: #{tpu_custom_call.1} parent=1 // pred_fallthru
      _
    %2211 = vsyncpa [#allocation7], 1

</llo_original>
